<compile_context>
chip_gen: v7x
topology: tpu7x:2x2x1
jax: 0.10.0
libtpu: 0.0.40
codegen_flags: <defaults>
</compile_context>

<pallas_src>
import functools

import numpy as np
import jax
import jax.numpy as jnp
from jax import lax
from jax.experimental import pallas as pl
from jax.experimental.pallas import tpu as pltpu

LRELU_SLOPE = 0.01
BN_EPS = 1e-5


def _leaky(v):
    return jnp.where(v >= 0, v, LRELU_SLOPE * v)


def _round_up(x, m):
    return ((x + m - 1) // m) * m


# --------------------------- packed-operand layouts ---------------------------

def _slab_layouts(c, half, cout, ncls, ksize):
    """Row layouts of the bf16 weight slab and the f32 shift/scale slab."""
    wl, sl = {}, {}
    r = 0

    def add_w(name, rows, cols):
        nonlocal r
        wl[name] = (r, rows, cols)
        r += _round_up(rows, 16)                      # bf16 sublane tile

    add_w("g_h", half, 3 * c)                         # conv_hgt1 (taps on K)
    add_w("g_w", half, 3 * c)                         # conv_hgt2
    add_w("m2_h", half + cout, ksize * half)          # hwPred1[0]+upDim1[0]
    add_w("m2_w", half + cout, ksize * half)          # hwPred2[0]+upDim2[0]
    add_w("p_h", ncls, half)                          # hwPred1[1]
    add_w("p_w", ncls, half)                          # hwPred2[1]
    add_w("u_h", cout, cout)                          # upDim1[1]
    add_w("u_w", cout, cout)                          # upDim2[1]
    add_w("c2", c, c)                                 # cmbFea[1]
    wshape = (_round_up(r, 16),
              _round_up(max(3 * c, ksize * half, half, cout, c), 128))

    s = 0

    def add_s(name, rows):
        nonlocal s
        sl[name] = (s, rows)
        s += _round_up(rows, 8)                       # f32 sublane tile

    for b in ("h", "w"):
        add_s("g_" + b, half)
        add_s("m2_" + b, half + cout)
        add_s("p_" + b, ncls)
        add_s("u_" + b, cout)
    add_s("c1", c)
    add_s("c2", c)
    add_s("gsq", c)
    add_s("bsq", c)
    sshape = (s, 1)
    return wl, wshape, sl, sshape


# ----------------------- parameter prep (BN fold + pack) ----------------------

def _bn_fold(bn):
    scale = bn["weight"] / jnp.sqrt(bn["var"] + BN_EPS)
    shift = bn["bias"] - bn["mean"] * scale
    return scale, shift


def fold_params(raw):
    """Fold eval-mode BN into the conv weights; stack conv taps along K."""
    fp = {}

    def c1d(name, w_key, bn_key):
        scale, shift = _bn_fold(raw[bn_key])
        wgt = raw[w_key]                                   # (co, ci, k)
        co, ci, k = wgt.shape
        wst = jnp.transpose(wgt, (0, 2, 1)).reshape(co, k * ci) * scale[:, None]
        fp[name + "_w"] = wst.astype(jnp.bfloat16)         # (co, k*ci)
        fp[name + "_s"] = shift.reshape(-1, 1).astype(jnp.float32)

    def pw(name, w_key, b_key):
        fp[name + "_w"] = raw[w_key][:, :, 0].astype(jnp.bfloat16)   # (co, ci)
        fp[name + "_b"] = raw[b_key].reshape(-1, 1).astype(jnp.float32)

    c1d("h_g", "hgt1_w", "hgt1_bn")
    c1d("w_g", "hgt2_w", "hgt2_bn")
    c1d("h_pa", "hp1a_w", "hp1a_bn")
    pw("h_pb", "hp1b_w", "hp1b_b")
    c1d("w_pa", "hp2a_w", "hp2a_bn")
    pw("w_pb", "hp2b_w", "hp2b_b")
    c1d("h_ua", "up1a_w", "up1a_bn")
    pw("h_ub", "up1b_w", "up1b_b")
    c1d("w_ua", "up2a_w", "up2a_bn")
    pw("w_ub", "up2b_w", "up2b_b")

    # cmbFea[0]: 3x3 conv, nine taps stacked -> (c, 9*2c), BN folded.
    scale, shift = _bn_fold(raw["cmb1_bn"])
    wgt = raw["cmb1_w"]                                    # (c, 2c, 3, 3)
    co, ci = wgt.shape[0], wgt.shape[1]
    w1 = jnp.transpose(wgt, (0, 2, 3, 1)).reshape(co, 9 * ci) * scale[:, None]
    fp["c1_w"] = w1.astype(jnp.bfloat16)
    fp["c1_s"] = shift.reshape(-1, 1).astype(jnp.float32)
    # cmbFea[1]: 1x1 conv.
    scale, shift = _bn_fold(raw["cmb2_bn"])
    fp["c2_w"] = (raw["cmb2_w"][:, :, 0, 0] * scale[:, None]).astype(jnp.bfloat16)
    fp["c2_s"] = shift.reshape(-1, 1).astype(jnp.float32)

    # conv_clsUp gamma path: batch-independent -> evaluate once here.
    g1 = raw["cls1_w"][:, :, 0, 0] @ raw["gamma"]
    g1 = jnp.where(g1 >= 0, g1, LRELU_SLOPE * g1)
    g2 = jax.nn.sigmoid(raw["cls2_w"][:, :, 0, 0] @ g1)
    fp["gsq"] = (g2 * g2).reshape(-1, 1).astype(jnp.float32)
    fp["bsq"] = ((1.0 - g2) ** 2).reshape(-1, 1).astype(jnp.float32)
    return fp


def _pool_sel(h, w):
    """Constant pooling matrix (P, h+w) and broadcast-selection matrix (h+w, P)."""
    P = h * w
    p = np.arange(P)
    ih, iw = p // w, p % w
    pool_h = (ih[:, None] == np.arange(h)[None, :]).astype(np.float32) / w
    pool_w = (iw[:, None] == np.arange(w)[None, :]).astype(np.float32) / h
    pool = np.concatenate([pool_h, pool_w], axis=1)                  # (P, h+w)
    sel_w = (np.arange(w)[:, None] == iw[None, :]).astype(np.float32)
    sel_h = (np.arange(h)[:, None] == ih[None, :]).astype(np.float32)
    sel = np.concatenate([sel_w, sel_h], axis=0)                     # (w+h, P)
    return jnp.asarray(pool, jnp.bfloat16), jnp.asarray(sel, jnp.bfloat16)


def _merge_second_stage(pa_w, ua_w, half, cout, ksize):
    # Embed the k=3 hwPred conv at taps [k//2-1 .. k//2+1] of the k=ksize
    # upDim conv so both share a single stacked-tap dot.
    assert ksize >= 3 and ksize % 2 == 1
    off = (ksize // 2 - 1) * half
    m = jnp.zeros((half + cout, ksize * half), jnp.bfloat16)
    m = m.at[:half, off:off + 3 * half].set(pa_w)
    m = m.at[half:, :].set(ua_w)
    return m


def pack_params(fp, dims):
    """Pack the many tiny operands into one bf16 weight slab + one f32 slab."""
    c, half, cout = dims["c"], dims["half"], dims["cout"]
    ncls, ksize = dims["ncls"], dims["ksize"]
    h, w = dims["h"], dims["w"]
    wl, wshape, sl, sshape = _slab_layouts(c, half, cout, ncls, ksize)

    wslab = jnp.zeros(wshape, jnp.bfloat16)

    def put_w(slab, name, arr):
        r0, rows, cols = wl[name]
        return slab.at[r0:r0 + rows, :cols].set(arr.astype(jnp.bfloat16))

    wslab = put_w(wslab, "g_h", fp["h_g_w"])
    wslab = put_w(wslab, "g_w", fp["w_g_w"])
    wslab = put_w(wslab, "m2_h",
                  _merge_second_stage(fp["h_pa_w"], fp["h_ua_w"], half, cout, ksize))
    wslab = put_w(wslab, "m2_w",
                  _merge_second_stage(fp["w_pa_w"], fp["w_ua_w"], half, cout, ksize))
    wslab = put_w(wslab, "p_h", fp["h_pb_w"])
    wslab = put_w(wslab, "p_w", fp["w_pb_w"])
    wslab = put_w(wslab, "u_h", fp["h_ub_w"])
    wslab = put_w(wslab, "u_w", fp["w_ub_w"])
    wslab = put_w(wslab, "c2", fp["c2_w"])

    sslab = jnp.zeros(sshape, jnp.float32)

    def put_s(slab, name, vec):
        r0, rows = sl[name]
        return slab.at[r0:r0 + rows, :].set(vec.astype(jnp.float32))

    for b in ("h", "w"):
        sslab = put_s(sslab, "g_" + b, fp[b + "_g_s"])
        sslab = put_s(sslab, "m2_" + b,
                      jnp.concatenate([fp[b + "_pa_s"], fp[b + "_ua_s"]], axis=0))
        sslab = put_s(sslab, "p_" + b, fp[b + "_pb_b"])
        sslab = put_s(sslab, "u_" + b, fp[b + "_ub_b"])
    sslab = put_s(sslab, "c1", fp["c1_s"])
    sslab = put_s(sslab, "c2", fp["c2_s"])
    sslab = put_s(sslab, "gsq", fp["gsq"])
    sslab = put_s(sslab, "bsq", fp["bsq"])

    pool, sel = _pool_sel(h, w)
    return dict(wslab=wslab, sslab=sslab, w1=fp["c1_w"], pool=pool, sel=sel)


# ------------------------------ fused Pallas kernel ---------------------------

def _const_spec(a):
    nd = a.ndim
    return pl.BlockSpec(a.shape, lambda i, _nd=nd: (0,) * _nd)


def build_forward(dims):
    c, half, cout = dims["c"], dims["half"], dims["cout"]
    ncls, ksize = dims["ncls"], dims["ksize"]
    hh, ww = dims["h"], dims["w"]
    assert cout == c, "residual combine requires feat_in == feat_out"
    wl, _, sl, _ = _slab_layouts(c, half, cout, ncls, ksize)

    @jax.jit
    def forward(fea, pp):
        n, cc, h, w = fea.shape
        assert (cc, h, w) == (c, hh, ww)
        P = h * w
        fea2 = fea.reshape(n, c, P)                        # free, lane-dense view

        def kernel(fea_ref, pool_ref, sel_ref, wsl_ref, w1_ref, ssl_ref,
                   out_ref, hp_ref, tap_ref):

            def wblk(name):
                r0, rows, cols = wl[name]
                return wsl_ref[r0:r0 + rows, :cols]

            def sblk(name):
                r0, rows = sl[name]
                return ssl_ref[r0:r0 + rows, :]

            x = fea_ref[0]                                             # (c, P) f32

            # ---------------- HEAD (all VMEM-resident) ----------------
            # row/col adaptive-avg-pool as one MXU matmul (1/w, 1/h folded
            # into the constant pooling matrix).
            pooled = jnp.dot(x.astype(jnp.bfloat16), pool_ref[...],
                             preferred_element_type=jnp.float32)       # (c, h+w)

            def stack_taps(inp, k):
                # "same" 1-D conv operand with all k taps stacked on K.
                ci, L = inp.shape
                pad = k // 2
                z = jnp.zeros((ci, pad), jnp.bfloat16)
                xp = jnp.concatenate([z, inp.astype(jnp.bfloat16), z], axis=1)
                return jnp.concatenate([xp[:, dk:dk + L] for dk in range(k)],
                                       axis=0)                         # (k*ci, L)

            def branch(inp, b):
                # conv_hgt{1,2}: one dot, K = 3*c (BN folded, shift added here).
                h1 = _leaky(jnp.dot(wblk("g_" + b), stack_taps(inp, 3),
                                    preferred_element_type=jnp.float32)
                            + sblk("g_" + b))
                # conv_hwPred*[0] and conv_upDim*[0] merged into one dot.
                a = _leaky(jnp.dot(wblk("m2_" + b), stack_taps(h1, ksize),
                                   preferred_element_type=jnp.float32)
                           + sblk("m2_" + b))
                pred = jax.nn.sigmoid(
                    jnp.dot(wblk("p_" + b), a[:half].astype(jnp.bfloat16),
                            preferred_element_type=jnp.float32) + sblk("p_" + b))
                up = jax.nn.sigmoid(
                    jnp.dot(wblk("u_" + b), a[half:].astype(jnp.bfloat16),
                            preferred_element_type=jnp.float32) + sblk("u_" + b))
                return pred, up

            pred_h, up_h = branch(pooled[:, :h], "h")
            pred_w, up_w = branch(pooled[:, h:], "w")
            hp_ref[0] = jnp.concatenate([pred_h, pred_w], axis=1)      # (ncls, h+w)

            # ---------------- TAIL: combine + cmbFea ----------------
            # bilinear(align_corners) upsample from a size-1 axis == exact
            # broadcast -> one selection matmul against the constant 0/1 S.
            u = jnp.concatenate([sblk("bsq") * up_w, sblk("gsq") * up_h],
                                axis=1)                                # (c, w+h)
            hw = jnp.dot(u.astype(jnp.bfloat16), sel_ref[...],
                         preferred_element_type=jnp.float32)           # (c, P)
            xnew = x * (hw + 1.0)                                      # fea*hw + fea
            xcat = jnp.concatenate([xnew, hw], axis=0).astype(jnp.bfloat16)

            # 3x3 "same" conv: nine shifted taps stacked on K in VMEM scratch,
            # then ONE K=9*2c dot.  Row wrap handled by a +/-(w+1) zero pad;
            # column wrap masked with selects (no bf16 multiplies).
            padw = w + 1
            zpad = jnp.zeros((2 * c, padw), jnp.bfloat16)
            xpad = jnp.concatenate([zpad, xcat, zpad], axis=1)
            col = lax.broadcasted_iota(jnp.int32, (2 * c, P), 1)
            iw = lax.rem(col, jnp.full_like(col, w))
            zeros = jnp.zeros((2 * c, P), jnp.bfloat16)
            not_left = iw > 0
            not_right = iw < (w - 1)
            for di in range(3):
                for dj in range(3):
                    t = di * 3 + dj
                    shift = (di - 1) * w + (dj - 1)
                    sliced = xpad[:, padw + shift: padw + shift + P]
                    if dj == 0:
                        sliced = jnp.where(not_left, sliced, zeros)
                    elif dj == 2:
                        sliced = jnp.where(not_right, sliced, zeros)
                    tap_ref[t * 2 * c:(t + 1) * 2 * c, :] = sliced
            t1 = _leaky(jnp.dot(w1_ref[...], tap_ref[...],
                                preferred_element_type=jnp.float32)
                        + sblk("c1"))                                  # cmbFea[0]
            o = jnp.dot(wblk("c2"), t1.astype(jnp.bfloat16),
                        preferred_element_type=jnp.float32) + sblk("c2")
            out_ref[0] = _leaky(o)                                     # cmbFea[1]

        consts = (pp["pool"], pp["sel"], pp["wslab"], pp["w1"], pp["sslab"])
        flops = int(n * (2 * c * P * (h + w) * 2
                         + 2 * half * 3 * c * (h + w)
                         + 2 * (half + cout) * ksize * half * (h + w)
                         + 2 * (ncls * half + cout * cout) * (h + w)
                         + 2 * c * (9 * 2 * c + c) * P))
        const_bytes = sum(int(np.prod(a.shape)) * a.dtype.itemsize for a in consts)
        bytes_accessed = int(4 * (2 * n * c * P + n * ncls * (h + w)) + const_bytes)

        out, hp = pl.pallas_call(
            kernel,
            grid=(n,),
            in_specs=[pl.BlockSpec((1, c, P), lambda i: (i, 0, 0))]
                     + [_const_spec(a) for a in consts],
            out_specs=(pl.BlockSpec((1, c, P), lambda i: (i, 0, 0)),
                       pl.BlockSpec((1, ncls, h + w), lambda i: (i, 0, 0))),
            out_shape=(jax.ShapeDtypeStruct((n, c, P), jnp.float32),
                       jax.ShapeDtypeStruct((n, ncls, h + w), jnp.float32)),
            scratch_shapes=[pltpu.VMEM((9 * 2 * c, P), jnp.bfloat16)],
            compiler_params=pltpu.CompilerParams(
                dimension_semantics=("parallel",)),
            cost_estimate=pl.CostEstimate(
                flops=flops,
                transcendentals=int(n * (ncls + cout) * (h + w)),
                bytes_accessed=bytes_accessed),
        )(fea2, *consts)
        return out.reshape(n, c, h, w), hp[:, :, :h], hp[:, :, h:]

    return forward


# ------------------------------ pure-JAX reference ----------------------------
# Matching math: BN folded, bf16 MXU operands with f32 accumulation, and the
# same bf16 quantization points (pooled fea, gamma/beta-scaled up_h/up_w).

def _ref_conv1d(x, wst, shift, k):
    nb, ci, L = x.shape
    pad = k // 2
    z = jnp.zeros((nb, ci, pad), jnp.float32)
    xp = jnp.concatenate([z, x, z], axis=2).astype(jnp.bfloat16)
    co = wst.shape[0]
    acc = jnp.zeros((nb, co, L), jnp.float32)
    for dk in range(k):
        acc = acc + jnp.einsum("oc,ncl->nol", wst[:, dk * ci:(dk + 1) * ci],
                               xp[:, :, dk:dk + L],
                               preferred_element_type=jnp.float32)
    return acc + shift[None]


@functools.partial(jax.jit, static_argnames=("ksize",))
def ref_forward(fea, fp, ksize):
    n, c, h, w = fea.shape
    feab = fea.astype(jnp.bfloat16).astype(jnp.float32)
    xh = feab.mean(axis=3)
    xw = feab.mean(axis=2)

    def branch(x, b):
        h1 = _leaky(_ref_conv1d(x, fp[b + "_g_w"], fp[b + "_g_s"], 3))
        pa = _leaky(_ref_conv1d(h1, fp[b + "_pa_w"], fp[b + "_pa_s"], 3))
        pred = jax.nn.sigmoid(
            jnp.einsum("oc,ncl->nol", fp[b + "_pb_w"], pa.astype(jnp.bfloat16),
                       preferred_element_type=jnp.float32) + fp[b + "_pb_b"][None])
        ua = _leaky(_ref_conv1d(h1, fp[b + "_ua_w"], fp[b + "_ua_s"], ksize))
        up = jax.nn.sigmoid(
            jnp.einsum("oc,ncl->nol", fp[b + "_ub_w"], ua.astype(jnp.bfloat16),
                       preferred_element_type=jnp.float32) + fp[b + "_ub_b"][None])
        return pred, up

    hp_h, up_h = branch(xh, "h")
    hp_w, up_w = branch(xw, "w")

    gsq = fp["gsq"].reshape(1, c, 1)
    bsq = fp["bsq"].reshape(1, c, 1)
    uw = (bsq * up_w).astype(jnp.bfloat16).astype(jnp.float32)
    uh = (gsq * up_h).astype(jnp.bfloat16).astype(jnp.float32)
    hw = uw[:, :, None, :] + uh[:, :, :, None]                         # (n,c,h,w)
    xnew = fea * (hw + 1.0)
    xcat = jnp.concatenate([xnew, hw], axis=1)
    xp = jnp.pad(xcat, ((0, 0), (0, 0), (1, 1), (1, 1))).astype(jnp.bfloat16)
    acc = jnp.zeros((n, c, h, w), jnp.float32)
    for di in range(3):
        for dj in range(3):
            wk = fp["c1_w"][:, (di * 3 + dj) * 2 * c:(di * 3 + dj + 1) * 2 * c]
            acc = acc + jnp.einsum("oc,nchw->nohw", wk,
                                   xp[:, :, di:di + h, dj:dj + w],
                                   preferred_element_type=jnp.float32)
    t = _leaky(acc + fp["c1_s"].reshape(1, c, 1, 1))
    o = jnp.einsum("oc,nchw->nohw", fp["c2_w"], t.astype(jnp.bfloat16),
                   preferred_element_type=jnp.float32) + fp["c2_s"].reshape(1, c, 1, 1)
    return _leaky(o), hp_h, hp_w


# ------------------------------ parameter init --------------------------------

def init_params(key, feat_in, feat_out, num_classes, ksize):
    half = feat_out // 2
    keys = iter(jax.random.split(key, 64))

    def w(shape, scale=0.1):
        return scale * jax.random.normal(next(keys), shape, jnp.float32)

    def bn(ch):
        return dict(
            weight=1.0 + 0.1 * jax.random.normal(next(keys), (ch,), jnp.float32),
            bias=0.1 * jax.random.normal(next(keys), (ch,), jnp.float32),
            mean=0.1 * jax.random.normal(next(keys), (ch,), jnp.float32),
            var=1.0 + 0.1 * jnp.abs(jax.random.normal(next(keys), (ch,), jnp.float32)),
        )

    return dict(
        gamma=jnp.ones((num_classes,), jnp.float32),
        hgt1_w=w((half, feat_in, 3)), hgt1_bn=bn(half),
        hgt2_w=w((half, feat_in, 3)), hgt2_bn=bn(half),
        hp1a_w=w((half, half, 3)), hp1a_bn=bn(half),
        hp1b_w=w((num_classes, half, 1)), hp1b_b=w((num_classes,)),
        hp2a_w=w((half, half, 3)), hp2a_bn=bn(half),
        hp2b_w=w((num_classes, half, 1)), hp2b_b=w((num_classes,)),
        up1a_w=w((feat_out, half, ksize)), up1a_bn=bn(feat_out),
        up1b_w=w((feat_out, feat_out, 1)), up1b_b=w((feat_out,)),
        up2a_w=w((feat_out, half, ksize)), up2a_bn=bn(feat_out),
        up2b_w=w((feat_out, feat_out, 1)), up2b_b=w((feat_out,)),
        cls1_w=w((half, num_classes, 1, 1)),
        cls2_w=w((feat_out, half, 1, 1)),
        cmb1_w=w((feat_in, 2 * feat_in, 3, 3)), cmb1_bn=bn(feat_in),
        cmb2_w=w((feat_in, feat_in, 1, 1)), cmb2_bn=bn(feat_in),
    )


# ----------------------------------- main --------------------------------------

if __name__ == "__main__":
    # Small config consistent with the module (feat_in must equal feat_out for
    # the residual combine): batch=2, feat_in=feat_out=32, num_classes=5,
    # h=w=16, kernel_size=7.
    n, feat_in, feat_out, num_classes, hh, ww, ksize = 2, 32, 32, 5, 16, 16, 7
    dims = dict(c=feat_in, half=feat_out // 2, cout=feat_out,
                ncls=num_classes, ksize=ksize, h=hh, w=ww)

    key = jax.random.PRNGKey(0)
    kx, kp = jax.random.split(key)
    fea = jax.random.normal(kx, (n, feat_in, hh, ww), jnp.float32)
    raw = init_params(kp, feat_in, feat_out, num_classes, ksize)

    fp = fold_params(raw)
    pp = pack_params(fp, dims)
    forward = build_forward(dims)

    out, hp_h, hp_w = jax.block_until_ready(forward(fea, pp))
    ref_out, ref_hp_h, ref_hp_w = jax.block_until_ready(
        ref_forward(fea, fp, ksize=ksize))

    assert out.shape == (n, feat_in, hh, ww)
    assert hp_h.shape == (n, num_classes, hh)
    assert hp_w.shape == (n, num_classes, ww)
    assert np.allclose(np.asarray(hp_h), np.asarray(ref_hp_h), rtol=1e-2, atol=1e-2)
    assert np.allclose(np.asarray(hp_w), np.asarray(ref_hp_w), rtol=1e-2, atol=1e-2)
    assert np.allclose(np.asarray(out), np.asarray(ref_out), rtol=1e-2, atol=2e-2)

    print("KERNEL_OK")
</pallas_src>

<mosaic_0001>
module attributes {stable_mosaic.version = 11 : i64} {
  func.func @kernel(%arg0: i32, %arg1: memref<1x32x256xf32, #tpu.memory_space<vmem>>, %arg2: memref<256x32xbf16, #tpu.memory_space<vmem>>, %arg3: memref<32x256xbf16, #tpu.memory_space<vmem>>, %arg4: memref<256x128xbf16, #tpu.memory_space<vmem>>, %arg5: memref<32x576xbf16, #tpu.memory_space<vmem>>, %arg6: memref<336x1xf32, #tpu.memory_space<vmem>>, %arg7: memref<1x32x256xf32, #tpu.memory_space<vmem>>, %arg8: memref<1x5x32xf32, #tpu.memory_space<vmem>>, %arg9: memref<576x256xbf16, #tpu.memory_space<vmem>>) attributes {dimension_semantics = [#tpu.dimension_semantics<parallel>], iteration_bounds = array<i64: 2>, scalar_prefetch = 0 : i64, scratch_operands = 1 : i64, tpu.core_type = #tpu.core_type<tc>, window_params = [{transform_indices = @transform_0, window_bounds = array<i64: 1, 32, 256>}, {pipeline_mode = #tpu.pipeline_mode<synchronous>, transform_indices = @transform_1, window_bounds = array<i64: 256, 32>}, {pipeline_mode = #tpu.pipeline_mode<synchronous>, transform_indices = @transform_2, window_bounds = array<i64: 32, 256>}, {pipeline_mode = #tpu.pipeline_mode<synchronous>, transform_indices = @transform_3, window_bounds = array<i64: 256, 128>}, {pipeline_mode = #tpu.pipeline_mode<synchronous>, transform_indices = @transform_4, window_bounds = array<i64: 32, 576>}, {pipeline_mode = #tpu.pipeline_mode<synchronous>, transform_indices = @transform_5, window_bounds = array<i64: 336, 1>}, {transform_indices = @transform_6, window_bounds = array<i64: 1, 32, 256>}, {transform_indices = @transform_7, window_bounds = array<i64: 1, 5, 32>}]} {
    %c0 = arith.constant 0 : index
    %c0_0 = arith.constant 0 : index
    %c0_1 = arith.constant 0 : index
    %0 = vector.load %arg1[%c0, %c0_0, %c0_1] : memref<1x32x256xf32, #tpu.memory_space<vmem>>, vector<1x32x256xf32>
    %1 = vector.shape_cast %0 : vector<1x32x256xf32> to vector<32x256xf32>
    %2 = arith.truncf %1 : vector<32x256xf32> to vector<32x256xbf16>
    %c0_2 = arith.constant 0 : index
    %c0_3 = arith.constant 0 : index
    %3 = vector.load %arg2[%c0_2, %c0_3] : memref<256x32xbf16, #tpu.memory_space<vmem>>, vector<256x32xbf16>
    %cst = arith.constant dense<0.000000e+00> : vector<32x32xf32>
    %4 = tpu.matmul %2, %3, %cst {dimension_numbers = #tpu.dot_dimension_numbers<[1], [0], [0], [1], [0, 0, 1, 1], [], []>} : vector<32x256xbf16>, vector<256x32xbf16>, vector<32x32xf32> -> vector<32x32xf32>
    %5 = vector.extract_strided_slice %4 {offsets = [0, 0], sizes = [32, 16], strides = [1, 1]} : vector<32x32xf32> to vector<32x16xf32>
    %c0_4 = arith.constant 0 : index
    %c0_5 = arith.constant 0 : index
    %6 = vector.load %arg4[%c0_4, %c0_5] : memref<256x128xbf16, #tpu.memory_space<vmem>>, vector<16x96xbf16>
    %cst_6 = arith.constant 0.000000e+00 : bf16
    %7 = vector.broadcast %cst_6 : bf16 to vector<32x1xbf16>
    %8 = arith.truncf %5 : vector<32x16xf32> to vector<32x16xbf16>
    %9 = tpu.concatenate %7, %8, %7 in 1 : vector<32x1xbf16>, vector<32x16xbf16>, vector<32x1xbf16> -> vector<32x18xbf16>
    %10 = vector.extract_strided_slice %9 {offsets = [0, 0], sizes = [32, 16], strides = [1, 1]} : vector<32x18xbf16> to vector<32x16xbf16>
    %11 = vector.extract_strided_slice %9 {offsets = [0, 1], sizes = [32, 16], strides = [1, 1]} : vector<32x18xbf16> to vector<32x16xbf16>
    %12 = vector.extract_strided_slice %9 {offsets = [0, 2], sizes = [32, 16], strides = [1, 1]} : vector<32x18xbf16> to vector<32x16xbf16>
    %13 = tpu.concatenate %10, %11, %12 in 0 : vector<32x16xbf16>, vector<32x16xbf16>, vector<32x16xbf16> -> vector<96x16xbf16>
    %cst_7 = arith.constant dense<0.000000e+00> : vector<16x16xf32>
    %14 = tpu.matmul %6, %13, %cst_7 {dimension_numbers = #tpu.dot_dimension_numbers<[1], [0], [0], [1], [0, 0, 1, 1], [], []>} : vector<16x96xbf16>, vector<96x16xbf16>, vector<16x16xf32> -> vector<16x16xf32>
    %c0_8 = arith.constant 0 : index
    %c0_9 = arith.constant 0 : index
    %15 = vector.load %arg6[%c0_8, %c0_9] : memref<336x1xf32, #tpu.memory_space<vmem>>, vector<16x1xf32>
    %16 = vector.broadcast %15 : vector<16x1xf32> to vector<16x16xf32>
    %17 = arith.addf %14, %16 : vector<16x16xf32>
    %cst_10 = arith.constant 0.000000e+00 : f32
    %18 = vector.broadcast %cst_10 : f32 to vector<16x16xf32>
    %19 = arith.cmpf oge, %17, %18 : vector<16x16xf32>
    %cst_11 = arith.constant 0.00999999977 : f32
    %20 = vector.broadcast %cst_11 : f32 to vector<16x16xf32>
    %21 = arith.mulf %20, %17 : vector<16x16xf32>
    %22 = arith.select %19, %17, %21 : vector<16x16xi1>, vector<16x16xf32>
    %c32 = arith.constant 32 : index
    %c0_12 = arith.constant 0 : index
    %23 = vector.load %arg4[%c32, %c0_12] : memref<256x128xbf16, #tpu.memory_space<vmem>>, vector<48x112xbf16>
    %cst_13 = arith.constant 0.000000e+00 : bf16
    %24 = vector.broadcast %cst_13 : bf16 to vector<16x3xbf16>
    %25 = arith.truncf %22 : vector<16x16xf32> to vector<16x16xbf16>
    %26 = tpu.concatenate %24, %25, %24 in 1 : vector<16x3xbf16>, vector<16x16xbf16>, vector<16x3xbf16> -> vector<16x22xbf16>
    %27 = vector.extract_strided_slice %26 {offsets = [0, 0], sizes = [16, 16], strides = [1, 1]} : vector<16x22xbf16> to vector<16x16xbf16>
    %28 = vector.extract_strided_slice %26 {offsets = [0, 1], sizes = [16, 16], strides = [1, 1]} : vector<16x22xbf16> to vector<16x16xbf16>
    %29 = vector.extract_strided_slice %26 {offsets = [0, 2], sizes = [16, 16], strides = [1, 1]} : vector<16x22xbf16> to vector<16x16xbf16>
    %30 = vector.extract_strided_slice %26 {offsets = [0, 3], sizes = [16, 16], strides = [1, 1]} : vector<16x22xbf16> to vector<16x16xbf16>
    %31 = vector.extract_strided_slice %26 {offsets = [0, 4], sizes = [16, 16], strides = [1, 1]} : vector<16x22xbf16> to vector<16x16xbf16>
    %32 = vector.extract_strided_slice %26 {offsets = [0, 5], sizes = [16, 16], strides = [1, 1]} : vector<16x22xbf16> to vector<16x16xbf16>
    %33 = vector.extract_strided_slice %26 {offsets = [0, 6], sizes = [16, 16], strides = [1, 1]} : vector<16x22xbf16> to vector<16x16xbf16>
    %34 = tpu.concatenate %27, %28, %29, %30, %31, %32, %33 in 0 : vector<16x16xbf16>, vector<16x16xbf16>, vector<16x16xbf16>, vector<16x16xbf16>, vector<16x16xbf16>, vector<16x16xbf16>, vector<16x16xbf16> -> vector<112x16xbf16>
    %cst_14 = arith.constant dense<0.000000e+00> : vector<48x16xf32>
    %35 = tpu.matmul %23, %34, %cst_14 {dimension_numbers = #tpu.dot_dimension_numbers<[1], [0], [0], [1], [0, 0, 1, 1], [], []>} : vector<48x112xbf16>, vector<112x16xbf16>, vector<48x16xf32> -> vector<48x16xf32>
    %c16 = arith.constant 16 : index
    %c0_15 = arith.constant 0 : index
    %36 = vector.load %arg6[%c16, %c0_15] : memref<336x1xf32, #tpu.memory_space<vmem>>, vector<48x1xf32>
    %37 = vector.broadcast %36 : vector<48x1xf32> to vector<48x16xf32>
    %38 = arith.addf %35, %37 : vector<48x16xf32>
    %cst_16 = arith.constant 0.000000e+00 : f32
    %39 = vector.broadcast %cst_16 : f32 to vector<48x16xf32>
    %40 = arith.cmpf oge, %38, %39 : vector<48x16xf32>
    %cst_17 = arith.constant 0.00999999977 : f32
    %41 = vector.broadcast %cst_17 : f32 to vector<48x16xf32>
    %42 = arith.mulf %41, %38 : vector<48x16xf32>
    %43 = arith.select %40, %38, %42 : vector<48x16xi1>, vector<48x16xf32>
    %c128 = arith.constant 128 : index
    %c0_18 = arith.constant 0 : index
    %44 = vector.load %arg4[%c128, %c0_18] : memref<256x128xbf16, #tpu.memory_space<vmem>>, vector<5x16xbf16>
    %45 = vector.extract_strided_slice %43 {offsets = [0, 0], sizes = [16, 16], strides = [1, 1]} : vector<48x16xf32> to vector<16x16xf32>
    %46 = arith.truncf %45 : vector<16x16xf32> to vector<16x16xbf16>
    %cst_19 = arith.constant dense<0.000000e+00> : vector<5x16xf32>
    %47 = tpu.matmul %44, %46, %cst_19 {dimension_numbers = #tpu.dot_dimension_numbers<[1], [0], [0], [1], [0, 0, 1, 1], [], []>} : vector<5x16xbf16>, vector<16x16xbf16>, vector<5x16xf32> -> vector<5x16xf32>
    %c64 = arith.constant 64 : index
    %c0_20 = arith.constant 0 : index
    %48 = vector.load %arg6[%c64, %c0_20] : memref<336x1xf32, #tpu.memory_space<vmem>>, vector<5x1xf32>
    %49 = vector.broadcast %48 : vector<5x1xf32> to vector<5x16xf32>
    %50 = arith.addf %47, %49 : vector<5x16xf32>
    %51 = arith.negf %50 : vector<5x16xf32>
    %52 = math.exp %51 : vector<5x16xf32>
    %cst_21 = arith.constant 1.000000e+00 : f32
    %53 = vector.broadcast %cst_21 : f32 to vector<5x16xf32>
    %54 = arith.addf %53, %52 : vector<5x16xf32>
    %55 = arith.divf %53, %54 : vector<5x16xf32>
    %c160 = arith.constant 160 : index
    %c0_22 = arith.constant 0 : index
    %56 = vector.load %arg4[%c160, %c0_22] : memref<256x128xbf16, #tpu.memory_space<vmem>>, vector<32x32xbf16>
    %57 = vector.extract_strided_slice %43 {offsets = [16, 0], sizes = [32, 16], strides = [1, 1]} : vector<48x16xf32> to vector<32x16xf32>
    %58 = arith.truncf %57 : vector<32x16xf32> to vector<32x16xbf16>
    %cst_23 = arith.constant dense<0.000000e+00> : vector<32x16xf32>
    %59 = tpu.matmul %56, %58, %cst_23 {dimension_numbers = #tpu.dot_dimension_numbers<[1], [0], [0], [1], [0, 0, 1, 1], [], []>} : vector<32x32xbf16>, vector<32x16xbf16>, vector<32x16xf32> -> vector<32x16xf32>
    %c72 = arith.constant 72 : index
    %c0_24 = arith.constant 0 : index
    %60 = vector.load %arg6[%c72, %c0_24] : memref<336x1xf32, #tpu.memory_space<vmem>>, vector<32x1xf32>
    %61 = vector.broadcast %60 : vector<32x1xf32> to vector<32x16xf32>
    %62 = arith.addf %59, %61 : vector<32x16xf32>
    %63 = arith.negf %62 : vector<32x16xf32>
    %64 = math.exp %63 : vector<32x16xf32>
    %cst_25 = arith.constant 1.000000e+00 : f32
    %65 = vector.broadcast %cst_25 : f32 to vector<32x16xf32>
    %66 = arith.addf %65, %64 : vector<32x16xf32>
    %67 = arith.divf %65, %66 : vector<32x16xf32>
    %68 = vector.extract_strided_slice %4 {offsets = [0, 16], sizes = [32, 16], strides = [1, 1]} : vector<32x32xf32> to vector<32x16xf32>
    %c16_26 = arith.constant 16 : index
    %c0_27 = arith.constant 0 : index
    %69 = vector.load %arg4[%c16_26, %c0_27] : memref<256x128xbf16, #tpu.memory_space<vmem>>, vector<16x96xbf16>
    %cst_28 = arith.constant 0.000000e+00 : bf16
    %70 = vector.broadcast %cst_28 : bf16 to vector<32x1xbf16>
    %71 = arith.truncf %68 : vector<32x16xf32> to vector<32x16xbf16>
    %72 = tpu.concatenate %70, %71, %70 in 1 : vector<32x1xbf16>, vector<32x16xbf16>, vector<32x1xbf16> -> vector<32x18xbf16>
    %73 = vector.extract_strided_slice %72 {offsets = [0, 0], sizes = [32, 16], strides = [1, 1]} : vector<32x18xbf16> to vector<32x16xbf16>
    %74 = vector.extract_strided_slice %72 {offsets = [0, 1], sizes = [32, 16], strides = [1, 1]} : vector<32x18xbf16> to vector<32x16xbf16>
    %75 = vector.extract_strided_slice %72 {offsets = [0, 2], sizes = [32, 16], strides = [1, 1]} : vector<32x18xbf16> to vector<32x16xbf16>
    %76 = tpu.concatenate %73, %74, %75 in 0 : vector<32x16xbf16>, vector<32x16xbf16>, vector<32x16xbf16> -> vector<96x16xbf16>
    %cst_29 = arith.constant dense<0.000000e+00> : vector<16x16xf32>
    %77 = tpu.matmul %69, %76, %cst_29 {dimension_numbers = #tpu.dot_dimension_numbers<[1], [0], [0], [1], [0, 0, 1, 1], [], []>} : vector<16x96xbf16>, vector<96x16xbf16>, vector<16x16xf32> -> vector<16x16xf32>
    %c104 = arith.constant 104 : index
    %c0_30 = arith.constant 0 : index
    %78 = vector.load %arg6[%c104, %c0_30] : memref<336x1xf32, #tpu.memory_space<vmem>>, vector<16x1xf32>
    %79 = vector.broadcast %78 : vector<16x1xf32> to vector<16x16xf32>
    %80 = arith.addf %77, %79 : vector<16x16xf32>
    %cst_31 = arith.constant 0.000000e+00 : f32
    %81 = vector.broadcast %cst_31 : f32 to vector<16x16xf32>
    %82 = arith.cmpf oge, %80, %81 : vector<16x16xf32>
    %cst_32 = arith.constant 0.00999999977 : f32
    %83 = vector.broadcast %cst_32 : f32 to vector<16x16xf32>
    %84 = arith.mulf %83, %80 : vector<16x16xf32>
    %85 = arith.select %82, %80, %84 : vector<16x16xi1>, vector<16x16xf32>
    %c80 = arith.constant 80 : index
    %c0_33 = arith.constant 0 : index
    %86 = vector.load %arg4[%c80, %c0_33] : memref<256x128xbf16, #tpu.memory_space<vmem>>, vector<48x112xbf16>
    %cst_34 = arith.constant 0.000000e+00 : bf16
    %87 = vector.broadcast %cst_34 : bf16 to vector<16x3xbf16>
    %88 = arith.truncf %85 : vector<16x16xf32> to vector<16x16xbf16>
    %89 = tpu.concatenate %87, %88, %87 in 1 : vector<16x3xbf16>, vector<16x16xbf16>, vector<16x3xbf16> -> vector<16x22xbf16>
    %90 = vector.extract_strided_slice %89 {offsets = [0, 0], sizes = [16, 16], strides = [1, 1]} : vector<16x22xbf16> to vector<16x16xbf16>
    %91 = vector.extract_strided_slice %89 {offsets = [0, 1], sizes = [16, 16], strides = [1, 1]} : vector<16x22xbf16> to vector<16x16xbf16>
    %92 = vector.extract_strided_slice %89 {offsets = [0, 2], sizes = [16, 16], strides = [1, 1]} : vector<16x22xbf16> to vector<16x16xbf16>
    %93 = vector.extract_strided_slice %89 {offsets = [0, 3], sizes = [16, 16], strides = [1, 1]} : vector<16x22xbf16> to vector<16x16xbf16>
    %94 = vector.extract_strided_slice %89 {offsets = [0, 4], sizes = [16, 16], strides = [1, 1]} : vector<16x22xbf16> to vector<16x16xbf16>
    %95 = vector.extract_strided_slice %89 {offsets = [0, 5], sizes = [16, 16], strides = [1, 1]} : vector<16x22xbf16> to vector<16x16xbf16>
    %96 = vector.extract_strided_slice %89 {offsets = [0, 6], sizes = [16, 16], strides = [1, 1]} : vector<16x22xbf16> to vector<16x16xbf16>
    %97 = tpu.concatenate %90, %91, %92, %93, %94, %95, %96 in 0 : vector<16x16xbf16>, vector<16x16xbf16>, vector<16x16xbf16>, vector<16x16xbf16>, vector<16x16xbf16>, vector<16x16xbf16>, vector<16x16xbf16> -> vector<112x16xbf16>
    %cst_35 = arith.constant dense<0.000000e+00> : vector<48x16xf32>
    %98 = tpu.matmul %86, %97, %cst_35 {dimension_numbers = #tpu.dot_dimension_numbers<[1], [0], [0], [1], [0, 0, 1, 1], [], []>} : vector<48x112xbf16>, vector<112x16xbf16>, vector<48x16xf32> -> vector<48x16xf32>
    %c120 = arith.constant 120 : index
    %c0_36 = arith.constant 0 : index
    %99 = vector.load %arg6[%c120, %c0_36] : memref<336x1xf32, #tpu.memory_space<vmem>>, vector<48x1xf32>
    %100 = vector.broadcast %99 : vector<48x1xf32> to vector<48x16xf32>
    %101 = arith.addf %98, %100 : vector<48x16xf32>
    %cst_37 = arith.constant 0.000000e+00 : f32
    %102 = vector.broadcast %cst_37 : f32 to vector<48x16xf32>
    %103 = arith.cmpf oge, %101, %102 : vector<48x16xf32>
    %cst_38 = arith.constant 0.00999999977 : f32
    %104 = vector.broadcast %cst_38 : f32 to vector<48x16xf32>
    %105 = arith.mulf %104, %101 : vector<48x16xf32>
    %106 = arith.select %103, %101, %105 : vector<48x16xi1>, vector<48x16xf32>
    %c144 = arith.constant 144 : index
    %c0_39 = arith.constant 0 : index
    %107 = vector.load %arg4[%c144, %c0_39] : memref<256x128xbf16, #tpu.memory_space<vmem>>, vector<5x16xbf16>
    %108 = vector.extract_strided_slice %106 {offsets = [0, 0], sizes = [16, 16], strides = [1, 1]} : vector<48x16xf32> to vector<16x16xf32>
    %109 = arith.truncf %108 : vector<16x16xf32> to vector<16x16xbf16>
    %cst_40 = arith.constant dense<0.000000e+00> : vector<5x16xf32>
    %110 = tpu.matmul %107, %109, %cst_40 {dimension_numbers = #tpu.dot_dimension_numbers<[1], [0], [0], [1], [0, 0, 1, 1], [], []>} : vector<5x16xbf16>, vector<16x16xbf16>, vector<5x16xf32> -> vector<5x16xf32>
    %c168 = arith.constant 168 : index
    %c0_41 = arith.constant 0 : index
    %111 = vector.load %arg6[%c168, %c0_41] : memref<336x1xf32, #tpu.memory_space<vmem>>, vector<5x1xf32>
    %112 = vector.broadcast %111 : vector<5x1xf32> to vector<5x16xf32>
    %113 = arith.addf %110, %112 : vector<5x16xf32>
    %114 = arith.negf %113 : vector<5x16xf32>
    %115 = math.exp %114 : vector<5x16xf32>
    %cst_42 = arith.constant 1.000000e+00 : f32
    %116 = vector.broadcast %cst_42 : f32 to vector<5x16xf32>
    %117 = arith.addf %116, %115 : vector<5x16xf32>
    %118 = arith.divf %116, %117 : vector<5x16xf32>
    %c192 = arith.constant 192 : index
    %c0_43 = arith.constant 0 : index
    %119 = vector.load %arg4[%c192, %c0_43] : memref<256x128xbf16, #tpu.memory_space<vmem>>, vector<32x32xbf16>
    %120 = vector.extract_strided_slice %106 {offsets = [16, 0], sizes = [32, 16], strides = [1, 1]} : vector<48x16xf32> to vector<32x16xf32>
    %121 = arith.truncf %120 : vector<32x16xf32> to vector<32x16xbf16>
    %cst_44 = arith.constant dense<0.000000e+00> : vector<32x16xf32>
    %122 = tpu.matmul %119, %121, %cst_44 {dimension_numbers = #tpu.dot_dimension_numbers<[1], [0], [0], [1], [0, 0, 1, 1], [], []>} : vector<32x32xbf16>, vector<32x16xbf16>, vector<32x16xf32> -> vector<32x16xf32>
    %c176 = arith.constant 176 : index
    %c0_45 = arith.constant 0 : index
    %123 = vector.load %arg6[%c176, %c0_45] : memref<336x1xf32, #tpu.memory_space<vmem>>, vector<32x1xf32>
    %124 = vector.broadcast %123 : vector<32x1xf32> to vector<32x16xf32>
    %125 = arith.addf %122, %124 : vector<32x16xf32>
    %126 = arith.negf %125 : vector<32x16xf32>
    %127 = math.exp %126 : vector<32x16xf32>
    %cst_46 = arith.constant 1.000000e+00 : f32
    %128 = vector.broadcast %cst_46 : f32 to vector<32x16xf32>
    %129 = arith.addf %128, %127 : vector<32x16xf32>
    %130 = arith.divf %128, %129 : vector<32x16xf32>
    %131 = tpu.concatenate %55, %118 in 1 : vector<5x16xf32>, vector<5x16xf32> -> vector<5x32xf32>
    %c0_47 = arith.constant 0 : index
    %c0_48 = arith.constant 0 : index
    %c0_49 = arith.constant 0 : index
    %132 = vector.load %arg8[%c0_47, %c0_48, %c0_49] : memref<1x5x32xf32, #tpu.memory_space<vmem>>, vector<1x5x32xf32>
    %133 = vector.shape_cast %132 : vector<1x5x32xf32> to vector<5x32xf32>
    %134 = vector.shape_cast %131 : vector<5x32xf32> to vector<1x5x32xf32>
    tpu.vector_store %arg8[%c0_47, %c0_48, %c0_49], %134 {strides = array<i32>} : memref<1x5x32xf32, #tpu.memory_space<vmem>>, vector<1x5x32xf32>,
    %c304 = arith.constant 304 : index
    %c0_50 = arith.constant 0 : index
    %135 = vector.load %arg6[%c304, %c0_50] : memref<336x1xf32, #tpu.memory_space<vmem>>, vector<32x1xf32>
    %136 = vector.broadcast %135 : vector<32x1xf32> to vector<32x16xf32>
    %137 = arith.mulf %136, %130 : vector<32x16xf32>
    %c272 = arith.constant 272 : index
    %c0_51 = arith.constant 0 : index
    %138 = vector.load %arg6[%c272, %c0_51] : memref<336x1xf32, #tpu.memory_space<vmem>>, vector<32x1xf32>
    %139 = vector.broadcast %138 : vector<32x1xf32> to vector<32x16xf32>
    %140 = arith.mulf %139, %67 : vector<32x16xf32>
    %141 = tpu.concatenate %137, %140 in 1 : vector<32x16xf32>, vector<32x16xf32> -> vector<32x32xf32>
    %142 = arith.truncf %141 : vector<32x32xf32> to vector<32x32xbf16>
    %c0_52 = arith.constant 0 : index
    %c0_53 = arith.constant 0 : index
    %143 = vector.load %arg3[%c0_52, %c0_53] : memref<32x256xbf16, #tpu.memory_space<vmem>>, vector<32x256xbf16>
    %cst_54 = arith.constant dense<0.000000e+00> : vector<32x256xf32>
    %144 = tpu.matmul %142, %143, %cst_54 {dimension_numbers = #tpu.dot_dimension_numbers<[1], [0], [0], [1], [0, 0, 1, 1], [], []>} : vector<32x32xbf16>, vector<32x256xbf16>, vector<32x256xf32> -> vector<32x256xf32>
    %cst_55 = arith.constant 1.000000e+00 : f32
    %145 = vector.broadcast %cst_55 : f32 to vector<32x256xf32>
    %146 = arith.addf %144, %145 : vector<32x256xf32>
    %147 = arith.mulf %1, %146 : vector<32x256xf32>
    %148 = tpu.concatenate %147, %144 in 0 : vector<32x256xf32>, vector<32x256xf32> -> vector<64x256xf32>
    %149 = arith.truncf %148 : vector<64x256xf32> to vector<64x256xbf16>
    %cst_56 = arith.constant 0.000000e+00 : bf16
    %150 = vector.broadcast %cst_56 : bf16 to vector<64x17xbf16>
    %151 = tpu.concatenate %150, %149, %150 in 1 : vector<64x17xbf16>, vector<64x256xbf16>, vector<64x17xbf16> -> vector<64x290xbf16>
    %152 = tpu.iota {dimensions = array<i32: 1>} : vector<64x256xi32>
    %c16_i32 = arith.constant 16 : i32
    %153 = vector.broadcast %c16_i32 : i32 to vector<64x256xi32>
    %154 = arith.remsi %152, %153 : vector<64x256xi32>
    %cst_57 = arith.constant 0.000000e+00 : bf16
    %155 = vector.broadcast %cst_57 : bf16 to vector<64x256xbf16>
    %c0_i32 = arith.constant 0 : i32
    %156 = vector.broadcast %c0_i32 : i32 to vector<64x256xi32>
    %157 = arith.cmpi sgt, %154, %156 : vector<64x256xi32>
    %c15_i32 = arith.constant 15 : i32
    %158 = vector.broadcast %c15_i32 : i32 to vector<64x256xi32>
    %159 = arith.cmpi slt, %154, %158 : vector<64x256xi32>
    %160 = vector.extract_strided_slice %151 {offsets = [0, 0], sizes = [64, 256], strides = [1, 1]} : vector<64x290xbf16> to vector<64x256xbf16>
    %161 = arith.select %157, %160, %155 : vector<64x256xi1>, vector<64x256xbf16>
    %c0_58 = arith.constant 0 : index
    %c0_59 = arith.constant 0 : index
    %162 = vector.load %arg9[%c0_58, %c0_59] : memref<576x256xbf16, #tpu.memory_space<vmem>>, vector<64x256xbf16>
    tpu.vector_store %arg9[%c0_58, %c0_59], %161 {strides = array<i32>} : memref<576x256xbf16, #tpu.memory_space<vmem>>, vector<64x256xbf16>,
    %163 = vector.extract_strided_slice %151 {offsets = [0, 1], sizes = [64, 256], strides = [1, 1]} : vector<64x290xbf16> to vector<64x256xbf16>
    %c64_60 = arith.constant 64 : index
    %c0_61 = arith.constant 0 : index
    %164 = vector.load %arg9[%c64_60, %c0_61] : memref<576x256xbf16, #tpu.memory_space<vmem>>, vector<64x256xbf16>
    tpu.vector_store %arg9[%c64_60, %c0_61], %163 {strides = array<i32>} : memref<576x256xbf16, #tpu.memory_space<vmem>>, vector<64x256xbf16>,
    %165 = vector.extract_strided_slice %151 {offsets = [0, 2], sizes = [64, 256], strides = [1, 1]} : vector<64x290xbf16> to vector<64x256xbf16>
    %166 = arith.select %159, %165, %155 : vector<64x256xi1>, vector<64x256xbf16>
    %c128_62 = arith.constant 128 : index
    %c0_63 = arith.constant 0 : index
    %167 = vector.load %arg9[%c128_62, %c0_63] : memref<576x256xbf16, #tpu.memory_space<vmem>>, vector<64x256xbf16>
    tpu.vector_store %arg9[%c128_62, %c0_63], %166 {strides = array<i32>} : memref<576x256xbf16, #tpu.memory_space<vmem>>, vector<64x256xbf16>,
    %168 = vector.extract_strided_slice %151 {offsets = [0, 16], sizes = [64, 256], strides = [1, 1]} : vector<64x290xbf16> to vector<64x256xbf16>
    %169 = arith.select %157, %168, %155 : vector<64x256xi1>, vector<64x256xbf16>
    %c192_64 = arith.constant 192 : index
    %c0_65 = arith.constant 0 : index
    %170 = vector.load %arg9[%c192_64, %c0_65] : memref<576x256xbf16, #tpu.memory_space<vmem>>, vector<64x256xbf16>
    tpu.vector_store %arg9[%c192_64, %c0_65], %169 {strides = array<i32>} : memref<576x256xbf16, #tpu.memory_space<vmem>>, vector<64x256xbf16>,
    %171 = vector.extract_strided_slice %151 {offsets = [0, 17], sizes = [64, 256], strides = [1, 1]} : vector<64x290xbf16> to vector<64x256xbf16>
    %c256 = arith.constant 256 : index
    %c0_66 = arith.constant 0 : index
    %172 = vector.load %arg9[%c256, %c0_66] : memref<576x256xbf16, #tpu.memory_space<vmem>>, vector<64x256xbf16>
    tpu.vector_store %arg9[%c256, %c0_66], %171 {strides = array<i32>} : memref<576x256xbf16, #tpu.memory_space<vmem>>, vector<64x256xbf16>,
    %173 = vector.extract_strided_slice %151 {offsets = [0, 18], sizes = [64, 256], strides = [1, 1]} : vector<64x290xbf16> to vector<64x256xbf16>
    %174 = arith.select %159, %173, %155 : vector<64x256xi1>, vector<64x256xbf16>
    %c320 = arith.constant 320 : index
    %c0_67 = arith.constant 0 : index
    %175 = vector.load %arg9[%c320, %c0_67] : memref<576x256xbf16, #tpu.memory_space<vmem>>, vector<64x256xbf16>
    tpu.vector_store %arg9[%c320, %c0_67], %174 {strides = array<i32>} : memref<576x256xbf16, #tpu.memory_space<vmem>>, vector<64x256xbf16>,
    %176 = vector.extract_strided_slice %151 {offsets = [0, 32], sizes = [64, 256], strides = [1, 1]} : vector<64x290xbf16> to vector<64x256xbf16>
    %177 = arith.select %157, %176, %155 : vector<64x256xi1>, vector<64x256xbf16>
    %c384 = arith.constant 384 : index
    %c0_68 = arith.constant 0 : index
    %178 = vector.load %arg9[%c384, %c0_68] : memref<576x256xbf16, #tpu.memory_space<vmem>>, vector<64x256xbf16>
    tpu.vector_store %arg9[%c384, %c0_68], %177 {strides = array<i32>} : memref<576x256xbf16, #tpu.memory_space<vmem>>, vector<64x256xbf16>,
    %179 = vector.extract_strided_slice %151 {offsets = [0, 33], sizes = [64, 256], strides = [1, 1]} : vector<64x290xbf16> to vector<64x256xbf16>
    %c448 = arith.constant 448 : index
    %c0_69 = arith.constant 0 : index
    %180 = vector.load %arg9[%c448, %c0_69] : memref<576x256xbf16, #tpu.memory_space<vmem>>, vector<64x256xbf16>
    tpu.vector_store %arg9[%c448, %c0_69], %179 {strides = array<i32>} : memref<576x256xbf16, #tpu.memory_space<vmem>>, vector<64x256xbf16>,
    %181 = vector.extract_strided_slice %151 {offsets = [0, 34], sizes = [64, 256], strides = [1, 1]} : vector<64x290xbf16> to vector<64x256xbf16>
    %182 = arith.select %159, %181, %155 : vector<64x256xi1>, vector<64x256xbf16>
    %c512 = arith.constant 512 : index
    %c0_70 = arith.constant 0 : index
    %183 = vector.load %arg9[%c512, %c0_70] : memref<576x256xbf16, #tpu.memory_space<vmem>>, vector<64x256xbf16>
    tpu.vector_store %arg9[%c512, %c0_70], %182 {strides = array<i32>} : memref<576x256xbf16, #tpu.memory_space<vmem>>, vector<64x256xbf16>,
    %c0_71 = arith.constant 0 : index
    %c0_72 = arith.constant 0 : index
    %184 = vector.load %arg5[%c0_71, %c0_72] : memref<32x576xbf16, #tpu.memory_space<vmem>>, vector<32x576xbf16>
    %c0_73 = arith.constant 0 : index
    %c0_74 = arith.constant 0 : index
    %185 = vector.load %arg9[%c0_73, %c0_74] : memref<576x256xbf16, #tpu.memory_space<vmem>>, vector<576x256xbf16>
    %cst_75 = arith.constant dense<0.000000e+00> : vector<32x256xf32>
    %186 = tpu.matmul %184, %185, %cst_75 {dimension_numbers = #tpu.dot_dimension_numbers<[1], [0], [0], [1], [0, 0, 1, 1], [], []>} : vector<32x576xbf16>, vector<576x256xbf16>, vector<32x256xf32> -> vector<32x256xf32>
    %c208 = arith.constant 208 : index
    %c0_76 = arith.constant 0 : index
    %187 = vector.load %arg6[%c208, %c0_76] : memref<336x1xf32, #tpu.memory_space<vmem>>, vector<32x1xf32>
    %188 = vector.broadcast %187 : vector<32x1xf32> to vector<32x256xf32>
    %189 = arith.addf %186, %188 : vector<32x256xf32>
    %cst_77 = arith.constant 0.000000e+00 : f32
    %190 = vector.broadcast %cst_77 : f32 to vector<32x256xf32>
    %191 = arith.cmpf oge, %189, %190 : vector<32x256xf32>
    %cst_78 = arith.constant 0.00999999977 : f32
    %192 = vector.broadcast %cst_78 : f32 to vector<32x256xf32>
    %193 = arith.mulf %192, %189 : vector<32x256xf32>
    %194 = arith.select %191, %189, %193 : vector<32x256xi1>, vector<32x256xf32>
    %c224 = arith.constant 224 : index
    %c0_79 = arith.constant 0 : index
    %195 = vector.load %arg4[%c224, %c0_79] : memref<256x128xbf16, #tpu.memory_space<vmem>>, vector<32x32xbf16>
    %196 = arith.truncf %194 : vector<32x256xf32> to vector<32x256xbf16>
    %cst_80 = arith.constant dense<0.000000e+00> : vector<32x256xf32>
    %197 = tpu.matmul %195, %196, %cst_80 {dimension_numbers = #tpu.dot_dimension_numbers<[1], [0], [0], [1], [0, 0, 1, 1], [], []>} : vector<32x32xbf16>, vector<32x256xbf16>, vector<32x256xf32> -> vector<32x256xf32>
    %c240 = arith.constant 240 : index
    %c0_81 = arith.constant 0 : index
    %198 = vector.load %arg6[%c240, %c0_81] : memref<336x1xf32, #tpu.memory_space<vmem>>, vector<32x1xf32>
    %199 = vector.broadcast %198 : vector<32x1xf32> to vector<32x256xf32>
    %200 = arith.addf %197, %199 : vector<32x256xf32>
    %cst_82 = arith.constant 0.000000e+00 : f32
    %201 = vector.broadcast %cst_82 : f32 to vector<32x256xf32>
    %202 = arith.cmpf oge, %200, %201 : vector<32x256xf32>
    %cst_83 = arith.constant 0.00999999977 : f32
    %203 = vector.broadcast %cst_83 : f32 to vector<32x256xf32>
    %204 = arith.mulf %203, %200 : vector<32x256xf32>
    %205 = arith.select %202, %200, %204 : vector<32x256xi1>, vector<32x256xf32>
    %c0_84 = arith.constant 0 : index
    %c0_85 = arith.constant 0 : index
    %c0_86 = arith.constant 0 : index
    %206 = vector.load %arg7[%c0_84, %c0_85, %c0_86] : memref<1x32x256xf32, #tpu.memory_space<vmem>>, vector<1x32x256xf32>
    %207 = vector.shape_cast %206 : vector<1x32x256xf32> to vector<32x256xf32>
    %208 = vector.shape_cast %205 : vector<32x256xf32> to vector<1x32x256xf32>
    tpu.vector_store %arg7[%c0_84, %c0_85, %c0_86], %208 {strides = array<i32>} : memref<1x32x256xf32, #tpu.memory_space<vmem>>, vector<1x32x256xf32>,
    return
  }
  func.func @transform_0(%arg0: i32) -> (i32, i32, i32) {
    %c0_i32 = arith.constant 0 : i32
    %c0_i32_0 = arith.constant 0 : i32
    %c0_i32_1 = arith.constant 0 : i32
    return %arg0, %c0_i32, %c0_i32_0 : i32, i32, i32
  }
  func.func @transform_1(%arg0: i32) -> (i32, i32) {
    %c0_i32 = arith.constant 0 : i32
    %c0_i32_0 = arith.constant 0 : i32
    %c0_i32_1 = arith.constant 0 : i32
    return %c0_i32, %c0_i32_0 : i32, i32
  }
  func.func @transform_2(%arg0: i32) -> (i32, i32) {
    %c0_i32 = arith.constant 0 : i32
    %c0_i32_0 = arith.constant 0 : i32
    %c0_i32_1 = arith.constant 0 : i32
    return %c0_i32, %c0_i32_0 : i32, i32
  }
  func.func @transform_3(%arg0: i32) -> (i32, i32) {
    %c0_i32 = arith.constant 0 : i32
    %c0_i32_0 = arith.constant 0 : i32
    %c0_i32_1 = arith.constant 0 : i32
    return %c0_i32, %c0_i32_0 : i32, i32
  }
  func.func @transform_4(%arg0: i32) -> (i32, i32) {
    %c0_i32 = arith.constant 0 : i32
    %c0_i32_0 = arith.constant 0 : i32
    %c0_i32_1 = arith.constant 0 : i32
    return %c0_i32, %c0_i32_0 : i32, i32
  }
  func.func @transform_5(%arg0: i32) -> (i32, i32) {
    %c0_i32 = arith.constant 0 : i32
    %c0_i32_0 = arith.constant 0 : i32
    %c0_i32_1 = arith.constant 0 : i32
    return %c0_i32, %c0_i32_0 : i32, i32
  }
  func.func @transform_6(%arg0: i32) -> (i32, i32, i32) {
    %c0_i32 = arith.constant 0 : i32
    %c0_i32_0 = arith.constant 0 : i32
    %c0_i32_1 = arith.constant 0 : i32
    return %arg0, %c0_i32, %c0_i32_0 : i32, i32, i32
  }
  func.func @transform_7(%arg0: i32) -> (i32, i32, i32) {
    %c0_i32 = arith.constant 0 : i32
    %c0_i32_0 = arith.constant 0 : i32
    %c0_i32_1 = arith.constant 0 : i32
    return %arg0, %c0_i32, %c0_i32_0 : i32, i32, i32
  }
}

</mosaic_0001>

<llo_original>
// kernel: forward.1
$region0: #{forward.1}
  #allocation0 [shape = 'u32[]', space=smem, size = 0x4, offset = 0x4, fixed_abs, tag = 'smem constant byte address 0x4 - core index']
  #allocation1 [shape = 'u32[144,128]{1,0:T(1,128)}', space=vmem, size = 0x12000, scoped, tag = 'internal scratch']
  #allocation2 [shape = 'bf16[576,256]{1,0:T(16,128)(2,1)}', space=vmem, size = 0x48000, scoped, tag = 'scratch operand']
  %s0 = inlined_call_operand.vmem [shape: f32[2,32,256], index: 0, kind: input, shape index: {}]
  %s1 = inlined_call_operand.vmem [shape: bf16[256,32], index: 1, kind: input, shape index: {}]
  %s2 = inlined_call_operand.vmem [shape: bf16[32,256], index: 2, kind: input, shape index: {}]
  %s3 = inlined_call_operand.vmem [shape: bf16[256,128], index: 3, kind: input, shape index: {}]
  %s4 = inlined_call_operand.vmem [shape: bf16[32,576], index: 4, kind: input, shape index: {}]
  %s5 = inlined_call_operand.vmem [shape: f32[336,1], index: 5, kind: input, shape index: {}]
  %s6 = inlined_call_operand.vmem [shape: f32[2,32,256], index: 6, kind: output, shape index: {0}]
  %s7 = inlined_call_operand.vmem [shape: f32[2,5,32], index: 7, kind: output, shape index: {1}]
  %8 = xla_tuple %s6, %s7
  %s9 = sld [smem:[#allocation0]]
  $region65: #{forward.1} parent=0
    _
  %s11 = ssub.s32 1, %s9
  %s12 = scalar_select 0, %s11, %s9
  loop: start=0, step=1, limit=4
  $region2: #{forward.1} parent=0 // loop_pre_header
    _
  $region3: #{forward.1} parent=0 // loop_header
    %s14 = sphi 0, %s18
    %p15 = scmp.ge.s32.totalorder %s14, 4
    %s24 = sphi 0, %s26
    %s27 = sphi 0, %s24
    %s28 = sphi 0, %s27
    %s44 = sphi 0, %s28
    %s48 = sphi 0, %s48
    %s50 = sphi 0, %s48
    %s51 = sphi 0, %s50
    %s65 = sphi 0, %s51
    %s69 = sphi 0, %s69
    %s71 = sphi 0, %s69
    %s72 = sphi 0, %s71
    %s86 = sphi 0, %s72
    %s90 = sphi 0, %s90
    %s92 = sphi 0, %s90
    %s93 = sphi 0, %s92
    %s107 = sphi 0, %s93
    %s111 = sphi 0, %s111
    %s113 = sphi 0, %s111
    %s114 = sphi 0, %s113
    %s128 = sphi 0, %s114
    %s132 = sphi 0, %s132
    %s134 = sphi 0, %s132
    %s135 = sphi 0, %s134
    %s149 = sphi 0, %s135
    %s155 = sphi 0, %s157
    %s158 = sphi 0, %s155
    %s159 = sphi 0, %s158
    %s175 = sphi 0, %s159
    %s181 = sphi 0, %s183
    %s184 = sphi 0, %s181
    %s185 = sphi 0, %s184
    %s201 = sphi 0, %s185
  $region4: #{forward.1} parent=0 // loop_header_branch
    %17 = sbr.rel (%p15) target = $region8
  $region5: #{forward.1} parent=0 // loop_body
    %s19 = ssub.s32 %s14, 1
    %s20 = ssub.s32 %s14, 2
    %s21 = sadd.s32 %s14, 1
    %s22 = ssub.s32 %s14, %s21
    %p23 = scmp.eq.s32.totalorder %s22, 0
    %s25 = sadd.s32 %s24, 1
    %s26 = scalar_select %p23, %s24, %s25
    %p29 = pneg %p23
    %p30 = scmp.eq.s32.totalorder %s14, 1
    %p31 = por %p29, %p30
    %p32 = scmp.ne.s32.totalorder %s24, %s27
    %p33 = scmp.eq.s32.totalorder %s14, 0
    %p34 = por %p32, %p33
    %p35 = scmp.ne.s32.totalorder %s24, %s27
    %p36 = scmp.eq.s32.totalorder %s19, 1
    %p37 = por %p35, %p36
    %p38 = scmp.ne.s32.totalorder %s27, %s28
    %p39 = scmp.eq.s32.totalorder %s19, 0
    %p40 = por %p38, %p39
    %p41 = scmp.ne.s32.totalorder %s27, %s28
    %p42 = scmp.eq.s32.totalorder %s20, 1
    %p43 = por %p41, %p42
    %p45 = scmp.ne.s32.totalorder %s28, %s44
    %p46 = scmp.eq.s32.totalorder %s20, 0
    %p47 = por %p45, %p46
    %s49 = sadd.s32 %s48, 1
    %p52 = scmp.eq.s32.totalorder %s14, 1
    %p53 = scmp.ne.s32.totalorder %s48, %s50
    %p54 = scmp.eq.s32.totalorder %s14, 0
    %p55 = por %p53, %p54
    %p56 = scmp.ne.s32.totalorder %s48, %s50
    %p57 = scmp.eq.s32.totalorder %s19, 1
    %p58 = por %p56, %p57
    %p59 = scmp.ne.s32.totalorder %s50, %s51
    %p60 = scmp.eq.s32.totalorder %s19, 0
    %p61 = por %p59, %p60
    %p62 = scmp.ne.s32.totalorder %s50, %s51
    %p63 = scmp.eq.s32.totalorder %s20, 1
    %p64 = por %p62, %p63
    %p66 = scmp.ne.s32.totalorder %s51, %s65
    %p67 = scmp.eq.s32.totalorder %s20, 0
    %p68 = por %p66, %p67
    %s70 = sadd.s32 %s69, 1
    %p73 = scmp.eq.s32.totalorder %s14, 1
    %p74 = scmp.ne.s32.totalorder %s69, %s71
    %p75 = scmp.eq.s32.totalorder %s14, 0
    %p76 = por %p74, %p75
    %p77 = scmp.ne.s32.totalorder %s69, %s71
    %p78 = scmp.eq.s32.totalorder %s19, 1
    %p79 = por %p77, %p78
    %p80 = scmp.ne.s32.totalorder %s71, %s72
    %p81 = scmp.eq.s32.totalorder %s19, 0
    %p82 = por %p80, %p81
    %p83 = scmp.ne.s32.totalorder %s71, %s72
    %p84 = scmp.eq.s32.totalorder %s20, 1
    %p85 = por %p83, %p84
    %p87 = scmp.ne.s32.totalorder %s72, %s86
    %p88 = scmp.eq.s32.totalorder %s20, 0
    %p89 = por %p87, %p88
    %s91 = sadd.s32 %s90, 1
    %p94 = scmp.eq.s32.totalorder %s14, 1
    %p95 = scmp.ne.s32.totalorder %s90, %s92
    %p96 = scmp.eq.s32.totalorder %s14, 0
    %p97 = por %p95, %p96
    %p98 = scmp.ne.s32.totalorder %s90, %s92
    %p99 = scmp.eq.s32.totalorder %s19, 1
    %p100 = por %p98, %p99
    %p101 = scmp.ne.s32.totalorder %s92, %s93
    %p102 = scmp.eq.s32.totalorder %s19, 0
    %p103 = por %p101, %p102
    %p104 = scmp.ne.s32.totalorder %s92, %s93
    %p105 = scmp.eq.s32.totalorder %s20, 1
    %p106 = por %p104, %p105
    %p108 = scmp.ne.s32.totalorder %s93, %s107
    %p109 = scmp.eq.s32.totalorder %s20, 0
    %p110 = por %p108, %p109
    %s112 = sadd.s32 %s111, 1
    %p115 = scmp.eq.s32.totalorder %s14, 1
    %p116 = scmp.ne.s32.totalorder %s111, %s113
    %p117 = scmp.eq.s32.totalorder %s14, 0
    %p118 = por %p116, %p117
    %p119 = scmp.ne.s32.totalorder %s111, %s113
    %p120 = scmp.eq.s32.totalorder %s19, 1
    %p121 = por %p119, %p120
    %p122 = scmp.ne.s32.totalorder %s113, %s114
    %p123 = scmp.eq.s32.totalorder %s19, 0
    %p124 = por %p122, %p123
    %p125 = scmp.ne.s32.totalorder %s113, %s114
    %p126 = scmp.eq.s32.totalorder %s20, 1
    %p127 = por %p125, %p126
    %p129 = scmp.ne.s32.totalorder %s114, %s128
    %p130 = scmp.eq.s32.totalorder %s20, 0
    %p131 = por %p129, %p130
    %s133 = sadd.s32 %s132, 1
    %p136 = scmp.eq.s32.totalorder %s14, 1
    %p137 = scmp.ne.s32.totalorder %s132, %s134
    %p138 = scmp.eq.s32.totalorder %s14, 0
    %p139 = por %p137, %p138
    %p140 = scmp.ne.s32.totalorder %s132, %s134
    %p141 = scmp.eq.s32.totalorder %s19, 1
    %p142 = por %p140, %p141
    %p143 = scmp.ne.s32.totalorder %s134, %s135
    %p144 = scmp.eq.s32.totalorder %s19, 0
    %p145 = por %p143, %p144
    %p146 = scmp.ne.s32.totalorder %s134, %s135
    %p147 = scmp.eq.s32.totalorder %s20, 1
    %p148 = por %p146, %p147
    %p150 = scmp.ne.s32.totalorder %s135, %s149
    %p151 = scmp.eq.s32.totalorder %s20, 0
    %p152 = por %p150, %p151
    %s153 = ssub.s32 %s14, %s21
    %p154 = scmp.eq.s32.totalorder %s153, 0
    %s156 = sadd.s32 %s155, 1
    %s157 = scalar_select %p154, %s155, %s156
    %p160 = pneg %p154
    %p161 = scmp.eq.s32.totalorder %s14, 1
    %p162 = por %p160, %p161
    %p163 = scmp.ne.s32.totalorder %s155, %s158
    %p164 = scmp.eq.s32.totalorder %s14, 0
    %p165 = por %p163, %p164
    %p166 = scmp.ne.s32.totalorder %s155, %s158
    %p167 = scmp.eq.s32.totalorder %s19, 1
    %p168 = por %p166, %p167
    %p169 = scmp.ne.s32.totalorder %s158, %s159
    %p170 = scmp.eq.s32.totalorder %s19, 0
    %p171 = por %p169, %p170
    %p172 = scmp.ne.s32.totalorder %s158, %s159
    %p173 = scmp.eq.s32.totalorder %s20, 1
    %p174 = por %p172, %p173
    %p176 = scmp.ne.s32.totalorder %s159, %s175
    %p177 = scmp.eq.s32.totalorder %s20, 0
    %p178 = por %p176, %p177
    %s179 = ssub.s32 %s14, %s21
    %p180 = scmp.eq.s32.totalorder %s179, 0
    %s182 = sadd.s32 %s181, 1
    %s183 = scalar_select %p180, %s181, %s182
    %p186 = pneg %p180
    %p187 = scmp.eq.s32.totalorder %s14, 1
    %p188 = por %p186, %p187
    %p189 = scmp.ne.s32.totalorder %s181, %s184
    %p190 = scmp.eq.s32.totalorder %s14, 0
    %p191 = por %p189, %p190
    %p192 = scmp.ne.s32.totalorder %s181, %s184
    %p193 = scmp.eq.s32.totalorder %s19, 1
    %p194 = por %p192, %p193
    %p195 = scmp.ne.s32.totalorder %s184, %s185
    %p196 = scmp.eq.s32.totalorder %s19, 0
    %p197 = por %p195, %p196
    %p198 = scmp.ne.s32.totalorder %s184, %s185
    %p199 = scmp.eq.s32.totalorder %s20, 1
    %p200 = por %p198, %p199
    %p202 = scmp.ne.s32.totalorder %s185, %s201
    %p203 = scmp.eq.s32.totalorder %s20, 0
    %p204 = por %p202, %p203
    %p205 = scmp.le.s32.totalorder 1, %s14
    %p206 = scmp.lt.s32.totalorder %s14, 3
    %p207 = pnand %p205, %p206
    %p208 = pneg %p207
    // Predicated region
    $region9: #{forward.1} parent=5 // pred_check
      _
    $region10: #{forward.1} parent=5 // pred_check_branch
      %210 = sbr.rel (%p207) target = $region12
    $region11: #{forward.1} parent=5 // pred_region
      %s211 = ssub.s32 %s14, 1
      // Predicated region
      $region13: #{forward.1} parent=11 // pred_check
        %p212 = pneg %p61
      $region14: #{forward.1} parent=11 // pred_check_branch
        %214 = sbr.rel (%p212) target = $region16
      $region15: #{forward.1} parent=11 // pred_region
        _
      $region16: #{forward.1} parent=11 // pred_fallthru
        _
      // Predicated region
      $region17: #{forward.1} parent=11 // pred_check
        %p215 = pneg %p82
      $region18: #{forward.1} parent=11 // pred_check_branch
        %217 = sbr.rel (%p215) target = $region20
      $region19: #{forward.1} parent=11 // pred_region
        _
      $region20: #{forward.1} parent=11 // pred_fallthru
        _
      // Predicated region
      $region21: #{forward.1} parent=11 // pred_check
        %p218 = pneg %p103
      $region22: #{forward.1} parent=11 // pred_check_branch
        %220 = sbr.rel (%p218) target = $region24
      $region23: #{forward.1} parent=11 // pred_region
        _
      $region24: #{forward.1} parent=11 // pred_fallthru
        _
      // Predicated region
      $region25: #{forward.1} parent=11 // pred_check
        %p221 = pneg %p124
      $region26: #{forward.1} parent=11 // pred_check_branch
        %223 = sbr.rel (%p221) target = $region28
      $region27: #{forward.1} parent=11 // pred_region
        _
      $region28: #{forward.1} parent=11 // pred_fallthru
        _
      // Predicated region
      $region29: #{forward.1} parent=11 // pred_check
        %p224 = pneg %p145
      $region30: #{forward.1} parent=11 // pred_check_branch
        %226 = sbr.rel (%p224) target = $region32
      $region31: #{forward.1} parent=11 // pred_region
        _
      $region32: #{forward.1} parent=11 // pred_fallthru
        _
    $region12: #{forward.1} parent=5 // pred_fallthru
      _
    %p227 = scmp.lt.s32.totalorder %s14, 2
    // Predicated region
    $region33: #{forward.1} parent=5 // pred_check
      %p228 = pneg %p227
    $region34: #{forward.1} parent=5 // pred_check_branch
      %230 = sbr.rel (%p228) target = $region36
    $region35: #{forward.1} parent=5 // pred_region
      // Predicated region
      $region37: #{forward.1} parent=35 // pred_check
        %p231 = pneg %p34
      $region38: #{forward.1} parent=35 // pred_check_branch
        %233 = sbr.rel (%p231) target = $region40
      $region39: #{forward.1} parent=35 // pred_region
        %p234 = scmp.lt.s32.totalorder %s14, 1
        %s235 = scalar_select %p234, %s14, 1
        %s236 = smul.addr %s235, 8
        %s237 = smul.addr %s236, 8
        %s238 = scalar_lea.vmem %s0, %s237
      $region40: #{forward.1} parent=35 // pred_fallthru
        _
    $region36: #{forward.1} parent=5 // pred_fallthru
      _
    %p239 = scmp.le.s32.totalorder 1, %s14
    %p240 = scmp.lt.s32.totalorder %s14, 3
    %p241 = pnand %p239, %p240
    %p242 = pneg %p241
    // Predicated region
    $region41: #{forward.1} parent=5 // pred_check
      _
    $region42: #{forward.1} parent=5 // pred_check_branch
      %244 = sbr.rel (%p241) target = $region44
    $region43: #{forward.1} parent=5 // pred_region
      %s245 = ssub.s32 %s14, 1
      %p246 = scmp.lt.s32.totalorder %s19, 1
      %s247 = scalar_select %p246, %s19, 1
      %s248 = smul.addr %s247, 8
      %s249 = smul.addr %s248, 8
      %s250 = scalar_lea.vmem %s0, %s249
      %p251 = pneg %p40
      %p252 = pneg %p37
      %p253 = pneg %p61
      %p254 = pneg %p58
      %p255 = pneg %p82
      %p256 = pneg %p79
      %p257 = pneg %p103
      %p258 = pneg %p100
      %p259 = pneg %p124
      %p260 = pneg %p121
      %p261 = pneg %p145
      %p262 = pneg %p142
      %p263 = pneg %p171
      %p264 = pneg %p168
      %p265 = scmp.lt.s32.totalorder %s19, 1
      %s266 = scalar_select %p265, %s19, 1
      %s267 = smul.addr %s266, 8
      %s268 = smul.addr %s267, 8
      %s269 = scalar_lea.vmem %s6, %s268
      %p270 = pneg %p197
      %p271 = pneg %p194
      %p272 = scmp.lt.s32.totalorder %s19, 1
      %s273 = scalar_select %p272, %s19, 1
      %s274 = smul.addr %s273, 8
      %s275 = scalar_lea.vmem %s7, %s274
      %p276 = scmp.lt.s32.totalorder %s19, 1
      %s277 = scalar_select %p276, %s19, 1
      %s278 = smul.addr %s277, 8
      %s279 = smul.addr %s278, 8
      %s280 = scalar_lea.vmem %s0, %s279
      %p281 = scmp.lt.s32.totalorder %s19, 1
      %s282 = scalar_select %p281, %s19, 1
      %s283 = smul.addr %s282, 8
      %s284 = smul.addr %s283, 8
      %s285 = scalar_lea.vmem %s6, %s284
      %p286 = scmp.lt.s32.totalorder %s19, 1
      %s287 = scalar_select %p286, %s19, 1
      %s288 = smul.addr %s287, 8
      %s289 = scalar_lea.vmem %s7, %s288
      %v293 = vld [vmem:[%s280] sm:$0xff]
      %v294 = vld [vmem:[%s280 + $0x8] sm:$0xff]
      %v295 = vld [vmem:[%s280 + $0x10] sm:$0xff]
      %v296 = vld [vmem:[%s280 + $0x18] sm:$0xff]
      %v297 = vld [vmem:[%s280 + $0x20] sm:$0xff]
      %v298 = vld [vmem:[%s280 + $0x28] sm:$0xff]
      %v299 = vld [vmem:[%s280 + $0x30] sm:$0xff]
      %v300 = vld [vmem:[%s280 + $0x38] sm:$0xff]
      %v301 = vpack.c.bf16 %v295, %v293
      %v302 = vpack.c.bf16 %v296, %v294
      %v303 = vpack.c.bf16 %v299, %v297
      %v304 = vpack.c.bf16 %v300, %v298
      %v305 = vld [vmem:[%s1] sm:$0xf]
      %v306 = vld [vmem:[%s1 + $0x4] sm:$0xf]
      %v307 = vld [vmem:[%s1 + $0x8] sm:$0xf]
      %v308 = vld [vmem:[%s1 + $0xc] sm:$0xf]
      %v309 = vld [vmem:[%s1 + $0x10] sm:$0xf]
      %v310 = vld [vmem:[%s1 + $0x14] sm:$0xf]
      %v311 = vld [vmem:[%s1 + $0x18] sm:$0xf]
      %v312 = vld [vmem:[%s1 + $0x1c] sm:$0xf]
      %v313 = vld [vmem:[%s1 + $0x20] sm:$0xf]
      %v314 = vld [vmem:[%s1 + $0x24] sm:$0xf]
      %v315 = vld [vmem:[%s1 + $0x28] sm:$0xf]
      %v316 = vld [vmem:[%s1 + $0x2c] sm:$0xf]
      %v317 = vld [vmem:[%s1 + $0x30] sm:$0xf]
      %v318 = vld [vmem:[%s1 + $0x34] sm:$0xf]
      %v319 = vld [vmem:[%s1 + $0x38] sm:$0xf]
      %v320 = vld [vmem:[%s1 + $0x3c] sm:$0xf]
      %v321 = vld [vmem:[%s1 + $0x40] sm:$0xf]
      %v322 = vld [vmem:[%s1 + $0x44] sm:$0xf]
      %v323 = vld [vmem:[%s1 + $0x48] sm:$0xf]
      %v324 = vld [vmem:[%s1 + $0x4c] sm:$0xf]
      %v325 = vld [vmem:[%s1 + $0x50] sm:$0xf]
      %v326 = vld [vmem:[%s1 + $0x54] sm:$0xf]
      %v327 = vld [vmem:[%s1 + $0x58] sm:$0xf]
      %v328 = vld [vmem:[%s1 + $0x5c] sm:$0xf]
      %v329 = vld [vmem:[%s1 + $0x60] sm:$0xf]
      %v330 = vld [vmem:[%s1 + $0x64] sm:$0xf]
      %v331 = vld [vmem:[%s1 + $0x68] sm:$0xf]
      %v332 = vld [vmem:[%s1 + $0x6c] sm:$0xf]
      %v333 = vld [vmem:[%s1 + $0x70] sm:$0xf]
      %v334 = vld [vmem:[%s1 + $0x74] sm:$0xf]
      %v335 = vld [vmem:[%s1 + $0x78] sm:$0xf]
      %v336 = vld [vmem:[%s1 + $0x7c] sm:$0xf]
      %v369 = vunpack.c.l.b16 %v305
      %v370 = vunpack.c.l.b16 %v306
      %v371 = vunpack.c.l.b16 %v307
      %v372 = vunpack.c.l.b16 %v308
      %v373 = vunpack.c.l.b16 %v309
      %v374 = vunpack.c.l.b16 %v310
      %v375 = vunpack.c.l.b16 %v311
      %v376 = vunpack.c.l.b16 %v312
      %v377 = vunpack.c.l.b16 %v313
      %v378 = vunpack.c.l.b16 %v314
      %v379 = vunpack.c.l.b16 %v315
      %v380 = vunpack.c.l.b16 %v316
      %v381 = vunpack.c.l.b16 %v317
      %v382 = vunpack.c.l.b16 %v318
      %v383 = vunpack.c.l.b16 %v319
      %v384 = vunpack.c.l.b16 %v320
      %v385 = vunpack.c.l.b16 %v321
      %v386 = vunpack.c.l.b16 %v322
      %v387 = vunpack.c.l.b16 %v323
      %v388 = vunpack.c.l.b16 %v324
      %v389 = vunpack.c.l.b16 %v325
      %v390 = vunpack.c.l.b16 %v326
      %v391 = vunpack.c.l.b16 %v327
      %v392 = vunpack.c.l.b16 %v328
      %v393 = vunpack.c.l.b16 %v329
      %v394 = vunpack.c.l.b16 %v330
      %v395 = vunpack.c.l.b16 %v331
      %v396 = vunpack.c.l.b16 %v332
      %v397 = vunpack.c.l.b16 %v333
      %v398 = vunpack.c.l.b16 %v334
      %v399 = vunpack.c.l.b16 %v335
      %v400 = vunpack.c.l.b16 %v336
      %v401 = vpack.c.b16 %v370, %v369
      %v402 = vpack.c.b16 %v372, %v371
      %v403 = vpack.c.b16 %v374, %v373
      %v404 = vpack.c.b16 %v376, %v375
      %v405 = vpack.c.b16 %v378, %v377
      %v406 = vpack.c.b16 %v380, %v379
      %v407 = vpack.c.b16 %v382, %v381
      %v408 = vpack.c.b16 %v384, %v383
      %v409 = vpack.c.b16 %v386, %v385
      %v410 = vpack.c.b16 %v388, %v387
      %v411 = vpack.c.b16 %v390, %v389
      %v412 = vpack.c.b16 %v392, %v391
      %v413 = vpack.c.b16 %v394, %v393
      %v414 = vpack.c.b16 %v396, %v395
      %v415 = vpack.c.b16 %v398, %v397
      %v416 = vpack.c.b16 %v400, %v399
      %433 = vmatprep.subr.bf16.mxu0 0
      %434 = vmatpush1.bf16.msra.mxu0 %v401
      %435 = vmatprep.subr.bf16.mxu0 0
      %436 = vmatpush1.bf16.msra.mxu0 %v402
      %437 = vmatprep.subr.bf16.mxu0 0
      %438 = vmatpush1.bf16.msra.mxu0 %v403
      %439 = vmatprep.subr.bf16.mxu0 0
      %440 = vmatpush1.bf16.msra.mxu0 %v404
      %441 = vmatprep.subr.bf16.mxu0 0
      %442 = vmatpush1.bf16.msra.mxu0 %v405
      %443 = vmatprep.subr.bf16.mxu0 0
      %444 = vmatpush1.bf16.msra.mxu0 %v406
      %445 = vmatprep.subr.bf16.mxu0 0
      %446 = vmatpush1.bf16.msra.mxu0 %v407
      %447 = vmatprep.subr.bf16.mxu0 0
      %448 = vmatpush1.bf16.msra.mxu0 %v408
      %449 = vmatprep.subr.bf16.mxu0 0
      %450 = vmatpush1.bf16.msra.mxu0 %v409
      %451 = vmatprep.subr.bf16.mxu0 0
      %452 = vmatpush1.bf16.msra.mxu0 %v410
      %453 = vmatprep.subr.bf16.mxu0 0
      %454 = vmatpush1.bf16.msra.mxu0 %v411
      %455 = vmatprep.subr.bf16.mxu0 0
      %456 = vmatpush1.bf16.msra.mxu0 %v412
      %457 = vmatprep.subr.bf16.mxu0 0
      %458 = vmatpush1.bf16.msra.mxu0 %v413
      %459 = vmatprep.subr.bf16.mxu0 0
      %460 = vmatpush1.bf16.msra.mxu0 %v414
      %461 = vmatprep.subr.bf16.mxu0 0
      %462 = vmatpush1.bf16.msra.mxu0 %v415
      %463 = vmatprep.subr.bf16.mxu0 0
      %464 = vmatpush1.bf16.msra.mxu0 %v416
      %465 = vmatprep.mubr.bf16.mxu0 %v302
      %466 = vmatmul.mubr.bf16.gmra.mrb[0].mxu0 %v301
      %v467 = vpop.f32.mrb[0].mxu0
      %v468 = vadd.f32 0.0, %v467
      %v469 = vpop.f32.mrb[0].mxu0
      %v470 = vpop.f32.mrb[0].mxu0
      %v471 = vadd.f32 0.0, %v470
      %v472 = vpop.f32.mrb[0].mxu0
      %473 = vmatprep.mubr.bf16.mxu0 %v304
      %474 = vmatmul.mubr.bf16.gmra.mrb[0].mxu0 %v303
      %v475 = vpop.f32.mrb[0].mxu0
      %v476 = vadd.f32 0.0, %v475
      %v477 = vpop.f32.mrb[0].mxu0
      %v478 = vpop.f32.mrb[0].mxu0
      %v479 = vadd.f32 0.0, %v478
      %v480 = vpop.f32.mrb[0].mxu0
      %481 = vdwg.mxu0
      %v482 = vld [vmem:[%s3] sm:$0xf]
      %v483 = vld [vmem:[%s3 + $0x4] sm:$0xf]
      %v484 = vpack.c.bf16 %v471, %v468
      %v485 = vpack.c.bf16 %v479, %v476
      %488 = vrot.lane.b32.xlu0 %v484, 1
      %v489 = vpop.permute.xlu0 %488
      %490 = vrot.lane.b32.xlu0 %v485, 1
      %v491 = vpop.permute.xlu0 %490
      %vm492 = vcmask 7168
      %v495 = vsel %vm492, 0, %v489
      %v497 = vsel %vm492, 0, %v491
      %vm498 = vcmask 138240
      %v499 = vsel %vm498, %v495, 0
      %v501 = vsel %vm498, %v497, 0
      %505 = vrot.lane.b32.xlu0 %v499, 127
      %v506 = vpop.permute.xlu0 %505
      %507 = vrot.lane.b32.xlu0 %v501, 127
      %v508 = vpop.permute.xlu0 %507
      %511 = vrot.lane.b32.xlu0 %v499, 126
      %v512 = vpop.permute.xlu0 %511
      %513 = vrot.lane.b32.xlu0 %v501, 126
      %v514 = vpop.permute.xlu0 %513
      %v517 = vld [vmem:[%s5] sm:$0xff]
      %v518 = vld [vmem:[%s5 + $0x8] sm:$0xff]
      %520 = vset.pattern.permute.xlu0 0
      %521 = vperm.xlu0 %520, %v517
      %v522 = vpop.permute.xlu0 %521
      %525 = vset.pattern.permute.xlu0 0
      %526 = vperm.xlu0 %525, %v518
      %v527 = vpop.permute.xlu0 %526
      %v531 = vunpack.c.l.b16 %v482
      %v532 = vunpack.c.l.b16 %v483
      %v533 = vpack.c.b16 %v532, %v531
      %vm534 = vcmask 785408
      %v536 = vsel %vm534, %v533, 0
      %538 = vmatprep.subr.bf16.mxu0 0
      %539 = vmatpush1.bf16.msra.mxu0 %v499
      %540 = vmatprep.subr.bf16.mxu0 0
      %541 = vmatpush1.bf16.msra.mxu0 %v501
      %542 = vmatprep.subr.bf16.mxu0 0
      %543 = vmatpush1.bf16.msra.mxu0 %v506
      %544 = vmatprep.subr.bf16.mxu0 0
      %545 = vmatpush1.bf16.msra.mxu0 %v508
      %546 = vmatprep.subr.bf16.mxu0 0
      %547 = vmatpush1.bf16.msra.mxu0 %v512
      %548 = vmatprep.subr.bf16.mxu0 0
      %549 = vmatpush1.bf16.msra.mxu0 %v514
      %550 = vmatprep.subr.bf16.mxu0 0
      %551 = vmatpush1.bf16.msra.mxu0 0
      %552 = vmatprep.subr.bf16.mxu0 0
      %553 = vmatpush1.bf16.msra.mxu0 0
      %554 = vmatprep.subr.bf16.mxu0 0
      %555 = vmatpush1.bf16.msra.mxu0 0
      %556 = vmatprep.subr.bf16.mxu0 0
      %557 = vmatpush1.bf16.msra.mxu0 0
      %558 = vmatprep.subr.bf16.mxu0 0
      %559 = vmatpush1.bf16.msra.mxu0 0
      %560 = vmatprep.subr.bf16.mxu0 0
      %561 = vmatpush1.bf16.msra.mxu0 0
      %562 = vmatprep.subr.bf16.mxu0 0
      %563 = vmatpush1.bf16.msra.mxu0 0
      %564 = vmatprep.subr.bf16.mxu0 0
      %565 = vmatpush1.bf16.msra.mxu0 0
      %566 = vmatprep.subr.bf16.mxu0 0
      %567 = vmatpush1.bf16.msra.mxu0 0
      %568 = vmatprep.subr.bf16.mxu0 0
      %569 = vmatpush1.bf16.msra.mxu0 0
      %570 = vmatprep.mubr.bf16.mxu0 0
      %571 = vmatmul.mubr.bf16.gmra.mrb[0].mxu0 %v536
      %v572 = vpop.f32.mrb[0].mxu0
      %v573 = vadd.f32 %v522, %v572
      %v574 = vpop.f32.mrb[0].mxu0
      %v575 = vpop.f32.mrb[0].mxu0
      %v576 = vadd.f32 %v527, %v575
      %v577 = vpop.f32.mrb[0].mxu0
      %578 = vdwg.mxu0
      %vm579 = vcmp.ge.f32.partialorder %v573, 0.0
      %vm580 = vcmp.ge.f32.partialorder %v576, 0.0
      %v581 = vmul.f32 %v573, 0.01
      %v582 = vmul.f32 %v576, 0.01
      %v583 = vsel %vm579, %v573, %v581
      %v584 = vsel %vm580, %v576, %v582
      %v585 = vld [vmem:[%s3 + $0x10] sm:$0xf]
      %v586 = vld [vmem:[%s3 + $0x14] sm:$0xf]
      %v587 = vld [vmem:[%s3 + $0x18] sm:$0xf]
      %v588 = vld [vmem:[%s3 + $0x1c] sm:$0xf]
      %v589 = vld [vmem:[%s3 + $0x20] sm:$0xf]
      %v590 = vld [vmem:[%s3 + $0x24] sm:$0xf]
      %v591 = vpack.c.bf16 %v584, %v583
      %593 = vrot.lane.b32.xlu0 %v591, 3
      %v594 = vpop.permute.xlu0 %593
      %vm595 = vcmask 23552
      %v597 = vsel %vm595, 0, %v594
      %vm598 = vcmask 154624
      %v599 = vsel %vm598, %v597, 0
      %602 = vrot.lane.b32.xlu0 %v599, 127
      %v603 = vpop.permute.xlu0 %602
      %605 = vrot.lane.b32.xlu0 %v599, 126
      %v606 = vpop.permute.xlu0 %605
      %608 = vrot.lane.b32.xlu0 %v599, 125
      %v609 = vpop.permute.xlu0 %608
      %611 = vrot.lane.b32.xlu0 %v599, 124
      %v612 = vpop.permute.xlu0 %611
      %614 = vrot.lane.b32.xlu0 %v599, 123
      %v615 = vpop.permute.xlu0 %614
      %617 = vrot.lane.b32.xlu0 %v599, 122
      %v618 = vpop.permute.xlu0 %617
      %v620 = vld [vmem:[%s5 + $0x10] sm:$0xff]
      %v621 = vld [vmem:[%s5 + $0x18] sm:$0xff]
      %v622 = vld [vmem:[%s5 + $0x20] sm:$0xff]
      %v623 = vld [vmem:[%s5 + $0x28] sm:$0xff]
      %v624 = vld [vmem:[%s5 + $0x30] sm:$0xff]
      %v625 = vld [vmem:[%s5 + $0x38] sm:$0xff]
      %627 = vset.pattern.permute.xlu0 0
      %628 = vperm.xlu0 %627, %v620
      %v629 = vpop.permute.xlu0 %628
      %632 = vset.pattern.permute.xlu0 0
      %633 = vperm.xlu0 %632, %v621
      %v634 = vpop.permute.xlu0 %633
      %637 = vset.pattern.permute.xlu0 0
      %638 = vperm.xlu0 %637, %v622
      %v639 = vpop.permute.xlu0 %638
      %642 = vset.pattern.permute.xlu0 0
      %643 = vperm.xlu0 %642, %v623
      %v644 = vpop.permute.xlu0 %643
      %647 = vset.pattern.permute.xlu0 0
      %648 = vperm.xlu0 %647, %v624
      %v649 = vpop.permute.xlu0 %648
      %652 = vset.pattern.permute.xlu0 0
      %653 = vperm.xlu0 %652, %v625
      %v654 = vpop.permute.xlu0 %653
      %v662 = vunpack.c.l.b16 %v585
      %v663 = vunpack.c.l.b16 %v586
      %v664 = vunpack.c.l.b16 %v587
      %v665 = vunpack.c.l.b16 %v588
      %v666 = vunpack.c.l.b16 %v589
      %v667 = vunpack.c.l.b16 %v590
      %v668 = vpack.c.b16 %v663, %v662
      %v669 = vpack.c.b16 %v665, %v664
      %v670 = vpack.c.b16 %v667, %v666
      %vm671 = vcmask 916480
      %v673 = vsel %vm671, %v668, 0
      %v676 = vsel %vm671, %v669, 0
      %v679 = vsel %vm671, %v670, 0
      %681 = vmatprep.subr.bf16.mxu0 0
      %682 = vmatpush1.bf16.msra.mxu0 %v599
      %683 = vmatprep.subr.bf16.mxu0 0
      %684 = vmatpush1.bf16.msra.mxu0 %v603
      %685 = vmatprep.subr.bf16.mxu0 0
      %686 = vmatpush1.bf16.msra.mxu0 %v606
      %687 = vmatprep.subr.bf16.mxu0 0
      %688 = vmatpush1.bf16.msra.mxu0 %v609
      %689 = vmatprep.subr.bf16.mxu0 0
      %690 = vmatpush1.bf16.msra.mxu0 %v612
      %691 = vmatprep.subr.bf16.mxu0 0
      %692 = vmatpush1.bf16.msra.mxu0 %v615
      %693 = vmatprep.subr.bf16.mxu0 0
      %694 = vmatpush1.bf16.msra.mxu0 %v618
      %695 = vmatprep.subr.bf16.mxu0 0
      %696 = vmatpush1.bf16.msra.mxu0 0
      %697 = vmatprep.subr.bf16.mxu0 0
      %698 = vmatpush1.bf16.msra.mxu0 0
      %699 = vmatprep.subr.bf16.mxu0 0
      %700 = vmatpush1.bf16.msra.mxu0 0
      %701 = vmatprep.subr.bf16.mxu0 0
      %702 = vmatpush1.bf16.msra.mxu0 0
      %703 = vmatprep.subr.bf16.mxu0 0
      %704 = vmatpush1.bf16.msra.mxu0 0
      %705 = vmatprep.subr.bf16.mxu0 0
      %706 = vmatpush1.bf16.msra.mxu0 0
      %707 = vmatprep.subr.bf16.mxu0 0
      %708 = vmatpush1.bf16.msra.mxu0 0
      %709 = vmatprep.subr.bf16.mxu0 0
      %710 = vmatpush1.bf16.msra.mxu0 0
      %711 = vmatprep.subr.bf16.mxu0 0
      %712 = vmatpush1.bf16.msra.mxu0 0
      %713 = vmatprep.mubr.bf16.mxu0 0
      %714 = vmatmul.mubr.bf16.gmra.mrb[0].mxu0 %v673
      %v715 = vpop.f32.mrb[0].mxu0
      %v716 = vadd.f32 %v629, %v715
      %v717 = vpop.f32.mrb[0].mxu0
      %v718 = vpop.f32.mrb[0].mxu0
      %v719 = vadd.f32 %v634, %v718
      %v720 = vpop.f32.mrb[0].mxu0
      %721 = vmatprep.mubr.bf16.mxu0 0
      %722 = vmatmul.mubr.bf16.gmra.mrb[0].mxu0 %v676
      %v723 = vpop.f32.mrb[0].mxu0
      %v724 = vadd.f32 %v639, %v723
      %v725 = vpop.f32.mrb[0].mxu0
      %v726 = vpop.f32.mrb[0].mxu0
      %v727 = vadd.f32 %v644, %v726
      %v728 = vpop.f32.mrb[0].mxu0
      %729 = vmatprep.mubr.bf16.mxu0 0
      %730 = vmatmul.mubr.bf16.gmra.mrb[0].mxu0 %v679
      %v731 = vpop.f32.mrb[0].mxu0
      %v732 = vadd.f32 %v649, %v731
      %v733 = vpop.f32.mrb[0].mxu0
      %v734 = vpop.f32.mrb[0].mxu0
      %v735 = vadd.f32 %v654, %v734
      %v736 = vpop.f32.mrb[0].mxu0
      %737 = vdwg.mxu0
      %vm738 = vcmp.ge.f32.partialorder %v716, 0.0
      %vm739 = vcmp.ge.f32.partialorder %v719, 0.0
      %vm740 = vcmp.ge.f32.partialorder %v724, 0.0
      %vm741 = vcmp.ge.f32.partialorder %v727, 0.0
      %vm742 = vcmp.ge.f32.partialorder %v732, 0.0
      %vm743 = vcmp.ge.f32.partialorder %v735, 0.0
      %v744 = vmul.f32 %v716, 0.01
      %v745 = vmul.f32 %v719, 0.01
      %v746 = vmul.f32 %v724, 0.01
      %v747 = vmul.f32 %v727, 0.01
      %v748 = vmul.f32 %v732, 0.01
      %v749 = vmul.f32 %v735, 0.01
      %v750 = vsel %vm738, %v716, %v744
      %v751 = vsel %vm739, %v719, %v745
      %v752 = vsel %vm740, %v724, %v746
      %v753 = vsel %vm741, %v727, %v747
      %v754 = vsel %vm742, %v732, %v748
      %v755 = vsel %vm743, %v735, %v749
      %v756 = vld [vmem:[%s3 + $0x40] sm:$0x7]
      %v757 = vpack.c.bf16 %v751, %v750
      %v758 = vld [vmem:[%s5 + $0x40] sm:$0x1f]
      %760 = vset.pattern.permute.xlu0 0
      %761 = vperm.xlu0 %760, %v758
      %v762 = vpop.permute.xlu0 %761
      %vm764 = vcmask 130048
      %v766 = vsel %vm764, %v756, 0
      %768 = vmatprep.subr.bf16.mxu0 0
      %769 = vmatpush1.bf16.msra.mxu0 %v757
      %770 = vmatprep.subr.bf16.mxu0 0
      %771 = vmatpush1.bf16.msra.mxu0 0
      %772 = vmatprep.subr.bf16.mxu0 0
      %773 = vmatpush1.bf16.msra.mxu0 0
      %774 = vmatprep.subr.bf16.mxu0 0
      %775 = vmatpush1.bf16.msra.mxu0 0
      %776 = vmatprep.subr.bf16.mxu0 0
      %777 = vmatpush1.bf16.msra.mxu0 0
      %778 = vmatprep.subr.bf16.mxu0 0
      %779 = vmatpush1.bf16.msra.mxu0 0
      %780 = vmatprep.subr.bf16.mxu0 0
      %781 = vmatpush1.bf16.msra.mxu0 0
      %782 = vmatprep.subr.bf16.mxu0 0
      %783 = vmatpush1.bf16.msra.mxu0 0
      %784 = vmatprep.subr.bf16.mxu0 0
      %785 = vmatpush1.bf16.msra.mxu0 0
      %786 = vmatprep.subr.bf16.mxu0 0
      %787 = vmatpush1.bf16.msra.mxu0 0
      %788 = vmatprep.subr.bf16.mxu0 0
      %789 = vmatpush1.bf16.msra.mxu0 0
      %790 = vmatprep.subr.bf16.mxu0 0
      %791 = vmatpush1.bf16.msra.mxu0 0
      %792 = vmatprep.subr.bf16.mxu0 0
      %793 = vmatpush1.bf16.msra.mxu0 0
      %794 = vmatprep.subr.bf16.mxu0 0
      %795 = vmatpush1.bf16.msra.mxu0 0
      %796 = vmatprep.subr.bf16.mxu0 0
      %797 = vmatpush1.bf16.msra.mxu0 0
      %798 = vmatprep.subr.bf16.mxu0 0
      %799 = vmatpush1.bf16.msra.mxu0 0
      %800 = vmatprep.mubr.bf16.mxu0 0
      %801 = vmatmul.mubr.bf16.gmra.mrb[0].mxu0 %v766
      %v802 = vpop.f32.mrb[0].mxu0
      %v803 = vadd.f32 %v762, %v802
      %v804 = vpop.f32.mrb[0].mxu0
      %v805 = vpop.f32.mrb[0].mxu0
      %v806 = vpop.f32.mrb[0].mxu0
      %807 = vdwg.mxu0
      %v808 = vxor.u32 %v803, 2147483648
      %v809 = vmul.f32 %v808, 1.442695
      %v810 = vpow.pop %v809
      %v811 = vadd.f32 %v810, 1.0
      %v812 = vrcp.pop %v811
      %v813 = vmul.f32 1.0, %v812
      %v814 = vld [vmem:[%s3 + $0x50] sm:$0xf]
      %v815 = vld [vmem:[%s3 + $0x54] sm:$0xf]
      %v816 = vld [vmem:[%s3 + $0x58] sm:$0xf]
      %v817 = vld [vmem:[%s3 + $0x5c] sm:$0xf]
      %v818 = vpack.c.bf16 %v753, %v752
      %v819 = vpack.c.bf16 %v755, %v754
      %v820 = vld [vmem:[%s5 + $0x48] sm:$0xff]
      %v821 = vld [vmem:[%s5 + $0x50] sm:$0xff]
      %v822 = vld [vmem:[%s5 + $0x58] sm:$0xff]
      %v823 = vld [vmem:[%s5 + $0x60] sm:$0xff]
      %825 = vset.pattern.permute.xlu0 0
      %826 = vperm.xlu0 %825, %v820
      %v827 = vpop.permute.xlu0 %826
      %830 = vset.pattern.permute.xlu0 0
      %831 = vperm.xlu0 %830, %v821
      %v832 = vpop.permute.xlu0 %831
      %835 = vset.pattern.permute.xlu0 0
      %836 = vperm.xlu0 %835, %v822
      %v837 = vpop.permute.xlu0 %836
      %840 = vset.pattern.permute.xlu0 0
      %841 = vperm.xlu0 %840, %v823
      %v842 = vpop.permute.xlu0 %841
      %v848 = vunpack.c.l.b16 %v814
      %v849 = vunpack.c.l.b16 %v815
      %v850 = vunpack.c.l.b16 %v816
      %v851 = vunpack.c.l.b16 %v817
      %v852 = vpack.c.b16 %v849, %v848
      %v853 = vpack.c.b16 %v851, %v850
      %vm854 = vcmask 261120
      %v856 = vsel %vm854, %v852, 0
      %v859 = vsel %vm854, %v853, 0
      %861 = vmatprep.subr.bf16.mxu0 0
      %862 = vmatpush1.bf16.msra.mxu0 %v818
      %863 = vmatprep.subr.bf16.mxu0 0
      %864 = vmatpush1.bf16.msra.mxu0 %v819
      %865 = vmatprep.subr.bf16.mxu0 0
      %866 = vmatpush1.bf16.msra.mxu0 0
      %867 = vmatprep.subr.bf16.mxu0 0
      %868 = vmatpush1.bf16.msra.mxu0 0
      %869 = vmatprep.subr.bf16.mxu0 0
      %870 = vmatpush1.bf16.msra.mxu0 0
      %871 = vmatprep.subr.bf16.mxu0 0
      %872 = vmatpush1.bf16.msra.mxu0 0
      %873 = vmatprep.subr.bf16.mxu0 0
      %874 = vmatpush1.bf16.msra.mxu0 0
      %875 = vmatprep.subr.bf16.mxu0 0
      %876 = vmatpush1.bf16.msra.mxu0 0
      %877 = vmatprep.subr.bf16.mxu0 0
      %878 = vmatpush1.bf16.msra.mxu0 0
      %879 = vmatprep.subr.bf16.mxu0 0
      %880 = vmatpush1.bf16.msra.mxu0 0
      %881 = vmatprep.subr.bf16.mxu0 0
      %882 = vmatpush1.bf16.msra.mxu0 0
      %883 = vmatprep.subr.bf16.mxu0 0
      %884 = vmatpush1.bf16.msra.mxu0 0
      %885 = vmatprep.subr.bf16.mxu0 0
      %886 = vmatpush1.bf16.msra.mxu0 0
      %887 = vmatprep.subr.bf16.mxu0 0
      %888 = vmatpush1.bf16.msra.mxu0 0
      %889 = vmatprep.subr.bf16.mxu0 0
      %890 = vmatpush1.bf16.msra.mxu0 0
      %891 = vmatprep.subr.bf16.mxu0 0
      %892 = vmatpush1.bf16.msra.mxu0 0
      %893 = vmatprep.mubr.bf16.mxu0 0
      %894 = vmatmul.mubr.bf16.gmra.mrb[0].mxu0 %v856
      %v895 = vpop.f32.mrb[0].mxu0
      %v896 = vadd.f32 %v827, %v895
      %v897 = vpop.f32.mrb[0].mxu0
      %v898 = vpop.f32.mrb[0].mxu0
      %v899 = vadd.f32 %v832, %v898
      %v900 = vpop.f32.mrb[0].mxu0
      %901 = vmatprep.mubr.bf16.mxu0 0
      %902 = vmatmul.mubr.bf16.gmra.mrb[0].mxu0 %v859
      %v903 = vpop.f32.mrb[0].mxu0
      %v904 = vadd.f32 %v837, %v903
      %v905 = vpop.f32.mrb[0].mxu0
      %v906 = vpop.f32.mrb[0].mxu0
      %v907 = vadd.f32 %v842, %v906
      %v908 = vpop.f32.mrb[0].mxu0
      %909 = vdwg.mxu0
      %v910 = vxor.u32 %v896, 2147483648
      %v911 = vxor.u32 %v899, 2147483648
      %v912 = vxor.u32 %v904, 2147483648
      %v913 = vxor.u32 %v907, 2147483648
      %v914 = vmul.f32 %v910, 1.442695
      %v915 = vpow.pop %v914
      %v916 = vmul.f32 %v911, 1.442695
      %v917 = vpow.pop %v916
      %v918 = vmul.f32 %v912, 1.442695
      %v919 = vpow.pop %v918
      %v920 = vmul.f32 %v913, 1.442695
      %v921 = vpow.pop %v920
      %v922 = vadd.f32 %v915, 1.0
      %v923 = vadd.f32 %v917, 1.0
      %v924 = vadd.f32 %v919, 1.0
      %v925 = vadd.f32 %v921, 1.0
      %v926 = vrcp.pop %v922
      %v927 = vmul.f32 1.0, %v926
      %v928 = vrcp.pop %v923
      %v929 = vmul.f32 1.0, %v928
      %v930 = vrcp.pop %v924
      %v931 = vmul.f32 1.0, %v930
      %v932 = vrcp.pop %v925
      %v933 = vmul.f32 1.0, %v932
      %v934 = vld [vmem:[%s3 + $0x8] sm:$0xf]
      %v935 = vld [vmem:[%s3 + $0xc] sm:$0xf]
      %936 = vrot.lane.b32.xlu0 %v484, 113
      %v937 = vpop.permute.xlu0 %936
      %938 = vrot.lane.b32.xlu0 %v485, 113
      %v939 = vpop.permute.xlu0 %938
      %v941 = vsel %vm492, 0, %v937
      %v943 = vsel %vm492, 0, %v939
      %v944 = vsel %vm498, %v941, 0
      %v946 = vsel %vm498, %v943, 0
      %950 = vrot.lane.b32.xlu0 %v944, 127
      %v951 = vpop.permute.xlu0 %950
      %952 = vrot.lane.b32.xlu0 %v946, 127
      %v953 = vpop.permute.xlu0 %952
      %956 = vrot.lane.b32.xlu0 %v944, 126
      %v957 = vpop.permute.xlu0 %956
      %958 = vrot.lane.b32.xlu0 %v946, 126
      %v959 = vpop.permute.xlu0 %958
      %v962 = vld [vmem:[%s5 + $0x68] sm:$0xff]
      %v963 = vld [vmem:[%s5 + $0x70] sm:$0xff]
      %965 = vset.pattern.permute.xlu0 0
      %966 = vperm.xlu0 %965, %v962
      %v967 = vpop.permute.xlu0 %966
      %970 = vset.pattern.permute.xlu0 0
      %971 = vperm.xlu0 %970, %v963
      %v972 = vpop.permute.xlu0 %971
      %v976 = vunpack.c.l.b16 %v934
      %v977 = vunpack.c.l.b16 %v935
      %v978 = vpack.c.b16 %v977, %v976
      %v980 = vsel %vm534, %v978, 0
      %982 = vmatprep.subr.bf16.mxu0 0
      %983 = vmatpush1.bf16.msra.mxu0 %v944
      %984 = vmatprep.subr.bf16.mxu0 0
      %985 = vmatpush1.bf16.msra.mxu0 %v946
      %986 = vmatprep.subr.bf16.mxu0 0
      %987 = vmatpush1.bf16.msra.mxu0 %v951
      %988 = vmatprep.subr.bf16.mxu0 0
      %989 = vmatpush1.bf16.msra.mxu0 %v953
      %990 = vmatprep.subr.bf16.mxu0 0
      %991 = vmatpush1.bf16.msra.mxu0 %v957
      %992 = vmatprep.subr.bf16.mxu0 0
      %993 = vmatpush1.bf16.msra.mxu0 %v959
      %994 = vmatprep.subr.bf16.mxu0 0
      %995 = vmatpush1.bf16.msra.mxu0 0
      %996 = vmatprep.subr.bf16.mxu0 0
      %997 = vmatpush1.bf16.msra.mxu0 0
      %998 = vmatprep.subr.bf16.mxu0 0
      %999 = vmatpush1.bf16.msra.mxu0 0
      %1000 = vmatprep.subr.bf16.mxu0 0
      %1001 = vmatpush1.bf16.msra.mxu0 0
      %1002 = vmatprep.subr.bf16.mxu0 0
      %1003 = vmatpush1.bf16.msra.mxu0 0
      %1004 = vmatprep.subr.bf16.mxu0 0
      %1005 = vmatpush1.bf16.msra.mxu0 0
      %1006 = vmatprep.subr.bf16.mxu0 0
      %1007 = vmatpush1.bf16.msra.mxu0 0
      %1008 = vmatprep.subr.bf16.mxu0 0
      %1009 = vmatpush1.bf16.msra.mxu0 0
      %1010 = vmatprep.subr.bf16.mxu0 0
      %1011 = vmatpush1.bf16.msra.mxu0 0
      %1012 = vmatprep.subr.bf16.mxu0 0
      %1013 = vmatpush1.bf16.msra.mxu0 0
      %1014 = vmatprep.mubr.bf16.mxu0 0
      %1015 = vmatmul.mubr.bf16.gmra.mrb[0].mxu0 %v980
      %v1016 = vpop.f32.mrb[0].mxu0
      %v1017 = vadd.f32 %v967, %v1016
      %v1018 = vpop.f32.mrb[0].mxu0
      %v1019 = vpop.f32.mrb[0].mxu0
      %v1020 = vadd.f32 %v972, %v1019
      %v1021 = vpop.f32.mrb[0].mxu0
      %1022 = vdwg.mxu0
      %vm1023 = vcmp.ge.f32.partialorder %v1017, 0.0
      %vm1024 = vcmp.ge.f32.partialorder %v1020, 0.0
      %v1025 = vmul.f32 %v1017, 0.01
      %v1026 = vmul.f32 %v1020, 0.01
      %v1027 = vsel %vm1023, %v1017, %v1025
      %v1028 = vsel %vm1024, %v1020, %v1026
      %v1029 = vld [vmem:[%s3 + $0x28] sm:$0xf]
      %v1030 = vld [vmem:[%s3 + $0x2c] sm:$0xf]
      %v1031 = vld [vmem:[%s3 + $0x30] sm:$0xf]
      %v1032 = vld [vmem:[%s3 + $0x34] sm:$0xf]
      %v1033 = vld [vmem:[%s3 + $0x38] sm:$0xf]
      %v1034 = vld [vmem:[%s3 + $0x3c] sm:$0xf]
      %v1035 = vpack.c.bf16 %v1028, %v1027
      %1037 = vrot.lane.b32.xlu0 %v1035, 3
      %v1038 = vpop.permute.xlu0 %1037
      %v1040 = vsel %vm595, 0, %v1038
      %v1041 = vsel %vm598, %v1040, 0
      %1044 = vrot.lane.b32.xlu0 %v1041, 127
      %v1045 = vpop.permute.xlu0 %1044
      %1047 = vrot.lane.b32.xlu0 %v1041, 126
      %v1048 = vpop.permute.xlu0 %1047
      %1050 = vrot.lane.b32.xlu0 %v1041, 125
      %v1051 = vpop.permute.xlu0 %1050
      %1053 = vrot.lane.b32.xlu0 %v1041, 124
      %v1054 = vpop.permute.xlu0 %1053
      %1056 = vrot.lane.b32.xlu0 %v1041, 123
      %v1057 = vpop.permute.xlu0 %1056
      %1059 = vrot.lane.b32.xlu0 %v1041, 122
      %v1060 = vpop.permute.xlu0 %1059
      %v1062 = vld [vmem:[%s5 + $0x78] sm:$0xff]
      %v1063 = vld [vmem:[%s5 + $0x80] sm:$0xff]
      %v1064 = vld [vmem:[%s5 + $0x88] sm:$0xff]
      %v1065 = vld [vmem:[%s5 + $0x90] sm:$0xff]
      %v1066 = vld [vmem:[%s5 + $0x98] sm:$0xff]
      %v1067 = vld [vmem:[%s5 + $0xa0] sm:$0xff]
      %1069 = vset.pattern.permute.xlu0 0
      %1070 = vperm.xlu0 %1069, %v1062
      %v1071 = vpop.permute.xlu0 %1070
      %1074 = vset.pattern.permute.xlu0 0
      %1075 = vperm.xlu0 %1074, %v1063
      %v1076 = vpop.permute.xlu0 %1075
      %1079 = vset.pattern.permute.xlu0 0
      %1080 = vperm.xlu0 %1079, %v1064
      %v1081 = vpop.permute.xlu0 %1080
      %1084 = vset.pattern.permute.xlu0 0
      %1085 = vperm.xlu0 %1084, %v1065
      %v1086 = vpop.permute.xlu0 %1085
      %1089 = vset.pattern.permute.xlu0 0
      %1090 = vperm.xlu0 %1089, %v1066
      %v1091 = vpop.permute.xlu0 %1090
      %1094 = vset.pattern.permute.xlu0 0
      %1095 = vperm.xlu0 %1094, %v1067
      %v1096 = vpop.permute.xlu0 %1095
      %v1104 = vunpack.c.l.b16 %v1029
      %v1105 = vunpack.c.l.b16 %v1030
      %v1106 = vunpack.c.l.b16 %v1031
      %v1107 = vunpack.c.l.b16 %v1032
      %v1108 = vunpack.c.l.b16 %v1033
      %v1109 = vunpack.c.l.b16 %v1034
      %v1110 = vpack.c.b16 %v1105, %v1104
      %v1111 = vpack.c.b16 %v1107, %v1106
      %v1112 = vpack.c.b16 %v1109, %v1108
      %v1114 = vsel %vm671, %v1110, 0
      %v1117 = vsel %vm671, %v1111, 0
      %v1120 = vsel %vm671, %v1112, 0
      %1122 = vmatprep.subr.bf16.mxu0 0
      %1123 = vmatpush1.bf16.msra.mxu0 %v1041
      %1124 = vmatprep.subr.bf16.mxu0 0
      %1125 = vmatpush1.bf16.msra.mxu0 %v1045
      %1126 = vmatprep.subr.bf16.mxu0 0
      %1127 = vmatpush1.bf16.msra.mxu0 %v1048
      %1128 = vmatprep.subr.bf16.mxu0 0
      %1129 = vmatpush1.bf16.msra.mxu0 %v1051
      %1130 = vmatprep.subr.bf16.mxu0 0
      %1131 = vmatpush1.bf16.msra.mxu0 %v1054
      %1132 = vmatprep.subr.bf16.mxu0 0
      %1133 = vmatpush1.bf16.msra.mxu0 %v1057
      %1134 = vmatprep.subr.bf16.mxu0 0
      %1135 = vmatpush1.bf16.msra.mxu0 %v1060
      %1136 = vmatprep.subr.bf16.mxu0 0
      %1137 = vmatpush1.bf16.msra.mxu0 0
      %1138 = vmatprep.subr.bf16.mxu0 0
      %1139 = vmatpush1.bf16.msra.mxu0 0
      %1140 = vmatprep.subr.bf16.mxu0 0
      %1141 = vmatpush1.bf16.msra.mxu0 0
      %1142 = vmatprep.subr.bf16.mxu0 0
      %1143 = vmatpush1.bf16.msra.mxu0 0
      %1144 = vmatprep.subr.bf16.mxu0 0
      %1145 = vmatpush1.bf16.msra.mxu0 0
      %1146 = vmatprep.subr.bf16.mxu0 0
      %1147 = vmatpush1.bf16.msra.mxu0 0
      %1148 = vmatprep.subr.bf16.mxu0 0
      %1149 = vmatpush1.bf16.msra.mxu0 0
      %1150 = vmatprep.subr.bf16.mxu0 0
      %1151 = vmatpush1.bf16.msra.mxu0 0
      %1152 = vmatprep.subr.bf16.mxu0 0
      %1153 = vmatpush1.bf16.msra.mxu0 0
      %1154 = vmatprep.mubr.bf16.mxu0 0
      %1155 = vmatmul.mubr.bf16.gmra.mrb[0].mxu0 %v1114
      %v1156 = vpop.f32.mrb[0].mxu0
      %v1157 = vadd.f32 %v1071, %v1156
      %v1158 = vpop.f32.mrb[0].mxu0
      %v1159 = vpop.f32.mrb[0].mxu0
      %v1160 = vadd.f32 %v1076, %v1159
      %v1161 = vpop.f32.mrb[0].mxu0
      %1162 = vmatprep.mubr.bf16.mxu0 0
      %1163 = vmatmul.mubr.bf16.gmra.mrb[0].mxu0 %v1117
      %v1164 = vpop.f32.mrb[0].mxu0
      %v1165 = vadd.f32 %v1081, %v1164
      %v1166 = vpop.f32.mrb[0].mxu0
      %v1167 = vpop.f32.mrb[0].mxu0
      %v1168 = vadd.f32 %v1086, %v1167
      %v1169 = vpop.f32.mrb[0].mxu0
      %1170 = vmatprep.mubr.bf16.mxu0 0
      %1171 = vmatmul.mubr.bf16.gmra.mrb[0].mxu0 %v1120
      %v1172 = vpop.f32.mrb[0].mxu0
      %v1173 = vadd.f32 %v1091, %v1172
      %v1174 = vpop.f32.mrb[0].mxu0
      %v1175 = vpop.f32.mrb[0].mxu0
      %v1176 = vadd.f32 %v1096, %v1175
      %v1177 = vpop.f32.mrb[0].mxu0
      %1178 = vdwg.mxu0
      %vm1179 = vcmp.ge.f32.partialorder %v1157, 0.0
      %vm1180 = vcmp.ge.f32.partialorder %v1160, 0.0
      %vm1181 = vcmp.ge.f32.partialorder %v1165, 0.0
      %vm1182 = vcmp.ge.f32.partialorder %v1168, 0.0
      %vm1183 = vcmp.ge.f32.partialorder %v1173, 0.0
      %vm1184 = vcmp.ge.f32.partialorder %v1176, 0.0
      %v1185 = vmul.f32 %v1157, 0.01
      %v1186 = vmul.f32 %v1160, 0.01
      %v1187 = vmul.f32 %v1165, 0.01
      %v1188 = vmul.f32 %v1168, 0.01
      %v1189 = vmul.f32 %v1173, 0.01
      %v1190 = vmul.f32 %v1176, 0.01
      %v1191 = vsel %vm1179, %v1157, %v1185
      %v1192 = vsel %vm1180, %v1160, %v1186
      %v1193 = vsel %vm1181, %v1165, %v1187
      %v1194 = vsel %vm1182, %v1168, %v1188
      %v1195 = vsel %vm1183, %v1173, %v1189
      %v1196 = vsel %vm1184, %v1176, %v1190
      %v1197 = vld [vmem:[%s3 + $0x48] sm:$0x7]
      %v1198 = vpack.c.bf16 %v1192, %v1191
      %v1199 = vld [vmem:[%s5 + $0xa8] sm:$0x1f]
      %1201 = vset.pattern.permute.xlu0 0
      %1202 = vperm.xlu0 %1201, %v1199
      %v1203 = vpop.permute.xlu0 %1202
      %v1206 = vsel %vm764, %v1197, 0
      %1208 = vmatprep.subr.bf16.mxu0 0
      %1209 = vmatpush1.bf16.msra.mxu0 %v1198
      %1210 = vmatprep.subr.bf16.mxu0 0
      %1211 = vmatpush1.bf16.msra.mxu0 0
      %1212 = vmatprep.subr.bf16.mxu0 0
      %1213 = vmatpush1.bf16.msra.mxu0 0
      %1214 = vmatprep.subr.bf16.mxu0 0
      %1215 = vmatpush1.bf16.msra.mxu0 0
      %1216 = vmatprep.subr.bf16.mxu0 0
      %1217 = vmatpush1.bf16.msra.mxu0 0
      %1218 = vmatprep.subr.bf16.mxu0 0
      %1219 = vmatpush1.bf16.msra.mxu0 0
      %1220 = vmatprep.subr.bf16.mxu0 0
      %1221 = vmatpush1.bf16.msra.mxu0 0
      %1222 = vmatprep.subr.bf16.mxu0 0
      %1223 = vmatpush1.bf16.msra.mxu0 0
      %1224 = vmatprep.subr.bf16.mxu0 0
      %1225 = vmatpush1.bf16.msra.mxu0 0
      %1226 = vmatprep.subr.bf16.mxu0 0
      %1227 = vmatpush1.bf16.msra.mxu0 0
      %1228 = vmatprep.subr.bf16.mxu0 0
      %1229 = vmatpush1.bf16.msra.mxu0 0
      %1230 = vmatprep.subr.bf16.mxu0 0
      %1231 = vmatpush1.bf16.msra.mxu0 0
      %1232 = vmatprep.subr.bf16.mxu0 0
      %1233 = vmatpush1.bf16.msra.mxu0 0
      %1234 = vmatprep.subr.bf16.mxu0 0
      %1235 = vmatpush1.bf16.msra.mxu0 0
      %1236 = vmatprep.subr.bf16.mxu0 0
      %1237 = vmatpush1.bf16.msra.mxu0 0
      %1238 = vmatprep.subr.bf16.mxu0 0
      %1239 = vmatpush1.bf16.msra.mxu0 0
      %1240 = vmatprep.mubr.bf16.mxu0 0
      %1241 = vmatmul.mubr.bf16.gmra.mrb[0].mxu0 %v1206
      %v1242 = vpop.f32.mrb[0].mxu0
      %v1243 = vadd.f32 %v1203, %v1242
      %v1244 = vpop.f32.mrb[0].mxu0
      %v1245 = vpop.f32.mrb[0].mxu0
      %v1246 = vpop.f32.mrb[0].mxu0
      %1247 = vdwg.mxu0
      %v1248 = vxor.u32 %v1243, 2147483648
      %v1249 = vmul.f32 %v1248, 1.442695
      %v1250 = vpow.pop %v1249
      %v1251 = vadd.f32 %v1250, 1.0
      %v1252 = vrcp.pop %v1251
      %v1253 = vmul.f32 1.0, %v1252
      %v1254 = vld [vmem:[%s3 + $0x60] sm:$0xf]
      %v1255 = vld [vmem:[%s3 + $0x64] sm:$0xf]
      %v1256 = vld [vmem:[%s3 + $0x68] sm:$0xf]
      %v1257 = vld [vmem:[%s3 + $0x6c] sm:$0xf]
      %v1258 = vpack.c.bf16 %v1194, %v1193
      %v1259 = vpack.c.bf16 %v1196, %v1195
      %v1260 = vld [vmem:[%s5 + $0xb0] sm:$0xff]
      %v1261 = vld [vmem:[%s5 + $0xb8] sm:$0xff]
      %v1262 = vld [vmem:[%s5 + $0xc0] sm:$0xff]
      %v1263 = vld [vmem:[%s5 + $0xc8] sm:$0xff]
      %1265 = vset.pattern.permute.xlu0 0
      %1266 = vperm.xlu0 %1265, %v1260
      %v1267 = vpop.permute.xlu0 %1266
      %1270 = vset.pattern.permute.xlu0 0
      %1271 = vperm.xlu0 %1270, %v1261
      %v1272 = vpop.permute.xlu0 %1271
      %1275 = vset.pattern.permute.xlu0 0
      %1276 = vperm.xlu0 %1275, %v1262
      %v1277 = vpop.permute.xlu0 %1276
      %1280 = vset.pattern.permute.xlu0 0
      %1281 = vperm.xlu0 %1280, %v1263
      %v1282 = vpop.permute.xlu0 %1281
      %v1288 = vunpack.c.l.b16 %v1254
      %v1289 = vunpack.c.l.b16 %v1255
      %v1290 = vunpack.c.l.b16 %v1256
      %v1291 = vunpack.c.l.b16 %v1257
      %v1292 = vpack.c.b16 %v1289, %v1288
      %v1293 = vpack.c.b16 %v1291, %v1290
      %v1295 = vsel %vm854, %v1292, 0
      %v1298 = vsel %vm854, %v1293, 0
      %1300 = vmatprep.subr.bf16.mxu0 0
      %1301 = vmatpush1.bf16.msra.mxu0 %v1258
      %1302 = vmatprep.subr.bf16.mxu0 0
      %1303 = vmatpush1.bf16.msra.mxu0 %v1259
      %1304 = vmatprep.subr.bf16.mxu0 0
      %1305 = vmatpush1.bf16.msra.mxu0 0
      %1306 = vmatprep.subr.bf16.mxu0 0
      %1307 = vmatpush1.bf16.msra.mxu0 0
      %1308 = vmatprep.subr.bf16.mxu0 0
      %1309 = vmatpush1.bf16.msra.mxu0 0
      %1310 = vmatprep.subr.bf16.mxu0 0
      %1311 = vmatpush1.bf16.msra.mxu0 0
      %1312 = vmatprep.subr.bf16.mxu0 0
      %1313 = vmatpush1.bf16.msra.mxu0 0
      %1314 = vmatprep.subr.bf16.mxu0 0
      %1315 = vmatpush1.bf16.msra.mxu0 0
      %1316 = vmatprep.subr.bf16.mxu0 0
      %1317 = vmatpush1.bf16.msra.mxu0 0
      %1318 = vmatprep.subr.bf16.mxu0 0
      %1319 = vmatpush1.bf16.msra.mxu0 0
      %1320 = vmatprep.subr.bf16.mxu0 0
      %1321 = vmatpush1.bf16.msra.mxu0 0
      %1322 = vmatprep.subr.bf16.mxu0 0
      %1323 = vmatpush1.bf16.msra.mxu0 0
      %1324 = vmatprep.subr.bf16.mxu0 0
      %1325 = vmatpush1.bf16.msra.mxu0 0
      %1326 = vmatprep.subr.bf16.mxu0 0
      %1327 = vmatpush1.bf16.msra.mxu0 0
      %1328 = vmatprep.subr.bf16.mxu0 0
      %1329 = vmatpush1.bf16.msra.mxu0 0
      %1330 = vmatprep.subr.bf16.mxu0 0
      %1331 = vmatpush1.bf16.msra.mxu0 0
      %1332 = vmatprep.mubr.bf16.mxu0 0
      %1333 = vmatmul.mubr.bf16.gmra.mrb[0].mxu0 %v1295
      %v1334 = vpop.f32.mrb[0].mxu0
      %v1335 = vadd.f32 %v1267, %v1334
      %v1336 = vpop.f32.mrb[0].mxu0
      %v1337 = vpop.f32.mrb[0].mxu0
      %v1338 = vadd.f32 %v1272, %v1337
      %v1339 = vpop.f32.mrb[0].mxu0
      %1340 = vmatprep.mubr.bf16.mxu0 0
      %1341 = vmatmul.mubr.bf16.gmra.mrb[0].mxu0 %v1298
      %v1342 = vpop.f32.mrb[0].mxu0
      %v1343 = vadd.f32 %v1277, %v1342
      %v1344 = vpop.f32.mrb[0].mxu0
      %v1345 = vpop.f32.mrb[0].mxu0
      %v1346 = vadd.f32 %v1282, %v1345
      %v1347 = vpop.f32.mrb[0].mxu0
      %1348 = vdwg.mxu0
      %v1349 = vxor.u32 %v1335, 2147483648
      %v1350 = vxor.u32 %v1338, 2147483648
      %v1351 = vxor.u32 %v1343, 2147483648
      %v1352 = vxor.u32 %v1346, 2147483648
      %v1353 = vmul.f32 %v1349, 1.442695
      %v1354 = vpow.pop %v1353
      %v1355 = vmul.f32 %v1350, 1.442695
      %v1356 = vpow.pop %v1355
      %v1357 = vmul.f32 %v1351, 1.442695
      %v1358 = vpow.pop %v1357
      %v1359 = vmul.f32 %v1352, 1.442695
      %v1360 = vpow.pop %v1359
      %v1361 = vadd.f32 %v1354, 1.0
      %v1362 = vadd.f32 %v1356, 1.0
      %v1363 = vadd.f32 %v1358, 1.0
      %v1364 = vadd.f32 %v1360, 1.0
      %v1365 = vrcp.pop %v1361
      %v1366 = vmul.f32 1.0, %v1365
      %v1367 = vrcp.pop %v1362
      %v1368 = vmul.f32 1.0, %v1367
      %v1369 = vrcp.pop %v1363
      %v1370 = vmul.f32 1.0, %v1369
      %v1371 = vrcp.pop %v1364
      %v1372 = vmul.f32 1.0, %v1371
      %1374 = vrot.lane.b32.xlu0 %v1253, 16
      %v1375 = vpop.permute.xlu0 %1374
      %v1377 = vsel %vm764, %v813, %v1375
      %vm1378 = vcmask 258048
      %1379 = vst.msk [vmem:[%s289] sm:$0x1f] %vm1378, %v1377
      %v1380 = vld [vmem:[%s5 + $0x130] sm:$0xff]
      %v1381 = vld [vmem:[%s5 + $0x138] sm:$0xff]
      %v1382 = vld [vmem:[%s5 + $0x140] sm:$0xff]
      %v1383 = vld [vmem:[%s5 + $0x148] sm:$0xff]
      %1385 = vset.pattern.permute.xlu0 0
      %1386 = vperm.xlu0 %1385, %v1380
      %v1387 = vpop.permute.xlu0 %1386
      %1390 = vset.pattern.permute.xlu0 0
      %1391 = vperm.xlu0 %1390, %v1381
      %v1392 = vpop.permute.xlu0 %1391
      %1395 = vset.pattern.permute.xlu0 0
      %1396 = vperm.xlu0 %1395, %v1382
      %v1397 = vpop.permute.xlu0 %1396
      %1400 = vset.pattern.permute.xlu0 0
      %1401 = vperm.xlu0 %1400, %v1383
      %v1402 = vpop.permute.xlu0 %1401
      %v1404 = vmul.f32 %v1387, %v1366
      %v1405 = vmul.f32 %v1392, %v1368
      %v1406 = vmul.f32 %v1397, %v1370
      %v1407 = vmul.f32 %v1402, %v1372
      %v1408 = vld [vmem:[%s5 + $0x110] sm:$0xff]
      %v1409 = vld [vmem:[%s5 + $0x118] sm:$0xff]
      %v1410 = vld [vmem:[%s5 + $0x120] sm:$0xff]
      %v1411 = vld [vmem:[%s5 + $0x128] sm:$0xff]
      %1413 = vset.pattern.permute.xlu0 0
      %1414 = vperm.xlu0 %1413, %v1408
      %v1415 = vpop.permute.xlu0 %1414
      %1418 = vset.pattern.permute.xlu0 0
      %1419 = vperm.xlu0 %1418, %v1409
      %v1420 = vpop.permute.xlu0 %1419
      %1423 = vset.pattern.permute.xlu0 0
      %1424 = vperm.xlu0 %1423, %v1410
      %v1425 = vpop.permute.xlu0 %1424
      %1428 = vset.pattern.permute.xlu0 0
      %1429 = vperm.xlu0 %1428, %v1411
      %v1430 = vpop.permute.xlu0 %1429
      %v1432 = vmul.f32 %v1415, %v927
      %v1433 = vmul.f32 %v1420, %v929
      %v1434 = vmul.f32 %v1425, %v931
      %v1435 = vmul.f32 %v1430, %v933
      %1440 = vrot.lane.b32.xlu0 %v1432, 16
      %v1441 = vpop.permute.xlu0 %1440
      %1442 = vrot.lane.b32.xlu0 %v1433, 16
      %v1443 = vpop.permute.xlu0 %1442
      %1444 = vrot.lane.b32.xlu0 %v1434, 16
      %v1445 = vpop.permute.xlu0 %1444
      %1446 = vrot.lane.b32.xlu0 %v1435, 16
      %v1447 = vpop.permute.xlu0 %1446
      %v1452 = vsel %vm764, %v1404, %v1441
      %v1453 = vsel %vm764, %v1405, %v1443
      %v1454 = vsel %vm764, %v1406, %v1445
      %v1455 = vsel %vm764, %v1407, %v1447
      %v1456 = vpack.c.bf16 %v1453, %v1452
      %v1457 = vpack.c.bf16 %v1455, %v1454
      %v1458 = vld [vmem:[%s2] sm:$0xff]
      %v1459 = vld [vmem:[%s2 + $0x8] sm:$0xff]
      %v1460 = vld [vmem:[%s2 + $0x10] sm:$0xff]
      %v1461 = vld [vmem:[%s2 + $0x18] sm:$0xff]
      %v1466 = vunpack.c.l.b16 %v1458
      %v1467 = vunpack.c.h.b16 %v1458
      %v1468 = vunpack.c.l.b16 %v1459
      %v1469 = vunpack.c.h.b16 %v1459
      %v1470 = vunpack.c.l.b16 %v1460
      %v1471 = vunpack.c.h.b16 %v1460
      %v1472 = vunpack.c.l.b16 %v1461
      %v1473 = vunpack.c.h.b16 %v1461
      %v1474 = vpack.c.b16 %v1468, %v1466
      %v1475 = vpack.c.b16 %v1469, %v1467
      %v1476 = vpack.c.b16 %v1472, %v1470
      %v1477 = vpack.c.b16 %v1473, %v1471
      %v1483 = vsel %vm854, %v1456, 0
      %v1486 = vsel %vm854, %v1457, 0
      %1488 = vmatprep.subr.bf16.mxu0 %v1475
      %1489 = vmatpush1.bf16.msra.mxu0 %v1474
      %1490 = vmatprep.subr.bf16.mxu0 %v1477
      %1491 = vmatpush1.bf16.msra.mxu0 %v1476
      %1492 = vmatprep.subr.bf16.mxu0 0
      %1493 = vmatpush1.bf16.msra.mxu0 0
      %1494 = vmatprep.subr.bf16.mxu0 0
      %1495 = vmatpush1.bf16.msra.mxu0 0
      %1496 = vmatprep.subr.bf16.mxu0 0
      %1497 = vmatpush1.bf16.msra.mxu0 0
      %1498 = vmatprep.subr.bf16.mxu0 0
      %1499 = vmatpush1.bf16.msra.mxu0 0
      %1500 = vmatprep.subr.bf16.mxu0 0
      %1501 = vmatpush1.bf16.msra.mxu0 0
      %1502 = vmatprep.subr.bf16.mxu0 0
      %1503 = vmatpush1.bf16.msra.mxu0 0
      %1504 = vmatprep.subr.bf16.mxu0 0
      %1505 = vmatpush1.bf16.msra.mxu0 0
      %1506 = vmatprep.subr.bf16.mxu0 0
      %1507 = vmatpush1.bf16.msra.mxu0 0
      %1508 = vmatprep.subr.bf16.mxu0 0
      %1509 = vmatpush1.bf16.msra.mxu0 0
      %1510 = vmatprep.subr.bf16.mxu0 0
      %1511 = vmatpush1.bf16.msra.mxu0 0
      %1512 = vmatprep.subr.bf16.mxu0 0
      %1513 = vmatpush1.bf16.msra.mxu0 0
      %1514 = vmatprep.subr.bf16.mxu0 0
      %1515 = vmatpush1.bf16.msra.mxu0 0
      %1516 = vmatprep.subr.bf16.mxu0 0
      %1517 = vmatpush1.bf16.msra.mxu0 0
      %1518 = vmatprep.subr.bf16.mxu0 0
      %1519 = vmatpush1.bf16.msra.mxu0 0
      %1520 = vmatprep.mubr.bf16.mxu0 0
      %1521 = vmatmul.mubr.bf16.gmra.mrb[0].mxu0 %v1483
      %v1522 = vpop.f32.mrb[0].mxu0
      %v1523 = vadd.f32 0.0, %v1522
      %v1524 = vpop.f32.mrb[0].mxu0
      %v1525 = vadd.f32 0.0, %v1524
      %v1526 = vpop.f32.mrb[0].mxu0
      %v1527 = vadd.f32 0.0, %v1526
      %v1528 = vpop.f32.mrb[0].mxu0
      %v1529 = vadd.f32 0.0, %v1528
      %1530 = vmatprep.mubr.bf16.mxu0 0
      %1531 = vmatmul.mubr.bf16.gmra.mrb[0].mxu0 %v1486
      %v1532 = vpop.f32.mrb[0].mxu0
      %v1533 = vadd.f32 0.0, %v1532
      %v1534 = vpop.f32.mrb[0].mxu0
      %v1535 = vadd.f32 0.0, %v1534
      %v1536 = vpop.f32.mrb[0].mxu0
      %v1537 = vadd.f32 0.0, %v1536
      %v1538 = vpop.f32.mrb[0].mxu0
      %v1539 = vadd.f32 0.0, %v1538
      %1540 = vdwg.mxu0
      %v1541 = vadd.f32 %v1523, 1.0
      %v1542 = vadd.f32 %v1525, 1.0
      %v1543 = vadd.f32 %v1527, 1.0
      %v1544 = vadd.f32 %v1529, 1.0
      %v1545 = vadd.f32 %v1533, 1.0
      %v1546 = vadd.f32 %v1535, 1.0
      %v1547 = vadd.f32 %v1537, 1.0
      %v1548 = vadd.f32 %v1539, 1.0
      %v1549 = vmul.f32 %v293, %v1541
      %v1550 = vmul.f32 %v294, %v1542
      %v1551 = vmul.f32 %v295, %v1543
      %v1552 = vmul.f32 %v296, %v1544
      %v1553 = vmul.f32 %v297, %v1545
      %v1554 = vmul.f32 %v298, %v1546
      %v1555 = vmul.f32 %v299, %v1547
      %v1556 = vmul.f32 %v300, %v1548
      %v1557 = vpack.c.bf16 %v1551, %v1549
      %v1558 = vpack.c.bf16 %v1552, %v1550
      %v1559 = vpack.c.bf16 %v1555, %v1553
      %v1560 = vpack.c.bf16 %v1556, %v1554
      %v1561 = vpack.c.bf16 %v1527, %v1523
      %v1562 = vpack.c.bf16 %v1529, %v1525
      %v1563 = vpack.c.bf16 %v1537, %v1533
      %v1564 = vpack.c.bf16 %v1539, %v1535
      %1573 = vrot.lane.b32.xlu0 %v1557, 17
      %v1574 = vpop.permute.xlu0 %1573
      %1575 = vrot.lane.b32.xlu0 %v1558, 17
      %v1576 = vpop.permute.xlu0 %1575
      %1577 = vrot.lane.b32.xlu0 %v1559, 17
      %v1578 = vpop.permute.xlu0 %1577
      %1579 = vrot.lane.b32.xlu0 %v1560, 17
      %v1580 = vpop.permute.xlu0 %1579
      %1581 = vrot.lane.b32.xlu0 %v1561, 17
      %v1582 = vpop.permute.xlu0 %1581
      %1583 = vrot.lane.b32.xlu0 %v1562, 17
      %v1584 = vpop.permute.xlu0 %1583
      %1585 = vrot.lane.b32.xlu0 %v1563, 17
      %v1586 = vpop.permute.xlu0 %1585
      %1587 = vrot.lane.b32.xlu0 %v1564, 17
      %v1588 = vpop.permute.xlu0 %1587
      %vm1589 = vcmask 138240
      %v1590 = vsel %vm1589, %v1574, %v1576
      %v1591 = vsel %vm1589, %v1578, %v1580
      %v1592 = vsel %vm1589, %v1582, %v1584
      %v1593 = vsel %vm1589, %v1586, %v1588
      %v1599 = vsel %vm498, 0, %v1574
      %v1602 = vsel %vm498, 0, %v1578
      %v1605 = vsel %vm498, 0, %v1582
      %v1608 = vsel %vm498, 0, %v1586
      %v1611 = vsel %vm498, %v1576, 0
      %v1614 = vsel %vm498, %v1580, 0
      %v1617 = vsel %vm498, %v1584, 0
      %v1620 = vsel %vm498, %v1588, 0
      %v1622 = vlaneseq
      %v1623 = vand.u32 %v1622, 127
      %v1624 = vadd.s32 %v1623, 128
      %vm1625 = vcmp.lt.s32.totalorder %v1623, 0
      %v1626 = vsub.s32 0, %v1623
      %v1627 = vsel %vm1625, %v1626, %v1623
      %v1628 = vshrl.u32 %v1627, 4
      %v1629 = vand.u32 %v1627, 15
      %v1630 = vsub.s32 0, %v1629
      %v1631 = vsel %vm1625, %v1630, %v1629
      %vm1632 = vcmp.lt.s32.totalorder %v1624, 0
      %v1633 = vsub.s32 0, %v1624
      %v1634 = vsel %vm1632, %v1633, %v1624
      %v1635 = vshrl.u32 %v1634, 4
      %v1636 = vand.u32 %v1634, 15
      %v1637 = vsub.s32 0, %v1636
      %v1638 = vsel %vm1632, %v1637, %v1636
      %vm1639 = vcmp.gt.s32.totalorder %v1631, 0
      %vm1640 = vcmp.gt.s32.totalorder %v1638, 0
      %vm1641 = vcmp.lt.s32.totalorder %v1631, 15
      %vm1642 = vcmp.lt.s32.totalorder %v1638, 15
      %vm1643 = vmpackc.low %vm1640, %vm1639
      %v1644 = vsel %vm1643, 65537, 0
      %v1645 = vlaneseq
      %v1646 = vshrl.u32 %v1645, 7
      %v1647 = vsub.s32 0, %v1646
      %v1648 = vrot.slane %v1644, %v1647
      %v1649 = vlaneseq
      %v1650 = vshrl.u32 %v1649, 7
      %v1651 = vsub.s32 4, %v1650
      %v1652 = vrot.slane %v1644, %v1651
      %vm1653 = vcmp.ne.s16.totalorder %v1648, 0
      %vm1654 = vcmp.ne.s16.totalorder %v1652, 0
      %v1655 = vsel %vm1653, %v1599, 0
      %v1656 = vsel %vm1654, %v1590, 0
      %v1657 = vsel %vm1653, %v1602, 0
      %v1658 = vsel %vm1654, %v1591, 0
      %v1659 = vsel %vm1653, %v1605, 0
      %v1660 = vsel %vm1654, %v1592, 0
      %v1661 = vsel %vm1653, %v1608, 0
      %v1662 = vsel %vm1654, %v1593, 0
      %1663 = vst [vmem:[#allocation2] sm:$0xff] %v1655
      %1664 = vst [vmem:[#allocation2 + $0x8] sm:$0xff] %v1656
      %1665 = vst [vmem:[#allocation2 + $0x10] sm:$0xff] %v1657
      %1666 = vst [vmem:[#allocation2 + $0x18] sm:$0xff] %v1658
      %1667 = vst [vmem:[#allocation2 + $0x20] sm:$0xff] %v1659
      %1668 = vst [vmem:[#allocation2 + $0x28] sm:$0xff] %v1660
      %1669 = vst [vmem:[#allocation2 + $0x30] sm:$0xff] %v1661
      %1670 = vst [vmem:[#allocation2 + $0x38] sm:$0xff] %v1662
      %1679 = vrot.lane.b32.xlu0 %v1599, 127
      %v1680 = vpop.permute.xlu0 %1679
      %1681 = vrot.lane.b32.xlu0 %v1590, 127
      %v1682 = vpop.permute.xlu0 %1681
      %1683 = vrot.lane.b32.xlu0 %v1611, 127
      %v1684 = vpop.permute.xlu0 %1683
      %1685 = vrot.lane.b32.xlu0 %v1602, 127
      %v1686 = vpop.permute.xlu0 %1685
      %1687 = vrot.lane.b32.xlu0 %v1591, 127
      %v1688 = vpop.permute.xlu0 %1687
      %1689 = vrot.lane.b32.xlu0 %v1614, 127
      %v1690 = vpop.permute.xlu0 %1689
      %1691 = vrot.lane.b32.xlu0 %v1605, 127
      %v1692 = vpop.permute.xlu0 %1691
      %1693 = vrot.lane.b32.xlu0 %v1592, 127
      %v1694 = vpop.permute.xlu0 %1693
      %1695 = vrot.lane.b32.xlu0 %v1617, 127
      %v1696 = vpop.permute.xlu0 %1695
      %1697 = vrot.lane.b32.xlu0 %v1608, 127
      %v1698 = vpop.permute.xlu0 %1697
      %1699 = vrot.lane.b32.xlu0 %v1593, 127
      %v1700 = vpop.permute.xlu0 %1699
      %1701 = vrot.lane.b32.xlu0 %v1620, 127
      %v1702 = vpop.permute.xlu0 %1701
      %vm1703 = vcmask 1039360
      %v1704 = vsel %vm1703, %v1680, %v1682
      %v1705 = vsel %vm1703, %v1682, %v1684
      %v1706 = vsel %vm1703, %v1686, %v1688
      %v1707 = vsel %vm1703, %v1688, %v1690
      %v1708 = vsel %vm1703, %v1692, %v1694
      %v1709 = vsel %vm1703, %v1694, %v1696
      %v1710 = vsel %vm1703, %v1698, %v1700
      %v1711 = vsel %vm1703, %v1700, %v1702
      %1720 = vst [vmem:[#allocation2 + $0x40] sm:$0xff] %v1704
      %1721 = vst [vmem:[#allocation2 + $0x48] sm:$0xff] %v1705
      %1722 = vst [vmem:[#allocation2 + $0x50] sm:$0xff] %v1706
      %1723 = vst [vmem:[#allocation2 + $0x58] sm:$0xff] %v1707
      %1724 = vst [vmem:[#allocation2 + $0x60] sm:$0xff] %v1708
      %1725 = vst [vmem:[#allocation2 + $0x68] sm:$0xff] %v1709
      %1726 = vst [vmem:[#allocation2 + $0x70] sm:$0xff] %v1710
      %1727 = vst [vmem:[#allocation2 + $0x78] sm:$0xff] %v1711
      %vm1728 = vmpackc.low %vm1642, %vm1641
      %v1729 = vsel %vm1728, 65537, 0
      %v1730 = vlaneseq
      %v1731 = vshrl.u32 %v1730, 7
      %v1732 = vsub.s32 0, %v1731
      %v1733 = vrot.slane %v1729, %v1732
      %v1734 = vlaneseq
      %v1735 = vshrl.u32 %v1734, 7
      %v1736 = vsub.s32 4, %v1735
      %v1737 = vrot.slane %v1729, %v1736
      %1738 = vrot.lane.b32.xlu0 %v1733, 2
      %v1739 = vpop.permute.xlu0 %1738
      %1740 = vrot.lane.b32.xlu0 %v1737, 2
      %v1741 = vpop.permute.xlu0 %1740
      %vm1742 = vcmask 15360
      %v1743 = vsel %vm1742, %v1739, %v1741
      %vm1744 = vcmp.ne.s16.totalorder %v1739, 0
      %vm1745 = vcmp.ne.s16.totalorder %v1743, 0
      %vm1746 = vcmp.ne.s16.totalorder %v1741, 0
      %v1747 = vsel %vm1744, %v1599, 0
      %v1748 = vsel %vm1745, %v1590, 0
      %v1749 = vsel %vm1746, %v1611, 0
      %v1750 = vsel %vm1744, %v1602, 0
      %v1751 = vsel %vm1745, %v1591, 0
      %v1752 = vsel %vm1746, %v1614, 0
      %v1753 = vsel %vm1744, %v1605, 0
      %v1754 = vsel %vm1745, %v1592, 0
      %v1755 = vsel %vm1746, %v1617, 0
      %v1756 = vsel %vm1744, %v1608, 0
      %v1757 = vsel %vm1745, %v1593, 0
      %v1758 = vsel %vm1746, %v1620, 0
      %1771 = vrot.lane.b32.xlu0 %v1747, 126
      %v1772 = vpop.permute.xlu0 %1771
      %1773 = vrot.lane.b32.xlu0 %v1748, 126
      %v1774 = vpop.permute.xlu0 %1773
      %1775 = vrot.lane.b32.xlu0 %v1749, 126
      %v1776 = vpop.permute.xlu0 %1775
      %1777 = vrot.lane.b32.xlu0 %v1750, 126
      %v1778 = vpop.permute.xlu0 %1777
      %1779 = vrot.lane.b32.xlu0 %v1751, 126
      %v1780 = vpop.permute.xlu0 %1779
      %1781 = vrot.lane.b32.xlu0 %v1752, 126
      %v1782 = vpop.permute.xlu0 %1781
      %1783 = vrot.lane.b32.xlu0 %v1753, 126
      %v1784 = vpop.permute.xlu0 %1783
      %1785 = vrot.lane.b32.xlu0 %v1754, 126
      %v1786 = vpop.permute.xlu0 %1785
      %1787 = vrot.lane.b32.xlu0 %v1755, 126
      %v1788 = vpop.permute.xlu0 %1787
      %1789 = vrot.lane.b32.xlu0 %v1756, 126
      %v1790 = vpop.permute.xlu0 %1789
      %1791 = vrot.lane.b32.xlu0 %v1757, 126
      %v1792 = vpop.permute.xlu0 %1791
      %1793 = vrot.lane.b32.xlu0 %v1758, 126
      %v1794 = vpop.permute.xlu0 %1793
      %vm1795 = vcmask 1031168
      %v1796 = vsel %vm1795, %v1772, %v1774
      %v1797 = vsel %vm1795, %v1774, %v1776
      %v1798 = vsel %vm1795, %v1778, %v1780
      %v1799 = vsel %vm1795, %v1780, %v1782
      %v1800 = vsel %vm1795, %v1784, %v1786
      %v1801 = vsel %vm1795, %v1786, %v1788
      %v1802 = vsel %vm1795, %v1790, %v1792
      %v1803 = vsel %vm1795, %v1792, %v1794
      %1812 = vst [vmem:[#allocation2 + $0x80] sm:$0xff] %v1796
      %1813 = vst [vmem:[#allocation2 + $0x88] sm:$0xff] %v1797
      %1814 = vst [vmem:[#allocation2 + $0x90] sm:$0xff] %v1798
      %1815 = vst [vmem:[#allocation2 + $0x98] sm:$0xff] %v1799
      %1816 = vst [vmem:[#allocation2 + $0xa0] sm:$0xff] %v1800
      %1817 = vst [vmem:[#allocation2 + $0xa8] sm:$0xff] %v1801
      %1818 = vst [vmem:[#allocation2 + $0xb0] sm:$0xff] %v1802
      %1819 = vst [vmem:[#allocation2 + $0xb8] sm:$0xff] %v1803
      %1820 = vrot.lane.b32.xlu0 %v1648, 16
      %v1821 = vpop.permute.xlu0 %1820
      %1822 = vrot.lane.b32.xlu0 %v1652, 16
      %v1823 = vpop.permute.xlu0 %1822
      %vm1824 = vcmask 130048
      %v1825 = vsel %vm1824, %v1821, %v1823
      %vm1826 = vcmp.ne.s16.totalorder %v1821, 0
      %vm1827 = vcmp.ne.s16.totalorder %v1825, 0
      %vm1828 = vcmp.ne.s16.totalorder %v1823, 0
      %v1829 = vsel %vm1826, %v1599, 0
      %v1830 = vsel %vm1827, %v1590, 0
      %v1831 = vsel %vm1828, %v1611, 0
      %v1832 = vsel %vm1826, %v1602, 0
      %v1833 = vsel %vm1827, %v1591, 0
      %v1834 = vsel %vm1828, %v1614, 0
      %v1835 = vsel %vm1826, %v1605, 0
      %v1836 = vsel %vm1827, %v1592, 0
      %v1837 = vsel %vm1828, %v1617, 0
      %v1838 = vsel %vm1826, %v1608, 0
      %v1839 = vsel %vm1827, %v1593, 0
      %v1840 = vsel %vm1828, %v1620, 0
      %1853 = vrot.lane.b32.xlu0 %v1829, 112
      %v1854 = vpop.permute.xlu0 %1853
      %1855 = vrot.lane.b32.xlu0 %v1830, 112
      %v1856 = vpop.permute.xlu0 %1855
      %1857 = vrot.lane.b32.xlu0 %v1831, 112
      %v1858 = vpop.permute.xlu0 %1857
      %1859 = vrot.lane.b32.xlu0 %v1832, 112
      %v1860 = vpop.permute.xlu0 %1859
      %1861 = vrot.lane.b32.xlu0 %v1833, 112
      %v1862 = vpop.permute.xlu0 %1861
      %1863 = vrot.lane.b32.xlu0 %v1834, 112
      %v1864 = vpop.permute.xlu0 %1863
      %1865 = vrot.lane.b32.xlu0 %v1835, 112
      %v1866 = vpop.permute.xlu0 %1865
      %1867 = vrot.lane.b32.xlu0 %v1836, 112
      %v1868 = vpop.permute.xlu0 %1867
      %1869 = vrot.lane.b32.xlu0 %v1837, 112
      %v1870 = vpop.permute.xlu0 %1869
      %1871 = vrot.lane.b32.xlu0 %v1838, 112
      %v1872 = vpop.permute.xlu0 %1871
      %1873 = vrot.lane.b32.xlu0 %v1839, 112
      %v1874 = vpop.permute.xlu0 %1873
      %1875 = vrot.lane.b32.xlu0 %v1840, 112
      %v1876 = vpop.permute.xlu0 %1875
      %vm1877 = vcmask 916480
      %v1878 = vsel %vm1877, %v1854, %v1856
      %v1879 = vsel %vm1877, %v1856, %v1858
      %v1880 = vsel %vm1877, %v1860, %v1862
      %v1881 = vsel %vm1877, %v1862, %v1864
      %v1882 = vsel %vm1877, %v1866, %v1868
      %v1883 = vsel %vm1877, %v1868, %v1870
      %v1884 = vsel %vm1877, %v1872, %v1874
      %v1885 = vsel %vm1877, %v1874, %v1876
      %1894 = vst [vmem:[#allocation2 + $0xc0] sm:$0xff] %v1878
      %1895 = vst [vmem:[#allocation2 + $0xc8] sm:$0xff] %v1879
      %1896 = vst [vmem:[#allocation2 + $0xd0] sm:$0xff] %v1880
      %1897 = vst [vmem:[#allocation2 + $0xd8] sm:$0xff] %v1881
      %1898 = vst [vmem:[#allocation2 + $0xe0] sm:$0xff] %v1882
      %1899 = vst [vmem:[#allocation2 + $0xe8] sm:$0xff] %v1883
      %1900 = vst [vmem:[#allocation2 + $0xf0] sm:$0xff] %v1884
      %1901 = vst [vmem:[#allocation2 + $0xf8] sm:$0xff] %v1885
      %1902 = vrot.lane.b32.xlu0 %v1599, 111
      %v1903 = vpop.permute.xlu0 %1902
      %1904 = vrot.lane.b32.xlu0 %v1590, 111
      %v1905 = vpop.permute.xlu0 %1904
      %1906 = vrot.lane.b32.xlu0 %v1611, 111
      %v1907 = vpop.permute.xlu0 %1906
      %1908 = vrot.lane.b32.xlu0 %v1602, 111
      %v1909 = vpop.permute.xlu0 %1908
      %1910 = vrot.lane.b32.xlu0 %v1591, 111
      %v1911 = vpop.permute.xlu0 %1910
      %1912 = vrot.lane.b32.xlu0 %v1614, 111
      %v1913 = vpop.permute.xlu0 %1912
      %1914 = vrot.lane.b32.xlu0 %v1605, 111
      %v1915 = vpop.permute.xlu0 %1914
      %1916 = vrot.lane.b32.xlu0 %v1592, 111
      %v1917 = vpop.permute.xlu0 %1916
      %1918 = vrot.lane.b32.xlu0 %v1617, 111
      %v1919 = vpop.permute.xlu0 %1918
      %1920 = vrot.lane.b32.xlu0 %v1608, 111
      %v1921 = vpop.permute.xlu0 %1920
      %1922 = vrot.lane.b32.xlu0 %v1593, 111
      %v1923 = vpop.permute.xlu0 %1922
      %1924 = vrot.lane.b32.xlu0 %v1620, 111
      %v1925 = vpop.permute.xlu0 %1924
      %vm1926 = vcmask 908288
      %v1927 = vsel %vm1926, %v1903, %v1905
      %v1928 = vsel %vm1926, %v1905, %v1907
      %v1929 = vsel %vm1926, %v1909, %v1911
      %v1930 = vsel %vm1926, %v1911, %v1913
      %v1931 = vsel %vm1926, %v1915, %v1917
      %v1932 = vsel %vm1926, %v1917, %v1919
      %v1933 = vsel %vm1926, %v1921, %v1923
      %v1934 = vsel %vm1926, %v1923, %v1925
      %1943 = vst [vmem:[#allocation2 + $0x100] sm:$0xff] %v1927
      %1944 = vst [vmem:[#allocation2 + $0x108] sm:$0xff] %v1928
      %1945 = vst [vmem:[#allocation2 + $0x110] sm:$0xff] %v1929
      %1946 = vst [vmem:[#allocation2 + $0x118] sm:$0xff] %v1930
      %1947 = vst [vmem:[#allocation2 + $0x120] sm:$0xff] %v1931
      %1948 = vst [vmem:[#allocation2 + $0x128] sm:$0xff] %v1932
      %1949 = vst [vmem:[#allocation2 + $0x130] sm:$0xff] %v1933
      %1950 = vst [vmem:[#allocation2 + $0x138] sm:$0xff] %v1934
      %1951 = vrot.lane.b32.xlu0 %v1733, 18
      %v1952 = vpop.permute.xlu0 %1951
      %1953 = vrot.lane.b32.xlu0 %v1737, 18
      %v1954 = vpop.permute.xlu0 %1953
      %vm1955 = vcmask 146432
      %v1956 = vsel %vm1955, %v1952, %v1954
      %vm1957 = vcmp.ne.s16.totalorder %v1952, 0
      %vm1958 = vcmp.ne.s16.totalorder %v1956, 0
      %vm1959 = vcmp.ne.s16.totalorder %v1954, 0
      %v1960 = vsel %vm1957, %v1599, 0
      %v1961 = vsel %vm1958, %v1590, 0
      %v1962 = vsel %vm1959, %v1611, 0
      %v1963 = vsel %vm1957, %v1602, 0
      %v1964 = vsel %vm1958, %v1591, 0
      %v1965 = vsel %vm1959, %v1614, 0
      %v1966 = vsel %vm1957, %v1605, 0
      %v1967 = vsel %vm1958, %v1592, 0
      %v1968 = vsel %vm1959, %v1617, 0
      %v1969 = vsel %vm1957, %v1608, 0
      %v1970 = vsel %vm1958, %v1593, 0
      %v1971 = vsel %vm1959, %v1620, 0
      %1984 = vrot.lane.b32.xlu0 %v1960, 110
      %v1985 = vpop.permute.xlu0 %1984
      %1986 = vrot.lane.b32.xlu0 %v1961, 110
      %v1987 = vpop.permute.xlu0 %1986
      %1988 = vrot.lane.b32.xlu0 %v1962, 110
      %v1989 = vpop.permute.xlu0 %1988
      %1990 = vrot.lane.b32.xlu0 %v1963, 110
      %v1991 = vpop.permute.xlu0 %1990
      %1992 = vrot.lane.b32.xlu0 %v1964, 110
      %v1993 = vpop.permute.xlu0 %1992
      %1994 = vrot.lane.b32.xlu0 %v1965, 110
      %v1995 = vpop.permute.xlu0 %1994
      %1996 = vrot.lane.b32.xlu0 %v1966, 110
      %v1997 = vpop.permute.xlu0 %1996
      %1998 = vrot.lane.b32.xlu0 %v1967, 110
      %v1999 = vpop.permute.xlu0 %1998
      %2000 = vrot.lane.b32.xlu0 %v1968, 110
      %v2001 = vpop.permute.xlu0 %2000
      %2002 = vrot.lane.b32.xlu0 %v1969, 110
      %v2003 = vpop.permute.xlu0 %2002
      %2004 = vrot.lane.b32.xlu0 %v1970, 110
      %v2005 = vpop.permute.xlu0 %2004
      %2006 = vrot.lane.b32.xlu0 %v1971, 110
      %v2007 = vpop.permute.xlu0 %2006
      %vm2008 = vcmask 900096
      %v2009 = vsel %vm2008, %v1985, %v1987
      %v2010 = vsel %vm2008, %v1987, %v1989
      %v2011 = vsel %vm2008, %v1991, %v1993
      %v2012 = vsel %vm2008, %v1993, %v1995
      %v2013 = vsel %vm2008, %v1997, %v1999
      %v2014 = vsel %vm2008, %v1999, %v2001
      %v2015 = vsel %vm2008, %v2003, %v2005
      %v2016 = vsel %vm2008, %v2005, %v2007
      %2025 = vst [vmem:[#allocation2 + $0x140] sm:$0xff] %v2009
      %2026 = vst [vmem:[#allocation2 + $0x148] sm:$0xff] %v2010
      %2027 = vst [vmem:[#allocation2 + $0x150] sm:$0xff] %v2011
      %2028 = vst [vmem:[#allocation2 + $0x158] sm:$0xff] %v2012
      %2029 = vst [vmem:[#allocation2 + $0x160] sm:$0xff] %v2013
      %2030 = vst [vmem:[#allocation2 + $0x168] sm:$0xff] %v2014
      %2031 = vst [vmem:[#allocation2 + $0x170] sm:$0xff] %v2015
      %2032 = vst [vmem:[#allocation2 + $0x178] sm:$0xff] %v2016
      %2033 = vrot.lane.b32.xlu0 %v1648, 32
      %v2034 = vpop.permute.xlu0 %2033
      %2035 = vrot.lane.b32.xlu0 %v1652, 32
      %v2036 = vpop.permute.xlu0 %2035
      %vm2037 = vcmask 261120
      %v2038 = vsel %vm2037, %v2034, %v2036
      %vm2039 = vcmp.ne.s16.totalorder %v2034, 0
      %vm2040 = vcmp.ne.s16.totalorder %v2038, 0
      %vm2041 = vcmp.ne.s16.totalorder %v2036, 0
      %v2042 = vsel %vm2039, %v1599, 0
      %v2043 = vsel %vm2040, %v1590, 0
      %v2044 = vsel %vm2041, %v1611, 0
      %v2045 = vsel %vm2039, %v1602, 0
      %v2046 = vsel %vm2040, %v1591, 0
      %v2047 = vsel %vm2041, %v1614, 0
      %v2048 = vsel %vm2039, %v1605, 0
      %v2049 = vsel %vm2040, %v1592, 0
      %v2050 = vsel %vm2041, %v1617, 0
      %v2051 = vsel %vm2039, %v1608, 0
      %v2052 = vsel %vm2040, %v1593, 0
      %v2053 = vsel %vm2041, %v1620, 0
      %2066 = vrot.lane.b32.xlu0 %v2042, 96
      %v2067 = vpop.permute.xlu0 %2066
      %2068 = vrot.lane.b32.xlu0 %v2043, 96
      %v2069 = vpop.permute.xlu0 %2068
      %2070 = vrot.lane.b32.xlu0 %v2044, 96
      %v2071 = vpop.permute.xlu0 %2070
      %2072 = vrot.lane.b32.xlu0 %v2045, 96
      %v2073 = vpop.permute.xlu0 %2072
      %2074 = vrot.lane.b32.xlu0 %v2046, 96
      %v2075 = vpop.permute.xlu0 %2074
      %2076 = vrot.lane.b32.xlu0 %v2047, 96
      %v2077 = vpop.permute.xlu0 %2076
      %2078 = vrot.lane.b32.xlu0 %v2048, 96
      %v2079 = vpop.permute.xlu0 %2078
      %2080 = vrot.lane.b32.xlu0 %v2049, 96
      %v2081 = vpop.permute.xlu0 %2080
      %2082 = vrot.lane.b32.xlu0 %v2050, 96
      %v2083 = vpop.permute.xlu0 %2082
      %2084 = vrot.lane.b32.xlu0 %v2051, 96
      %v2085 = vpop.permute.xlu0 %2084
      %2086 = vrot.lane.b32.xlu0 %v2052, 96
      %v2087 = vpop.permute.xlu0 %2086
      %2088 = vrot.lane.b32.xlu0 %v2053, 96
      %v2089 = vpop.permute.xlu0 %2088
      %vm2090 = vcmask 785408
      %v2091 = vsel %vm2090, %v2067, %v2069
      %v2092 = vsel %vm2090, %v2069, %v2071
      %v2093 = vsel %vm2090, %v2073, %v2075
      %v2094 = vsel %vm2090, %v2075, %v2077
      %v2095 = vsel %vm2090, %v2079, %v2081
      %v2096 = vsel %vm2090, %v2081, %v2083
      %v2097 = vsel %vm2090, %v2085, %v2087
      %v2098 = vsel %vm2090, %v2087, %v2089
      %2107 = vst [vmem:[#allocation2 + $0x180] sm:$0xff] %v2091
      %2108 = vst [vmem:[#allocation2 + $0x188] sm:$0xff] %v2092
      %2109 = vst [vmem:[#allocation2 + $0x190] sm:$0xff] %v2093
      %2110 = vst [vmem:[#allocation2 + $0x198] sm:$0xff] %v2094
      %2111 = vst [vmem:[#allocation2 + $0x1a0] sm:$0xff] %v2095
      %2112 = vst [vmem:[#allocation2 + $0x1a8] sm:$0xff] %v2096
      %2113 = vst [vmem:[#allocation2 + $0x1b0] sm:$0xff] %v2097
      %2114 = vst [vmem:[#allocation2 + $0x1b8] sm:$0xff] %v2098
      %2115 = vrot.lane.b32.xlu0 %v1599, 95
      %v2116 = vpop.permute.xlu0 %2115
      %2117 = vrot.lane.b32.xlu0 %v1590, 95
      %v2118 = vpop.permute.xlu0 %2117
      %2119 = vrot.lane.b32.xlu0 %v1611, 95
      %v2120 = vpop.permute.xlu0 %2119
      %2121 = vrot.lane.b32.xlu0 %v1602, 95
      %v2122 = vpop.permute.xlu0 %2121
      %2123 = vrot.lane.b32.xlu0 %v1591, 95
      %v2124 = vpop.permute.xlu0 %2123
      %2125 = vrot.lane.b32.xlu0 %v1614, 95
      %v2126 = vpop.permute.xlu0 %2125
      %2127 = vrot.lane.b32.xlu0 %v1605, 95
      %v2128 = vpop.permute.xlu0 %2127
      %2129 = vrot.lane.b32.xlu0 %v1592, 95
      %v2130 = vpop.permute.xlu0 %2129
      %2131 = vrot.lane.b32.xlu0 %v1617, 95
      %v2132 = vpop.permute.xlu0 %2131
      %2133 = vrot.lane.b32.xlu0 %v1608, 95
      %v2134 = vpop.permute.xlu0 %2133
      %2135 = vrot.lane.b32.xlu0 %v1593, 95
      %v2136 = vpop.permute.xlu0 %2135
      %2137 = vrot.lane.b32.xlu0 %v1620, 95
      %v2138 = vpop.permute.xlu0 %2137
      %vm2139 = vcmask 777216
      %v2140 = vsel %vm2139, %v2116, %v2118
      %v2141 = vsel %vm2139, %v2118, %v2120
      %v2142 = vsel %vm2139, %v2122, %v2124
      %v2143 = vsel %vm2139, %v2124, %v2126
      %v2144 = vsel %vm2139, %v2128, %v2130
      %v2145 = vsel %vm2139, %v2130, %v2132
      %v2146 = vsel %vm2139, %v2134, %v2136
      %v2147 = vsel %vm2139, %v2136, %v2138
      %2156 = vst [vmem:[#allocation2 + $0x1c0] sm:$0xff] %v2140
      %2157 = vst [vmem:[#allocation2 + $0x1c8] sm:$0xff] %v2141
      %2158 = vst [vmem:[#allocation2 + $0x1d0] sm:$0xff] %v2142
      %2159 = vst [vmem:[#allocation2 + $0x1d8] sm:$0xff] %v2143
      %2160 = vst [vmem:[#allocation2 + $0x1e0] sm:$0xff] %v2144
      %2161 = vst [vmem:[#allocation2 + $0x1e8] sm:$0xff] %v2145
      %2162 = vst [vmem:[#allocation2 + $0x1f0] sm:$0xff] %v2146
      %2163 = vst [vmem:[#allocation2 + $0x1f8] sm:$0xff] %v2147
      %2164 = vrot.lane.b32.xlu0 %v1733, 34
      %v2165 = vpop.permute.xlu0 %2164
      %2166 = vrot.lane.b32.xlu0 %v1737, 34
      %v2167 = vpop.permute.xlu0 %2166
      %vm2168 = vcmask 277504
      %v2169 = vsel %vm2168, %v2165, %v2167
      %vm2170 = vcmp.ne.s16.totalorder %v2165, 0
      %vm2171 = vcmp.ne.s16.totalorder %v2169, 0
      %vm2172 = vcmp.ne.s16.totalorder %v2167, 0
      %v2173 = vsel %vm2170, %v1599, 0
      %v2174 = vsel %vm2171, %v1590, 0
      %v2175 = vsel %vm2172, %v1611, 0
      %v2176 = vsel %vm2170, %v1602, 0
      %v2177 = vsel %vm2171, %v1591, 0
      %v2178 = vsel %vm2172, %v1614, 0
      %v2179 = vsel %vm2170, %v1605, 0
      %v2180 = vsel %vm2171, %v1592, 0
      %v2181 = vsel %vm2172, %v1617, 0
      %v2182 = vsel %vm2170, %v1608, 0
      %v2183 = vsel %vm2171, %v1593, 0
      %v2184 = vsel %vm2172, %v1620, 0
      %2197 = vrot.lane.b32.xlu0 %v2173, 94
      %v2198 = vpop.permute.xlu0 %2197
      %2199 = vrot.lane.b32.xlu0 %v2174, 94
      %v2200 = vpop.permute.xlu0 %2199
      %2201 = vrot.lane.b32.xlu0 %v2175, 94
      %v2202 = vpop.permute.xlu0 %2201
      %2203 = vrot.lane.b32.xlu0 %v2176, 94
      %v2204 = vpop.permute.xlu0 %2203
      %2205 = vrot.lane.b32.xlu0 %v2177, 94
      %v2206 = vpop.permute.xlu0 %2205
      %2207 = vrot.lane.b32.xlu0 %v2178, 94
      %v2208 = vpop.permute.xlu0 %2207
      %2209 = vrot.lane.b32.xlu0 %v2179, 94
      %v2210 = vpop.permute.xlu0 %2209
      %2211 = vrot.lane.b32.xlu0 %v2180, 94
      %v2212 = vpop.permute.xlu0 %2211
      %2213 = vrot.lane.b32.xlu0 %v2181, 94
      %v2214 = vpop.permute.xlu0 %2213
      %2215 = vrot.lane.b32.xlu0 %v2182, 94
      %v2216 = vpop.permute.xlu0 %2215
      %2217 = vrot.lane.b32.xlu0 %v2183, 94
      %v2218 = vpop.permute.xlu0 %2217
      %2219 = vrot.lane.b32.xlu0 %v2184, 94
      %v2220 = vpop.permute.xlu0 %2219
      %vm2221 = vcmask 769024
      %v2222 = vsel %vm2221, %v2198, %v2200
      %v2223 = vsel %vm2221, %v2200, %v2202
      %v2224 = vsel %vm2221, %v2204, %v2206
      %v2225 = vsel %vm2221, %v2206, %v2208
      %v2226 = vsel %vm2221, %v2210, %v2212
      %v2227 = vsel %vm2221, %v2212, %v2214
      %v2228 = vsel %vm2221, %v2216, %v2218
      %v2229 = vsel %vm2221, %v2218, %v2220
      %2238 = vst [vmem:[#allocation2 + $0x200] sm:$0xff] %v2222
      %2239 = vst [vmem:[#allocation2 + $0x208] sm:$0xff] %v2223
      %2240 = vst [vmem:[#allocation2 + $0x210] sm:$0xff] %v2224
      %2241 = vst [vmem:[#allocation2 + $0x218] sm:$0xff] %v2225
      %2242 = vst [vmem:[#allocation2 + $0x220] sm:$0xff] %v2226
      %2243 = vst [vmem:[#allocation2 + $0x228] sm:$0xff] %v2227
      %2244 = vst [vmem:[#allocation2 + $0x230] sm:$0xff] %v2228
      %2245 = vst [vmem:[#allocation2 + $0x238] sm:$0xff] %v2229
      %v2246 = vld [vmem:[%s4] sm:$0xff]
      %v2247 = vld [vmem:[%s4 + $0x8] sm:$0xff]
      %v2248 = vld [vmem:[%s4 + $0x10] sm:$0xf]
      %v2249 = vld [vmem:[%s4 + $0x14] sm:$0xff]
      %v2250 = vld [vmem:[%s4 + $0x1c] sm:$0xff]
      %v2251 = vld [vmem:[%s4 + $0x24] sm:$0xf]
      %v2252 = vld [vmem:[%s4 + $0x28] sm:$0xff]
      %v2253 = vld [vmem:[%s4 + $0x30] sm:$0xff]
      %v2254 = vld [vmem:[%s4 + $0x38] sm:$0xf]
      %v2255 = vld [vmem:[%s4 + $0x3c] sm:$0xff]
      %v2256 = vld [vmem:[%s4 + $0x44] sm:$0xff]
      %v2257 = vld [vmem:[%s4 + $0x4c] sm:$0xf]
      %v2258 = vld [vmem:[#allocation2] sm:$0xff]
      %v2259 = vld [vmem:[#allocation2 + $0x8] sm:$0xff]
      %v2260 = vld [vmem:[#allocation2 + $0x10] sm:$0xff]
      %v2261 = vld [vmem:[#allocation2 + $0x18] sm:$0xff]
      %v2262 = vld [vmem:[#allocation2 + $0x20] sm:$0xff]
      %v2263 = vld [vmem:[#allocation2 + $0x28] sm:$0xff]
      %v2264 = vld [vmem:[#allocation2 + $0x30] sm:$0xff]
      %v2265 = vld [vmem:[#allocation2 + $0x38] sm:$0xff]
      %v2266 = vld [vmem:[#allocation2 + $0x40] sm:$0xff]
      %v2267 = vld [vmem:[#allocation2 + $0x48] sm:$0xff]
      %v2268 = vld [vmem:[#allocation2 + $0x50] sm:$0xff]
      %v2269 = vld [vmem:[#allocation2 + $0x58] sm:$0xff]
      %v2270 = vld [vmem:[#allocation2 + $0x60] sm:$0xff]
      %v2271 = vld [vmem:[#allocation2 + $0x68] sm:$0xff]
      %v2272 = vld [vmem:[#allocation2 + $0x70] sm:$0xff]
      %v2273 = vld [vmem:[#allocation2 + $0x78] sm:$0xff]
      %v2274 = vld [vmem:[#allocation2 + $0x80] sm:$0xff]
      %v2275 = vld [vmem:[#allocation2 + $0x88] sm:$0xff]
      %v2276 = vld [vmem:[#allocation2 + $0x90] sm:$0xff]
      %v2277 = vld [vmem:[#allocation2 + $0x98] sm:$0xff]
      %v2278 = vld [vmem:[#allocation2 + $0xa0] sm:$0xff]
      %v2279 = vld [vmem:[#allocation2 + $0xa8] sm:$0xff]
      %v2280 = vld [vmem:[#allocation2 + $0xb0] sm:$0xff]
      %v2281 = vld [vmem:[#allocation2 + $0xb8] sm:$0xff]
      %v2282 = vld [vmem:[#allocation2 + $0xc0] sm:$0xff]
      %v2283 = vld [vmem:[#allocation2 + $0xc8] sm:$0xff]
      %v2284 = vld [vmem:[#allocation2 + $0xd0] sm:$0xff]
      %v2285 = vld [vmem:[#allocation2 + $0xd8] sm:$0xff]
      %v2286 = vld [vmem:[#allocation2 + $0xe0] sm:$0xff]
      %v2287 = vld [vmem:[#allocation2 + $0xe8] sm:$0xff]
      %v2288 = vld [vmem:[#allocation2 + $0xf0] sm:$0xff]
      %v2289 = vld [vmem:[#allocation2 + $0xf8] sm:$0xff]
      %v2290 = vld [vmem:[#allocation2 + $0x100] sm:$0xff]
      %v2291 = vld [vmem:[#allocation2 + $0x108] sm:$0xff]
      %v2292 = vld [vmem:[#allocation2 + $0x110] sm:$0xff]
      %v2293 = vld [vmem:[#allocation2 + $0x118] sm:$0xff]
      %v2294 = vld [vmem:[#allocation2 + $0x120] sm:$0xff]
      %v2295 = vld [vmem:[#allocation2 + $0x128] sm:$0xff]
      %v2296 = vld [vmem:[#allocation2 + $0x130] sm:$0xff]
      %v2297 = vld [vmem:[#allocation2 + $0x138] sm:$0xff]
      %v2298 = vld [vmem:[#allocation2 + $0x140] sm:$0xff]
      %v2299 = vld [vmem:[#allocation2 + $0x148] sm:$0xff]
      %v2300 = vld [vmem:[#allocation2 + $0x150] sm:$0xff]
      %v2301 = vld [vmem:[#allocation2 + $0x158] sm:$0xff]
      %v2302 = vld [vmem:[#allocation2 + $0x160] sm:$0xff]
      %v2303 = vld [vmem:[#allocation2 + $0x168] sm:$0xff]
      %v2304 = vld [vmem:[#allocation2 + $0x170] sm:$0xff]
      %v2305 = vld [vmem:[#allocation2 + $0x178] sm:$0xff]
      %v2306 = vld [vmem:[#allocation2 + $0x180] sm:$0xff]
      %v2307 = vld [vmem:[#allocation2 + $0x188] sm:$0xff]
      %v2308 = vld [vmem:[#allocation2 + $0x190] sm:$0xff]
      %v2309 = vld [vmem:[#allocation2 + $0x198] sm:$0xff]
      %v2310 = vld [vmem:[#allocation2 + $0x1a0] sm:$0xff]
      %v2311 = vld [vmem:[#allocation2 + $0x1a8] sm:$0xff]
      %v2312 = vld [vmem:[#allocation2 + $0x1b0] sm:$0xff]
      %v2313 = vld [vmem:[#allocation2 + $0x1b8] sm:$0xff]
      %v2314 = vld [vmem:[#allocation2 + $0x1c0] sm:$0xff]
      %v2315 = vld [vmem:[#allocation2 + $0x1c8] sm:$0xff]
      %v2316 = vld [vmem:[#allocation2 + $0x1d0] sm:$0xff]
      %v2317 = vld [vmem:[#allocation2 + $0x1d8] sm:$0xff]
      %v2318 = vld [vmem:[#allocation2 + $0x1e0] sm:$0xff]
      %v2319 = vld [vmem:[#allocation2 + $0x1e8] sm:$0xff]
      %v2320 = vld [vmem:[#allocation2 + $0x1f0] sm:$0xff]
      %v2321 = vld [vmem:[#allocation2 + $0x1f8] sm:$0xff]
      %v2322 = vld [vmem:[#allocation2 + $0x200] sm:$0xff]
      %v2323 = vld [vmem:[#allocation2 + $0x208] sm:$0xff]
      %v2324 = vld [vmem:[#allocation2 + $0x210] sm:$0xff]
      %v2325 = vld [vmem:[#allocation2 + $0x218] sm:$0xff]
      %v2326 = vld [vmem:[#allocation2 + $0x220] sm:$0xff]
      %v2327 = vld [vmem:[#allocation2 + $0x228] sm:$0xff]
      %v2328 = vld [vmem:[#allocation2 + $0x230] sm:$0xff]
      %v2329 = vld [vmem:[#allocation2 + $0x238] sm:$0xff]
      %v2330 = vld [vmem:[%s5 + $0xd0] sm:$0xff]
      %v2331 = vld [vmem:[%s5 + $0xd8] sm:$0xff]
      %v2332 = vld [vmem:[%s5 + $0xe0] sm:$0xff]
      %v2333 = vld [vmem:[%s5 + $0xe8] sm:$0xff]
      %2335 = vset.pattern.permute.xlu0 0
      %2336 = vperm.xlu0 %2335, %v2330
      %v2337 = vpop.permute.xlu0 %2336
      %2340 = vset.pattern.permute.xlu0 0
      %2341 = vperm.xlu0 %2340, %v2331
      %v2342 = vpop.permute.xlu0 %2341
      %2345 = vset.pattern.permute.xlu0 0
      %2346 = vperm.xlu0 %2345, %v2332
      %v2347 = vpop.permute.xlu0 %2346
      %2350 = vset.pattern.permute.xlu0 0
      %2351 = vperm.xlu0 %2350, %v2333
      %v2352 = vpop.permute.xlu0 %2351
      %v2366 = vunpack.c.l.b16 %v2246
      %v2367 = vunpack.c.h.b16 %v2246
      %v2368 = vunpack.c.l.b16 %v2247
      %v2369 = vunpack.c.h.b16 %v2247
      %v2370 = vunpack.c.l.b16 %v2248
      %v2371 = vunpack.c.l.b16 %v2249
      %v2372 = vunpack.c.h.b16 %v2249
      %v2373 = vunpack.c.l.b16 %v2250
      %v2374 = vunpack.c.h.b16 %v2250
      %v2375 = vunpack.c.l.b16 %v2251
      %v2376 = vunpack.c.l.b16 %v2252
      %v2377 = vunpack.c.h.b16 %v2252
      %v2378 = vunpack.c.l.b16 %v2253
      %v2379 = vunpack.c.h.b16 %v2253
      %v2380 = vunpack.c.l.b16 %v2254
      %v2381 = vunpack.c.l.b16 %v2255
      %v2382 = vunpack.c.h.b16 %v2255
      %v2383 = vunpack.c.l.b16 %v2256
      %v2384 = vunpack.c.h.b16 %v2256
      %v2385 = vunpack.c.l.b16 %v2257
      %v2386 = vpack.c.b16 %v2371, %v2366
      %v2387 = vpack.c.b16 %v2372, %v2367
      %v2388 = vpack.c.b16 %v2373, %v2368
      %v2389 = vpack.c.b16 %v2374, %v2369
      %v2390 = vpack.c.b16 %v2375, %v2370
      %v2391 = vpack.c.b16 %v2381, %v2376
      %v2392 = vpack.c.b16 %v2382, %v2377
      %v2393 = vpack.c.b16 %v2383, %v2378
      %v2394 = vpack.c.b16 %v2384, %v2379
      %v2395 = vpack.c.b16 %v2385, %v2380
      %vm2404 = vcmask 523264
      %v2406 = vsel %vm2404, %v2390, 0
      %v2409 = vsel %vm2404, %v2395, 0
      %2411 = vmatprep.subr.bf16.mxu0 %v2259
      %2412 = vmatpush1.bf16.msra.mxu0 %v2258
      %2413 = vmatprep.subr.bf16.mxu0 %v2261
      %2414 = vmatpush1.bf16.msra.mxu0 %v2260
      %2415 = vmatprep.subr.bf16.mxu0 %v2263
      %2416 = vmatpush1.bf16.msra.mxu0 %v2262
      %2417 = vmatprep.subr.bf16.mxu0 %v2265
      %2418 = vmatpush1.bf16.msra.mxu0 %v2264
      %2419 = vmatprep.subr.bf16.mxu0 %v2267
      %2420 = vmatpush1.bf16.msra.mxu0 %v2266
      %2421 = vmatprep.subr.bf16.mxu0 %v2269
      %2422 = vmatpush1.bf16.msra.mxu0 %v2268
      %2423 = vmatprep.subr.bf16.mxu0 %v2271
      %2424 = vmatpush1.bf16.msra.mxu0 %v2270
      %2425 = vmatprep.subr.bf16.mxu0 %v2273
      %2426 = vmatpush1.bf16.msra.mxu0 %v2272
      %2427 = vmatprep.subr.bf16.mxu0 %v2275
      %2428 = vmatpush1.bf16.msra.mxu0 %v2274
      %2429 = vmatprep.subr.bf16.mxu0 %v2277
      %2430 = vmatpush1.bf16.msra.mxu0 %v2276
      %2431 = vmatprep.subr.bf16.mxu0 %v2279
      %2432 = vmatpush1.bf16.msra.mxu0 %v2278
      %2433 = vmatprep.subr.bf16.mxu0 %v2281
      %2434 = vmatpush1.bf16.msra.mxu0 %v2280
      %2435 = vmatprep.subr.bf16.mxu0 %v2283
      %2436 = vmatpush1.bf16.msra.mxu0 %v2282
      %2437 = vmatprep.subr.bf16.mxu0 %v2285
      %2438 = vmatpush1.bf16.msra.mxu0 %v2284
      %2439 = vmatprep.subr.bf16.mxu0 %v2287
      %2440 = vmatpush1.bf16.msra.mxu0 %v2286
      %2441 = vmatprep.subr.bf16.mxu0 %v2289
      %2442 = vmatpush1.bf16.msra.mxu0 %v2288
      %2443 = vmatprep.mubr.bf16.mxu0 %v2387
      %2444 = vmatmul.mubr.bf16.gmra.mrb[0].mxu0 %v2386
      %v2445 = vpop.f32.mrb[0].mxu0
      %v2446 = vadd.f32 %v2337, %v2445
      %v2447 = vpop.f32.mrb[0].mxu0
      %v2448 = vadd.f32 %v2337, %v2447
      %v2449 = vpop.f32.mrb[0].mxu0
      %v2450 = vadd.f32 %v2342, %v2449
      %v2451 = vpop.f32.mrb[0].mxu0
      %v2452 = vadd.f32 %v2342, %v2451
      %2453 = vmatprep.mubr.bf16.mxu0 %v2392
      %2454 = vmatmul.mubr.bf16.gmra.mrb[0].mxu0 %v2391
      %v2455 = vpop.f32.mrb[0].mxu0
      %v2456 = vadd.f32 %v2347, %v2455
      %v2457 = vpop.f32.mrb[0].mxu0
      %v2458 = vadd.f32 %v2347, %v2457
      %v2459 = vpop.f32.mrb[0].mxu0
      %v2460 = vadd.f32 %v2352, %v2459
      %v2461 = vpop.f32.mrb[0].mxu0
      %v2462 = vadd.f32 %v2352, %v2461
      %2463 = vdwg.mxu0
      %2464 = vmatprep.subr.bf16.mxu0 %v2291
      %2465 = vmatpush1.bf16.msra.mxu0 %v2290
      %2466 = vmatprep.subr.bf16.mxu0 %v2293
      %2467 = vmatpush1.bf16.msra.mxu0 %v2292
      %2468 = vmatprep.subr.bf16.mxu0 %v2295
      %2469 = vmatpush1.bf16.msra.mxu0 %v2294
      %2470 = vmatprep.subr.bf16.mxu0 %v2297
      %2471 = vmatpush1.bf16.msra.mxu0 %v2296
      %2472 = vmatprep.subr.bf16.mxu0 %v2299
      %2473 = vmatpush1.bf16.msra.mxu0 %v2298
      %2474 = vmatprep.subr.bf16.mxu0 %v2301
      %2475 = vmatpush1.bf16.msra.mxu0 %v2300
      %2476 = vmatprep.subr.bf16.mxu0 %v2303
      %2477 = vmatpush1.bf16.msra.mxu0 %v2302
      %2478 = vmatprep.subr.bf16.mxu0 %v2305
      %2479 = vmatpush1.bf16.msra.mxu0 %v2304
      %2480 = vmatprep.subr.bf16.mxu0 %v2307
      %2481 = vmatpush1.bf16.msra.mxu0 %v2306
      %2482 = vmatprep.subr.bf16.mxu0 %v2309
      %2483 = vmatpush1.bf16.msra.mxu0 %v2308
      %2484 = vmatprep.subr.bf16.mxu0 %v2311
      %2485 = vmatpush1.bf16.msra.mxu0 %v2310
      %2486 = vmatprep.subr.bf16.mxu0 %v2313
      %2487 = vmatpush1.bf16.msra.mxu0 %v2312
      %2488 = vmatprep.subr.bf16.mxu0 %v2315
      %2489 = vmatpush1.bf16.msra.mxu0 %v2314
      %2490 = vmatprep.subr.bf16.mxu0 %v2317
      %2491 = vmatpush1.bf16.msra.mxu0 %v2316
      %2492 = vmatprep.subr.bf16.mxu0 %v2319
      %2493 = vmatpush1.bf16.msra.mxu0 %v2318
      %2494 = vmatprep.subr.bf16.mxu0 %v2321
      %2495 = vmatpush1.bf16.msra.mxu0 %v2320
      %2496 = vmatprep.mubr.bf16.mxu0 %v2389
      %2497 = vmatmul.mubr.bf16.gmra.mrb[0].mxu0 %v2388
      %v2498 = vpop.f32.mrb[0].mxu0
      %v2499 = vadd.f32 %v2446, %v2498
      %v2500 = vpop.f32.mrb[0].mxu0
      %v2501 = vadd.f32 %v2448, %v2500
      %v2502 = vpop.f32.mrb[0].mxu0
      %v2503 = vadd.f32 %v2450, %v2502
      %v2504 = vpop.f32.mrb[0].mxu0
      %v2505 = vadd.f32 %v2452, %v2504
      %2506 = vmatprep.mubr.bf16.mxu0 %v2394
      %2507 = vmatmul.mubr.bf16.gmra.mrb[0].mxu0 %v2393
      %v2508 = vpop.f32.mrb[0].mxu0
      %v2509 = vadd.f32 %v2456, %v2508
      %v2510 = vpop.f32.mrb[0].mxu0
      %v2511 = vadd.f32 %v2458, %v2510
      %v2512 = vpop.f32.mrb[0].mxu0
      %v2513 = vadd.f32 %v2460, %v2512
      %v2514 = vpop.f32.mrb[0].mxu0
      %v2515 = vadd.f32 %v2462, %v2514
      %2516 = vdwg.mxu0
      %2517 = vmatprep.subr.bf16.mxu0 %v2323
      %2518 = vmatpush1.bf16.msra.mxu0 %v2322
      %2519 = vmatprep.subr.bf16.mxu0 %v2325
      %2520 = vmatpush1.bf16.msra.mxu0 %v2324
      %2521 = vmatprep.subr.bf16.mxu0 %v2327
      %2522 = vmatpush1.bf16.msra.mxu0 %v2326
      %2523 = vmatprep.subr.bf16.mxu0 %v2329
      %2524 = vmatpush1.bf16.msra.mxu0 %v2328
      %2525 = vmatprep.subr.bf16.mxu0 0
      %2526 = vmatpush1.bf16.msra.mxu0 0
      %2527 = vmatprep.subr.bf16.mxu0 0
      %2528 = vmatpush1.bf16.msra.mxu0 0
      %2529 = vmatprep.subr.bf16.mxu0 0
      %2530 = vmatpush1.bf16.msra.mxu0 0
      %2531 = vmatprep.subr.bf16.mxu0 0
      %2532 = vmatpush1.bf16.msra.mxu0 0
      %2533 = vmatprep.subr.bf16.mxu0 0
      %2534 = vmatpush1.bf16.msra.mxu0 0
      %2535 = vmatprep.subr.bf16.mxu0 0
      %2536 = vmatpush1.bf16.msra.mxu0 0
      %2537 = vmatprep.subr.bf16.mxu0 0
      %2538 = vmatpush1.bf16.msra.mxu0 0
      %2539 = vmatprep.subr.bf16.mxu0 0
      %2540 = vmatpush1.bf16.msra.mxu0 0
      %2541 = vmatprep.subr.bf16.mxu0 0
      %2542 = vmatpush1.bf16.msra.mxu0 0
      %2543 = vmatprep.subr.bf16.mxu0 0
      %2544 = vmatpush1.bf16.msra.mxu0 0
      %2545 = vmatprep.subr.bf16.mxu0 0
      %2546 = vmatpush1.bf16.msra.mxu0 0
      %2547 = vmatprep.subr.bf16.mxu0 0
      %2548 = vmatpush1.bf16.msra.mxu0 0
      %2549 = vmatprep.mubr.bf16.mxu0 0
      %2550 = vmatmul.mubr.bf16.gmra.mrb[0].mxu0 %v2406
      %v2551 = vpop.f32.mrb[0].mxu0
      %v2552 = vadd.f32 %v2499, %v2551
      %v2553 = vpop.f32.mrb[0].mxu0
      %v2554 = vadd.f32 %v2501, %v2553
      %v2555 = vpop.f32.mrb[0].mxu0
      %v2556 = vadd.f32 %v2503, %v2555
      %v2557 = vpop.f32.mrb[0].mxu0
      %v2558 = vadd.f32 %v2505, %v2557
      %2559 = vmatprep.mubr.bf16.mxu0 0
      %2560 = vmatmul.mubr.bf16.gmra.mrb[0].mxu0 %v2409
      %v2561 = vpop.f32.mrb[0].mxu0
      %v2562 = vadd.f32 %v2509, %v2561
      %v2563 = vpop.f32.mrb[0].mxu0
      %v2564 = vadd.f32 %v2511, %v2563
      %v2565 = vpop.f32.mrb[0].mxu0
      %v2566 = vadd.f32 %v2513, %v2565
      %v2567 = vpop.f32.mrb[0].mxu0
      %v2568 = vadd.f32 %v2515, %v2567
      %2569 = vdwg.mxu0
      %vm2570 = vcmp.ge.f32.partialorder %v2552, 0.0
      %vm2571 = vcmp.ge.f32.partialorder %v2554, 0.0
      %vm2572 = vcmp.ge.f32.partialorder %v2556, 0.0
      %vm2573 = vcmp.ge.f32.partialorder %v2558, 0.0
      %vm2574 = vcmp.ge.f32.partialorder %v2562, 0.0
      %vm2575 = vcmp.ge.f32.partialorder %v2564, 0.0
      %vm2576 = vcmp.ge.f32.partialorder %v2566, 0.0
      %vm2577 = vcmp.ge.f32.partialorder %v2568, 0.0
      %v2578 = vmul.f32 %v2552, 0.01
      %v2579 = vmul.f32 %v2554, 0.01
      %v2580 = vmul.f32 %v2556, 0.01
      %v2581 = vmul.f32 %v2558, 0.01
      %v2582 = vmul.f32 %v2562, 0.01
      %v2583 = vmul.f32 %v2564, 0.01
      %v2584 = vmul.f32 %v2566, 0.01
      %v2585 = vmul.f32 %v2568, 0.01
      %v2586 = vsel %vm2570, %v2552, %v2578
      %v2587 = vsel %vm2571, %v2554, %v2579
      %v2588 = vsel %vm2572, %v2556, %v2580
      %v2589 = vsel %vm2573, %v2558, %v2581
      %v2590 = vsel %vm2574, %v2562, %v2582
      %v2591 = vsel %vm2575, %v2564, %v2583
      %v2592 = vsel %vm2576, %v2566, %v2584
      %v2593 = vsel %vm2577, %v2568, %v2585
      %v2594 = vld [vmem:[%s3 + $0x70] sm:$0xf]
      %v2595 = vld [vmem:[%s3 + $0x74] sm:$0xf]
      %v2596 = vld [vmem:[%s3 + $0x78] sm:$0xf]
      %v2597 = vld [vmem:[%s3 + $0x7c] sm:$0xf]
      %v2598 = vpack.c.bf16 %v2588, %v2586
      %v2599 = vpack.c.bf16 %v2589, %v2587
      %v2600 = vpack.c.bf16 %v2592, %v2590
      %v2601 = vpack.c.bf16 %v2593, %v2591
      %v2602 = vld [vmem:[%s5 + $0xf0] sm:$0xff]
      %v2603 = vld [vmem:[%s5 + $0xf8] sm:$0xff]
      %v2604 = vld [vmem:[%s5 + $0x100] sm:$0xff]
      %v2605 = vld [vmem:[%s5 + $0x108] sm:$0xff]
      %2607 = vset.pattern.permute.xlu0 0
      %2608 = vperm.xlu0 %2607, %v2602
      %v2609 = vpop.permute.xlu0 %2608
      %2612 = vset.pattern.permute.xlu0 0
      %2613 = vperm.xlu0 %2612, %v2603
      %v2614 = vpop.permute.xlu0 %2613
      %2617 = vset.pattern.permute.xlu0 0
      %2618 = vperm.xlu0 %2617, %v2604
      %v2619 = vpop.permute.xlu0 %2618
      %2622 = vset.pattern.permute.xlu0 0
      %2623 = vperm.xlu0 %2622, %v2605
      %v2624 = vpop.permute.xlu0 %2623
      %v2630 = vunpack.c.l.b16 %v2594
      %v2631 = vunpack.c.l.b16 %v2595
      %v2632 = vunpack.c.l.b16 %v2596
      %v2633 = vunpack.c.l.b16 %v2597
      %v2634 = vpack.c.b16 %v2631, %v2630
      %v2635 = vpack.c.b16 %v2633, %v2632
      %v2637 = vsel %vm854, %v2634, 0
      %v2640 = vsel %vm854, %v2635, 0
      %2642 = vmatprep.subr.bf16.mxu0 %v2599
      %2643 = vmatpush1.bf16.msra.mxu0 %v2598
      %2644 = vmatprep.subr.bf16.mxu0 %v2601
      %2645 = vmatpush1.bf16.msra.mxu0 %v2600
      %2646 = vmatprep.subr.bf16.mxu0 0
      %2647 = vmatpush1.bf16.msra.mxu0 0
      %2648 = vmatprep.subr.bf16.mxu0 0
      %2649 = vmatpush1.bf16.msra.mxu0 0
      %2650 = vmatprep.subr.bf16.mxu0 0
      %2651 = vmatpush1.bf16.msra.mxu0 0
      %2652 = vmatprep.subr.bf16.mxu0 0
      %2653 = vmatpush1.bf16.msra.mxu0 0
      %2654 = vmatprep.subr.bf16.mxu0 0
      %2655 = vmatpush1.bf16.msra.mxu0 0
      %2656 = vmatprep.subr.bf16.mxu0 0
      %2657 = vmatpush1.bf16.msra.mxu0 0
      %2658 = vmatprep.subr.bf16.mxu0 0
      %2659 = vmatpush1.bf16.msra.mxu0 0
      %2660 = vmatprep.subr.bf16.mxu0 0
      %2661 = vmatpush1.bf16.msra.mxu0 0
      %2662 = vmatprep.subr.bf16.mxu0 0
      %2663 = vmatpush1.bf16.msra.mxu0 0
      %2664 = vmatprep.subr.bf16.mxu0 0
      %2665 = vmatpush1.bf16.msra.mxu0 0
      %2666 = vmatprep.subr.bf16.mxu0 0
      %2667 = vmatpush1.bf16.msra.mxu0 0
      %2668 = vmatprep.subr.bf16.mxu0 0
      %2669 = vmatpush1.bf16.msra.mxu0 0
      %2670 = vmatprep.subr.bf16.mxu0 0
      %2671 = vmatpush1.bf16.msra.mxu0 0
      %2672 = vmatprep.subr.bf16.mxu0 0
      %2673 = vmatpush1.bf16.msra.mxu0 0
      %2674 = vmatprep.mubr.bf16.mxu0 0
      %2675 = vmatmul.mubr.bf16.gmra.mrb[0].mxu0 %v2637
      %v2676 = vpop.f32.mrb[0].mxu0
      %v2677 = vadd.f32 %v2609, %v2676
      %v2678 = vpop.f32.mrb[0].mxu0
      %v2679 = vadd.f32 %v2609, %v2678
      %v2680 = vpop.f32.mrb[0].mxu0
      %v2681 = vadd.f32 %v2614, %v2680
      %v2682 = vpop.f32.mrb[0].mxu0
      %v2683 = vadd.f32 %v2614, %v2682
      %2684 = vmatprep.mubr.bf16.mxu0 0
      %2685 = vmatmul.mubr.bf16.gmra.mrb[0].mxu0 %v2640
      %v2686 = vpop.f32.mrb[0].mxu0
      %v2687 = vadd.f32 %v2619, %v2686
      %v2688 = vpop.f32.mrb[0].mxu0
      %v2689 = vadd.f32 %v2619, %v2688
      %v2690 = vpop.f32.mrb[0].mxu0
      %v2691 = vadd.f32 %v2624, %v2690
      %v2692 = vpop.f32.mrb[0].mxu0
      %v2693 = vadd.f32 %v2624, %v2692
      %2694 = vdwg.mxu0
      %vm2695 = vcmp.ge.f32.partialorder %v2677, 0.0
      %vm2696 = vcmp.ge.f32.partialorder %v2679, 0.0
      %vm2697 = vcmp.ge.f32.partialorder %v2681, 0.0
      %vm2698 = vcmp.ge.f32.partialorder %v2683, 0.0
      %vm2699 = vcmp.ge.f32.partialorder %v2687, 0.0
      %vm2700 = vcmp.ge.f32.partialorder %v2689, 0.0
      %vm2701 = vcmp.ge.f32.partialorder %v2691, 0.0
      %vm2702 = vcmp.ge.f32.partialorder %v2693, 0.0
      %v2703 = vmul.f32 %v2677, 0.01
      %v2704 = vmul.f32 %v2679, 0.01
      %v2705 = vmul.f32 %v2681, 0.01
      %v2706 = vmul.f32 %v2683, 0.01
      %v2707 = vmul.f32 %v2687, 0.01
      %v2708 = vmul.f32 %v2689, 0.01
      %v2709 = vmul.f32 %v2691, 0.01
      %v2710 = vmul.f32 %v2693, 0.01
      %v2711 = vsel %vm2695, %v2677, %v2703
      %v2712 = vsel %vm2696, %v2679, %v2704
      %v2713 = vsel %vm2697, %v2681, %v2705
      %v2714 = vsel %vm2698, %v2683, %v2706
      %v2715 = vsel %vm2699, %v2687, %v2707
      %v2716 = vsel %vm2700, %v2689, %v2708
      %v2717 = vsel %vm2701, %v2691, %v2709
      %v2718 = vsel %vm2702, %v2693, %v2710
      %2719 = vst [vmem:[%s285] sm:$0xff] %v2711
      %2720 = vst [vmem:[%s285 + $0x8] sm:$0xff] %v2712
      %2721 = vst [vmem:[%s285 + $0x10] sm:$0xff] %v2713
      %2722 = vst [vmem:[%s285 + $0x18] sm:$0xff] %v2714
      %2723 = vst [vmem:[%s285 + $0x20] sm:$0xff] %v2715
      %2724 = vst [vmem:[%s285 + $0x28] sm:$0xff] %v2716
      %2725 = vst [vmem:[%s285 + $0x30] sm:$0xff] %v2717
      %2726 = vst [vmem:[%s285 + $0x38] sm:$0xff] %v2718
      %p2727 = scmp.lt.s32.totalorder %s19, 1
      %s2728 = scalar_select %p2727, %s19, 1
      %s2729 = smul.addr %s2728, 8
      %s2730 = smul.addr %s2729, 8
      %s2731 = scalar_lea.vmem %s6, %s2730
      %p2732 = scmp.lt.s32.totalorder %s19, 1
      %s2733 = scalar_select %p2732, %s19, 1
      %s2734 = smul.addr %s2733, 8
      %s2735 = scalar_lea.vmem %s7, %s2734
      // Predicated region
      $region45: #{forward.1} parent=43 // pred_check
        %p2736 = pneg %p168
      $region46: #{forward.1} parent=43 // pred_check_branch
        %2738 = sbr.rel (%p2736) target = $region48
      $region47: #{forward.1} parent=43 // pred_region
        _
      $region48: #{forward.1} parent=43 // pred_fallthru
        _
      // Predicated region
      $region49: #{forward.1} parent=43 // pred_check
        %p2739 = pneg %p194
      $region50: #{forward.1} parent=43 // pred_check_branch
        %2741 = sbr.rel (%p2739) target = $region52
      $region51: #{forward.1} parent=43 // pred_region
        _
      $region52: #{forward.1} parent=43 // pred_fallthru
        _
    $region44: #{forward.1} parent=5 // pred_fallthru
      _
    %p2742 = scmp.le.s32.totalorder 2, %s14
    // Predicated region
    $region53: #{forward.1} parent=5 // pred_check
      %p2743 = pneg %p2742
    $region54: #{forward.1} parent=5 // pred_check_branch
      %2745 = sbr.rel (%p2743) target = $region56
    $region55: #{forward.1} parent=5 // pred_region
      %s2746 = ssub.s32 %s14, 2
      // Predicated region
      $region57: #{forward.1} parent=55 // pred_check
        %p2747 = pneg %p174
      $region58: #{forward.1} parent=55 // pred_check_branch
        %2749 = sbr.rel (%p2747) target = $region60
      $region59: #{forward.1} parent=55 // pred_region
        %p2750 = scmp.lt.s32.totalorder %s20, 1
        %s2751 = scalar_select %p2750, %s20, 1
        %s2752 = smul.addr %s2751, 8
        %s2753 = smul.addr %s2752, 8
        %s2754 = scalar_lea.vmem %s6, %s2753
      $region60: #{forward.1} parent=55 // pred_fallthru
        _
      // Predicated region
      $region61: #{forward.1} parent=55 // pred_check
        %p2755 = pneg %p200
      $region62: #{forward.1} parent=55 // pred_check_branch
        %2757 = sbr.rel (%p2755) target = $region64
      $region63: #{forward.1} parent=55 // pred_region
        %p2758 = scmp.lt.s32.totalorder %s20, 1
        %s2759 = scalar_select %p2758, %s20, 1
        %s2760 = smul.addr %s2759, 8
        %s2761 = scalar_lea.vmem %s7, %s2760
      $region64: #{forward.1} parent=55 // pred_fallthru
        _
    $region56: #{forward.1} parent=5 // pred_fallthru
      _
  $region6: #{forward.1} parent=0 // loop_footer
    %s18 = sadd.s32 1, %s14
  $region7: #{forward.1} parent=0 // loop_footer_branch
    %13 = sbr.rel target = $region3
  $region8: #{forward.1} parent=0 // loop_exit
    _

</llo_original>
